<compile_context>
chip_gen: v5e
topology: v5e:2x2
jax: 0.10.0
libtpu: 0.0.40
codegen_flags: <defaults>
</compile_context>

<pallas_src>
import functools
from math import sqrt

import jax
import jax.numpy as jnp
from jax.experimental import pallas as pl
from jax.experimental.pallas import tpu as pltpu


def _round_up(x, m):
    return (x + m - 1) // m * m


def lstm_kernel(x_ref, wih1_ref, whh1_ref, b1_ref,
                w2_ref, b2_ref, wl_ref, bl_ref,
                out_ref, xg_ref, *, seq_len, b_pad, hidden_pad):
    hp = hidden_pad
    four_h = 4 * hp

    # ---- preamble ---------------------------------------------------------
    # Layer-1 input projection for ALL timesteps as one MXU-friendly matmul
    # (M = T*Bp instead of T tiny M=B pushes); bias b1 = b_ih1 + b_hh1 fused.
    xg_ref[...] = (jnp.dot(x_ref[...], wih1_ref[...],
                           preferred_element_type=jnp.float32)
                   + b1_ref[...])                      # (T*Bp, 4Hp)

    # Hoist weight reads and the bias broadcast out of the serial recurrence
    # (JAX does not CSE broadcast_in_dim inside the loop body).
    whh1 = whh1_ref[...]                               # (Hp, 4Hp)
    w2 = w2_ref[...]                                   # (2Hp, 4Hp) = [Wih2;Whh2]
    b2 = jnp.broadcast_to(b2_ref[...], (b_pad, four_h))

    def gates_to_state(gates, c):
        # Gates packed as [i, f, o, g] (host-side reorder): one contiguous
        # sigmoid slab (Bp, 3Hp) + tanh on the last lane group.
        ifo = jax.nn.sigmoid(gates[:, :3 * hp])
        i = ifo[:, 0 * hp:1 * hp]
        f = ifo[:, 1 * hp:2 * hp]
        o = ifo[:, 2 * hp:3 * hp]
        g = jnp.tanh(gates[:, 3 * hp:4 * hp])
        c_new = f * c + i * g
        h_new = o * jnp.tanh(c_new)
        return h_new, c_new

    def step(t, carry):
        h1, c1, h2, c2 = carry
        row = pl.multiple_of(t * b_pad, b_pad)
        xg_t = xg_ref[pl.ds(row, b_pad), :]            # precomputed x_t@Wih1+b1

        # layer 1: only the recurrent matmul on the critical path
        g1 = xg_t + jnp.dot(h1, whh1, preferred_element_type=jnp.float32)
        h1, c1 = gates_to_state(g1, c1)

        # TODO(synk): inter-layer dropout (p=0.5) applies only in training;
        #             eval-mode forward is the identity, which is what we do.
        # layer 2: single fused matmul [h1|h2] @ [Wih2;Whh2]  (K = 2*Hp = 256)
        h12 = jnp.concatenate([h1, h2], axis=-1)       # (Bp, 2Hp)
        g2 = jnp.dot(h12, w2, preferred_element_type=jnp.float32) + b2
        h2, c2 = gates_to_state(g2, c2)
        return h1, c1, h2, c2

    z = jnp.zeros((b_pad, hp), jnp.float32)
    _, _, h2, _ = jax.lax.fori_loop(0, seq_len, step, (z, z, z, z),
                                    unroll=(seq_len <= 32))

    # Final linear head: VPU multiply + lane reduction (avoids an N=1 MXU
    # matmul) and a lane-dense (Bp, 128) store; wrapper slices out (B, 1).
    y = jnp.sum(h2 * wl_ref[...], axis=-1, keepdims=True) + bl_ref[0]
    out_ref[...] = jnp.broadcast_to(y, out_ref.shape)


def ts_model_lstm_forward(x, params, *, hidden):
    """x: (B, T, F) float32 (batch_first, like the PyTorch module)."""
    B, T, F = x.shape
    b_pad = _round_up(max(B, 8), 8)           # sublane-pad batch
    h_pad = _round_up(max(hidden, 128), 128)  # lane-pad hidden
    f_pad = _round_up(max(F, 128), 128)       # lane-pad features
    four_h = 4 * h_pad

    # PyTorch gate order is [i, f, g, o]; we repack as [i, f, o, g] so the
    # kernel's sigmoid slab is contiguous.
    gate_perm = jnp.array([0, 1, 3, 2])

    def pad_gate_w(w, in_pad):
        # PyTorch (4H, in) gate-stacked weight -> padded, transposed (in_pad, 4Hp)
        w4 = w.reshape(4, hidden, w.shape[1])[gate_perm]
        w4 = jnp.pad(w4, ((0, 0), (0, h_pad - hidden), (0, in_pad - w.shape[1])))
        return w4.reshape(4 * h_pad, in_pad).T

    def pad_gate_b(b_ih, b_hh):
        b = (b_ih + b_hh).reshape(4, hidden)[gate_perm]
        b = jnp.pad(b, ((0, 0), (0, h_pad - hidden)))
        return b.reshape(1, four_h)

    wih1 = pad_gate_w(params["w_ih1"], f_pad)            # (Fp, 4Hp)
    whh1 = pad_gate_w(params["w_hh1"], h_pad)            # (Hp, 4Hp)
    b1 = pad_gate_b(params["b_ih1"], params["b_hh1"])    # (1, 4Hp)
    wih2 = pad_gate_w(params["w_ih2"], h_pad)            # (Hp, 4Hp)
    whh2 = pad_gate_w(params["w_hh2"], h_pad)            # (Hp, 4Hp)
    w2 = jnp.concatenate([wih2, whh2], axis=0)           # (2Hp, 4Hp) fused
    b2 = pad_gate_b(params["b_ih2"], params["b_hh2"])    # (1, 4Hp)
    wl = jnp.pad(params["w_lin"], ((0, 0), (0, h_pad - hidden)))  # (1, Hp)
    bl = params["b_lin"].reshape(1)                      # (1,) scalar -> SMEM

    # time-major, batch/lane zero-padded, flattened to (T*Bp, Fp)
    x_tm = jnp.transpose(x, (1, 0, 2))
    x_tm = jnp.pad(x_tm, ((0, 0), (0, b_pad - B), (0, f_pad - F)))
    x_flat = x_tm.reshape(T * b_pad, f_pad)

    kernel = functools.partial(lstm_kernel, seq_len=T, b_pad=b_pad,
                               hidden_pad=h_pad)

    out = pl.pallas_call(
        kernel,
        out_shape=jax.ShapeDtypeStruct((b_pad, 128), jnp.float32),
        in_specs=(
            [pl.BlockSpec(memory_space=pltpu.MemorySpace.VMEM)
             for _ in range(7)]                              # x + weights/biases
            + [pl.BlockSpec(memory_space=pltpu.MemorySpace.SMEM)]  # b_lin scalar
        ),
        out_specs=pl.BlockSpec(memory_space=pltpu.MemorySpace.VMEM),
        scratch_shapes=[
            pltpu.VMEM((T * b_pad, four_h), jnp.float32),    # precomputed gates
        ],
    )(x_flat, wih1, whh1, b1, w2, b2, wl, bl)

    return out[:B, :1]


def init_params(key, n_features, hidden):
    """PyTorch-style uniform(-1/sqrt(H), 1/sqrt(H)) deterministic init."""
    k = 1.0 / sqrt(hidden)
    keys = jax.random.split(key, 10)
    u = lambda kk, shape: jax.random.uniform(kk, shape, jnp.float32, -k, k)
    return {
        "w_ih1": u(keys[0], (4 * hidden, n_features)),
        "w_hh1": u(keys[1], (4 * hidden, hidden)),
        "b_ih1": u(keys[2], (4 * hidden,)),
        "b_hh1": u(keys[3], (4 * hidden,)),
        "w_ih2": u(keys[4], (4 * hidden, hidden)),
        "w_hh2": u(keys[5], (4 * hidden, hidden)),
        "b_ih2": u(keys[6], (4 * hidden,)),
        "b_hh2": u(keys[7], (4 * hidden,)),
        "w_lin": u(keys[8], (1, hidden)),
        "b_lin": u(keys[9], (1,)),
    }


def reference_forward(x, params, hidden):
    """Pure-JAX eval-mode reference of TSModel_lstm.forward."""
    B, T, F = x.shape

    def cell(xt, h, c, wih, whh, bih, bhh):
        gates = xt @ wih.T + h @ whh.T + bih + bhh
        i, f, g, o = jnp.split(gates, 4, axis=-1)
        c = jax.nn.sigmoid(f) * c + jax.nn.sigmoid(i) * jnp.tanh(g)
        h = jax.nn.sigmoid(o) * jnp.tanh(c)
        return h, c

    h1 = c1 = h2 = c2 = jnp.zeros((B, hidden), jnp.float32)
    for t in range(T):
        h1, c1 = cell(x[:, t], h1, c1, params["w_ih1"], params["w_hh1"],
                      params["b_ih1"], params["b_hh1"])
        h2, c2 = cell(h1, h2, c2, params["w_ih2"], params["w_hh2"],
                      params["b_ih2"], params["b_hh2"])
    return h2 @ params["w_lin"].T + params["b_lin"]


if __name__ == "__main__":
    B, T, F, H = 2, 8, 8, 64          # batch, seq, n_features, hidden_size

    key = jax.random.PRNGKey(0)
    kx, kp = jax.random.split(key)
    x = jax.random.normal(kx, (B, T, F), jnp.float32)
    params = init_params(kp, F, H)

    y = ts_model_lstm_forward(x, params, hidden=H)
    y = jax.block_until_ready(y)

    y_ref = reference_forward(x, params, H)
    assert y.shape == (B, 1)
    assert jnp.allclose(y, y_ref, atol=1e-4, rtol=1e-4), (y, y_ref)
    print("KERNEL_OK")
</pallas_src>

<mosaic_0001>
module attributes {stable_mosaic.version = 11 : i64} {
  func.func @lstm_kernel(%arg0: memref<64x128xf32, #tpu.memory_space<vmem>>, %arg1: memref<128x512xf32, #tpu.memory_space<vmem>>, %arg2: memref<128x512xf32, #tpu.memory_space<vmem>>, %arg3: memref<1x512xf32, #tpu.memory_space<vmem>>, %arg4: memref<256x512xf32, #tpu.memory_space<vmem>>, %arg5: memref<1x512xf32, #tpu.memory_space<vmem>>, %arg6: memref<1x128xf32, #tpu.memory_space<vmem>>, %arg7: memref<1xf32, #tpu.memory_space<smem>>, %arg8: memref<8x128xf32, #tpu.memory_space<vmem>>, %arg9: memref<64x512xf32, #tpu.memory_space<vmem>>) attributes {dimension_semantics = [], scalar_prefetch = 0 : i64, scratch_operands = 1 : i64, tpu.core_type = #tpu.core_type<tc>} {
    %c0 = arith.constant 0 : index
    %c0_0 = arith.constant 0 : index
    %0 = vector.load %arg0[%c0, %c0_0] : memref<64x128xf32, #tpu.memory_space<vmem>>, vector<64x128xf32>
    %c0_1 = arith.constant 0 : index
    %c0_2 = arith.constant 0 : index
    %1 = vector.load %arg1[%c0_1, %c0_2] : memref<128x512xf32, #tpu.memory_space<vmem>>, vector<128x512xf32>
    %cst = arith.constant dense<0.000000e+00> : vector<64x512xf32>
    %2 = tpu.matmul %0, %1, %cst {dimension_numbers = #tpu.dot_dimension_numbers<[1], [0], [0], [1], [0, 0, 1, 1], [], []>} : vector<64x128xf32>, vector<128x512xf32>, vector<64x512xf32> -> vector<64x512xf32>
    %c0_3 = arith.constant 0 : index
    %c0_4 = arith.constant 0 : index
    %3 = vector.load %arg3[%c0_3, %c0_4] : memref<1x512xf32, #tpu.memory_space<vmem>>, vector<1x512xf32>
    %4 = vector.broadcast %3 : vector<1x512xf32> to vector<64x512xf32>
    %5 = arith.addf %2, %4 : vector<64x512xf32>
    %c0_5 = arith.constant 0 : index
    %c0_6 = arith.constant 0 : index
    %6 = vector.load %arg9[%c0_5, %c0_6] : memref<64x512xf32, #tpu.memory_space<vmem>>, vector<64x512xf32>
    tpu.vector_store %arg9[%c0_5, %c0_6], %5 {strides = array<i32>} : memref<64x512xf32, #tpu.memory_space<vmem>>, vector<64x512xf32>,
    %c0_7 = arith.constant 0 : index
    %c0_8 = arith.constant 0 : index
    %7 = vector.load %arg2[%c0_7, %c0_8] : memref<128x512xf32, #tpu.memory_space<vmem>>, vector<128x512xf32>
    %c0_9 = arith.constant 0 : index
    %c0_10 = arith.constant 0 : index
    %8 = vector.load %arg4[%c0_9, %c0_10] : memref<256x512xf32, #tpu.memory_space<vmem>>, vector<256x512xf32>
    %c0_11 = arith.constant 0 : index
    %c0_12 = arith.constant 0 : index
    %9 = vector.load %arg5[%c0_11, %c0_12] : memref<1x512xf32, #tpu.memory_space<vmem>>, vector<1x512xf32>
    %10 = vector.shape_cast %9 : vector<1x512xf32> to vector<1x512xf32>
    %11 = vector.broadcast %10 : vector<1x512xf32> to vector<8x512xf32>
    %cst_13 = arith.constant 0.000000e+00 : f32
    %12 = vector.broadcast %cst_13 : f32 to vector<8x128xf32>
    %c0_i32 = arith.constant 0 : i32
    %c8_i32 = arith.constant 8 : i32
    %13 = arith.muli %c0_i32, %c8_i32 : i32
    %14 = tpu.assume_multiple %13, 8 : i32
    %15 = arith.index_cast %14 : i32 to index
    %c0_14 = arith.constant 0 : index
    %16 = vector.load %arg9[%15, %c0_14] : memref<64x512xf32, #tpu.memory_space<vmem>>, vector<8x512xf32>
    %cst_15 = arith.constant dense<0.000000e+00> : vector<8x512xf32>
    %17 = tpu.matmul %12, %7, %cst_15 {dimension_numbers = #tpu.dot_dimension_numbers<[1], [0], [0], [1], [0, 0, 1, 1], [], []>} : vector<8x128xf32>, vector<128x512xf32>, vector<8x512xf32> -> vector<8x512xf32>
    %18 = arith.addf %16, %17 : vector<8x512xf32>
    %19 = vector.extract_strided_slice %18 {offsets = [0, 0], sizes = [8, 384], strides = [1, 1]} : vector<8x512xf32> to vector<8x384xf32>
    %20 = arith.negf %19 : vector<8x384xf32>
    %21 = math.exp %20 : vector<8x384xf32>
    %cst_16 = arith.constant 1.000000e+00 : f32
    %22 = vector.broadcast %cst_16 : f32 to vector<8x384xf32>
    %23 = arith.addf %22, %21 : vector<8x384xf32>
    %24 = arith.divf %22, %23 : vector<8x384xf32>
    %25 = vector.extract_strided_slice %24 {offsets = [0, 0], sizes = [8, 128], strides = [1, 1]} : vector<8x384xf32> to vector<8x128xf32>
    %26 = vector.extract_strided_slice %24 {offsets = [0, 128], sizes = [8, 128], strides = [1, 1]} : vector<8x384xf32> to vector<8x128xf32>
    %27 = vector.extract_strided_slice %24 {offsets = [0, 256], sizes = [8, 128], strides = [1, 1]} : vector<8x384xf32> to vector<8x128xf32>
    %28 = vector.extract_strided_slice %18 {offsets = [0, 384], sizes = [8, 128], strides = [1, 1]} : vector<8x512xf32> to vector<8x128xf32>
    %29 = math.tanh %28 : vector<8x128xf32>
    %30 = arith.mulf %26, %12 : vector<8x128xf32>
    %31 = arith.mulf %25, %29 : vector<8x128xf32>
    %32 = arith.addf %30, %31 : vector<8x128xf32>
    %33 = math.tanh %32 : vector<8x128xf32>
    %34 = arith.mulf %27, %33 : vector<8x128xf32>
    %35 = tpu.concatenate %34, %12 in 1 : vector<8x128xf32>, vector<8x128xf32> -> vector<8x256xf32>
    %cst_17 = arith.constant dense<0.000000e+00> : vector<8x512xf32>
    %36 = tpu.matmul %35, %8, %cst_17 {dimension_numbers = #tpu.dot_dimension_numbers<[1], [0], [0], [1], [0, 0, 1, 1], [], []>} : vector<8x256xf32>, vector<256x512xf32>, vector<8x512xf32> -> vector<8x512xf32>
    %37 = arith.addf %36, %11 : vector<8x512xf32>
    %38 = vector.extract_strided_slice %37 {offsets = [0, 0], sizes = [8, 384], strides = [1, 1]} : vector<8x512xf32> to vector<8x384xf32>
    %39 = arith.negf %38 : vector<8x384xf32>
    %40 = math.exp %39 : vector<8x384xf32>
    %cst_18 = arith.constant 1.000000e+00 : f32
    %41 = vector.broadcast %cst_18 : f32 to vector<8x384xf32>
    %42 = arith.addf %41, %40 : vector<8x384xf32>
    %43 = arith.divf %41, %42 : vector<8x384xf32>
    %44 = vector.extract_strided_slice %43 {offsets = [0, 0], sizes = [8, 128], strides = [1, 1]} : vector<8x384xf32> to vector<8x128xf32>
    %45 = vector.extract_strided_slice %43 {offsets = [0, 128], sizes = [8, 128], strides = [1, 1]} : vector<8x384xf32> to vector<8x128xf32>
    %46 = vector.extract_strided_slice %43 {offsets = [0, 256], sizes = [8, 128], strides = [1, 1]} : vector<8x384xf32> to vector<8x128xf32>
    %47 = vector.extract_strided_slice %37 {offsets = [0, 384], sizes = [8, 128], strides = [1, 1]} : vector<8x512xf32> to vector<8x128xf32>
    %48 = math.tanh %47 : vector<8x128xf32>
    %49 = arith.mulf %45, %12 : vector<8x128xf32>
    %50 = arith.mulf %44, %48 : vector<8x128xf32>
    %51 = arith.addf %49, %50 : vector<8x128xf32>
    %52 = math.tanh %51 : vector<8x128xf32>
    %53 = arith.mulf %46, %52 : vector<8x128xf32>
    %c1_i32 = arith.constant 1 : i32
    %c8_i32_19 = arith.constant 8 : i32
    %54 = arith.muli %c1_i32, %c8_i32_19 : i32
    %55 = tpu.assume_multiple %54, 8 : i32
    %56 = arith.index_cast %55 : i32 to index
    %c0_20 = arith.constant 0 : index
    %57 = vector.load %arg9[%56, %c0_20] : memref<64x512xf32, #tpu.memory_space<vmem>>, vector<8x512xf32>
    %cst_21 = arith.constant dense<0.000000e+00> : vector<8x512xf32>
    %58 = tpu.matmul %34, %7, %cst_21 {dimension_numbers = #tpu.dot_dimension_numbers<[1], [0], [0], [1], [0, 0, 1, 1], [], []>} : vector<8x128xf32>, vector<128x512xf32>, vector<8x512xf32> -> vector<8x512xf32>
    %59 = arith.addf %57, %58 : vector<8x512xf32>
    %60 = vector.extract_strided_slice %59 {offsets = [0, 0], sizes = [8, 384], strides = [1, 1]} : vector<8x512xf32> to vector<8x384xf32>
    %61 = arith.negf %60 : vector<8x384xf32>
    %62 = math.exp %61 : vector<8x384xf32>
    %cst_22 = arith.constant 1.000000e+00 : f32
    %63 = vector.broadcast %cst_22 : f32 to vector<8x384xf32>
    %64 = arith.addf %63, %62 : vector<8x384xf32>
    %65 = arith.divf %63, %64 : vector<8x384xf32>
    %66 = vector.extract_strided_slice %65 {offsets = [0, 0], sizes = [8, 128], strides = [1, 1]} : vector<8x384xf32> to vector<8x128xf32>
    %67 = vector.extract_strided_slice %65 {offsets = [0, 128], sizes = [8, 128], strides = [1, 1]} : vector<8x384xf32> to vector<8x128xf32>
    %68 = vector.extract_strided_slice %65 {offsets = [0, 256], sizes = [8, 128], strides = [1, 1]} : vector<8x384xf32> to vector<8x128xf32>
    %69 = vector.extract_strided_slice %59 {offsets = [0, 384], sizes = [8, 128], strides = [1, 1]} : vector<8x512xf32> to vector<8x128xf32>
    %70 = math.tanh %69 : vector<8x128xf32>
    %71 = arith.mulf %67, %32 : vector<8x128xf32>
    %72 = arith.mulf %66, %70 : vector<8x128xf32>
    %73 = arith.addf %71, %72 : vector<8x128xf32>
    %74 = math.tanh %73 : vector<8x128xf32>
    %75 = arith.mulf %68, %74 : vector<8x128xf32>
    %76 = tpu.concatenate %75, %53 in 1 : vector<8x128xf32>, vector<8x128xf32> -> vector<8x256xf32>
    %cst_23 = arith.constant dense<0.000000e+00> : vector<8x512xf32>
    %77 = tpu.matmul %76, %8, %cst_23 {dimension_numbers = #tpu.dot_dimension_numbers<[1], [0], [0], [1], [0, 0, 1, 1], [], []>} : vector<8x256xf32>, vector<256x512xf32>, vector<8x512xf32> -> vector<8x512xf32>
    %78 = arith.addf %77, %11 : vector<8x512xf32>
    %79 = vector.extract_strided_slice %78 {offsets = [0, 0], sizes = [8, 384], strides = [1, 1]} : vector<8x512xf32> to vector<8x384xf32>
    %80 = arith.negf %79 : vector<8x384xf32>
    %81 = math.exp %80 : vector<8x384xf32>
    %cst_24 = arith.constant 1.000000e+00 : f32
    %82 = vector.broadcast %cst_24 : f32 to vector<8x384xf32>
    %83 = arith.addf %82, %81 : vector<8x384xf32>
    %84 = arith.divf %82, %83 : vector<8x384xf32>
    %85 = vector.extract_strided_slice %84 {offsets = [0, 0], sizes = [8, 128], strides = [1, 1]} : vector<8x384xf32> to vector<8x128xf32>
    %86 = vector.extract_strided_slice %84 {offsets = [0, 128], sizes = [8, 128], strides = [1, 1]} : vector<8x384xf32> to vector<8x128xf32>
    %87 = vector.extract_strided_slice %84 {offsets = [0, 256], sizes = [8, 128], strides = [1, 1]} : vector<8x384xf32> to vector<8x128xf32>
    %88 = vector.extract_strided_slice %78 {offsets = [0, 384], sizes = [8, 128], strides = [1, 1]} : vector<8x512xf32> to vector<8x128xf32>
    %89 = math.tanh %88 : vector<8x128xf32>
    %90 = arith.mulf %86, %51 : vector<8x128xf32>
    %91 = arith.mulf %85, %89 : vector<8x128xf32>
    %92 = arith.addf %90, %91 : vector<8x128xf32>
    %93 = math.tanh %92 : vector<8x128xf32>
    %94 = arith.mulf %87, %93 : vector<8x128xf32>
    %c2_i32 = arith.constant 2 : i32
    %c8_i32_25 = arith.constant 8 : i32
    %95 = arith.muli %c2_i32, %c8_i32_25 : i32
    %96 = tpu.assume_multiple %95, 8 : i32
    %97 = arith.index_cast %96 : i32 to index
    %c0_26 = arith.constant 0 : index
    %98 = vector.load %arg9[%97, %c0_26] : memref<64x512xf32, #tpu.memory_space<vmem>>, vector<8x512xf32>
    %cst_27 = arith.constant dense<0.000000e+00> : vector<8x512xf32>
    %99 = tpu.matmul %75, %7, %cst_27 {dimension_numbers = #tpu.dot_dimension_numbers<[1], [0], [0], [1], [0, 0, 1, 1], [], []>} : vector<8x128xf32>, vector<128x512xf32>, vector<8x512xf32> -> vector<8x512xf32>
    %100 = arith.addf %98, %99 : vector<8x512xf32>
    %101 = vector.extract_strided_slice %100 {offsets = [0, 0], sizes = [8, 384], strides = [1, 1]} : vector<8x512xf32> to vector<8x384xf32>
    %102 = arith.negf %101 : vector<8x384xf32>
    %103 = math.exp %102 : vector<8x384xf32>
    %cst_28 = arith.constant 1.000000e+00 : f32
    %104 = vector.broadcast %cst_28 : f32 to vector<8x384xf32>
    %105 = arith.addf %104, %103 : vector<8x384xf32>
    %106 = arith.divf %104, %105 : vector<8x384xf32>
    %107 = vector.extract_strided_slice %106 {offsets = [0, 0], sizes = [8, 128], strides = [1, 1]} : vector<8x384xf32> to vector<8x128xf32>
    %108 = vector.extract_strided_slice %106 {offsets = [0, 128], sizes = [8, 128], strides = [1, 1]} : vector<8x384xf32> to vector<8x128xf32>
    %109 = vector.extract_strided_slice %106 {offsets = [0, 256], sizes = [8, 128], strides = [1, 1]} : vector<8x384xf32> to vector<8x128xf32>
    %110 = vector.extract_strided_slice %100 {offsets = [0, 384], sizes = [8, 128], strides = [1, 1]} : vector<8x512xf32> to vector<8x128xf32>
    %111 = math.tanh %110 : vector<8x128xf32>
    %112 = arith.mulf %108, %73 : vector<8x128xf32>
    %113 = arith.mulf %107, %111 : vector<8x128xf32>
    %114 = arith.addf %112, %113 : vector<8x128xf32>
    %115 = math.tanh %114 : vector<8x128xf32>
    %116 = arith.mulf %109, %115 : vector<8x128xf32>
    %117 = tpu.concatenate %116, %94 in 1 : vector<8x128xf32>, vector<8x128xf32> -> vector<8x256xf32>
    %cst_29 = arith.constant dense<0.000000e+00> : vector<8x512xf32>
    %118 = tpu.matmul %117, %8, %cst_29 {dimension_numbers = #tpu.dot_dimension_numbers<[1], [0], [0], [1], [0, 0, 1, 1], [], []>} : vector<8x256xf32>, vector<256x512xf32>, vector<8x512xf32> -> vector<8x512xf32>
    %119 = arith.addf %118, %11 : vector<8x512xf32>
    %120 = vector.extract_strided_slice %119 {offsets = [0, 0], sizes = [8, 384], strides = [1, 1]} : vector<8x512xf32> to vector<8x384xf32>
    %121 = arith.negf %120 : vector<8x384xf32>
    %122 = math.exp %121 : vector<8x384xf32>
    %cst_30 = arith.constant 1.000000e+00 : f32
    %123 = vector.broadcast %cst_30 : f32 to vector<8x384xf32>
    %124 = arith.addf %123, %122 : vector<8x384xf32>
    %125 = arith.divf %123, %124 : vector<8x384xf32>
    %126 = vector.extract_strided_slice %125 {offsets = [0, 0], sizes = [8, 128], strides = [1, 1]} : vector<8x384xf32> to vector<8x128xf32>
    %127 = vector.extract_strided_slice %125 {offsets = [0, 128], sizes = [8, 128], strides = [1, 1]} : vector<8x384xf32> to vector<8x128xf32>
    %128 = vector.extract_strided_slice %125 {offsets = [0, 256], sizes = [8, 128], strides = [1, 1]} : vector<8x384xf32> to vector<8x128xf32>
    %129 = vector.extract_strided_slice %119 {offsets = [0, 384], sizes = [8, 128], strides = [1, 1]} : vector<8x512xf32> to vector<8x128xf32>
    %130 = math.tanh %129 : vector<8x128xf32>
    %131 = arith.mulf %127, %92 : vector<8x128xf32>
    %132 = arith.mulf %126, %130 : vector<8x128xf32>
    %133 = arith.addf %131, %132 : vector<8x128xf32>
    %134 = math.tanh %133 : vector<8x128xf32>
    %135 = arith.mulf %128, %134 : vector<8x128xf32>
    %c3_i32 = arith.constant 3 : i32
    %c8_i32_31 = arith.constant 8 : i32
    %136 = arith.muli %c3_i32, %c8_i32_31 : i32
    %137 = tpu.assume_multiple %136, 8 : i32
    %138 = arith.index_cast %137 : i32 to index
    %c0_32 = arith.constant 0 : index
    %139 = vector.load %arg9[%138, %c0_32] : memref<64x512xf32, #tpu.memory_space<vmem>>, vector<8x512xf32>
    %cst_33 = arith.constant dense<0.000000e+00> : vector<8x512xf32>
    %140 = tpu.matmul %116, %7, %cst_33 {dimension_numbers = #tpu.dot_dimension_numbers<[1], [0], [0], [1], [0, 0, 1, 1], [], []>} : vector<8x128xf32>, vector<128x512xf32>, vector<8x512xf32> -> vector<8x512xf32>
    %141 = arith.addf %139, %140 : vector<8x512xf32>
    %142 = vector.extract_strided_slice %141 {offsets = [0, 0], sizes = [8, 384], strides = [1, 1]} : vector<8x512xf32> to vector<8x384xf32>
    %143 = arith.negf %142 : vector<8x384xf32>
    %144 = math.exp %143 : vector<8x384xf32>
    %cst_34 = arith.constant 1.000000e+00 : f32
    %145 = vector.broadcast %cst_34 : f32 to vector<8x384xf32>
    %146 = arith.addf %145, %144 : vector<8x384xf32>
    %147 = arith.divf %145, %146 : vector<8x384xf32>
    %148 = vector.extract_strided_slice %147 {offsets = [0, 0], sizes = [8, 128], strides = [1, 1]} : vector<8x384xf32> to vector<8x128xf32>
    %149 = vector.extract_strided_slice %147 {offsets = [0, 128], sizes = [8, 128], strides = [1, 1]} : vector<8x384xf32> to vector<8x128xf32>
    %150 = vector.extract_strided_slice %147 {offsets = [0, 256], sizes = [8, 128], strides = [1, 1]} : vector<8x384xf32> to vector<8x128xf32>
    %151 = vector.extract_strided_slice %141 {offsets = [0, 384], sizes = [8, 128], strides = [1, 1]} : vector<8x512xf32> to vector<8x128xf32>
    %152 = math.tanh %151 : vector<8x128xf32>
    %153 = arith.mulf %149, %114 : vector<8x128xf32>
    %154 = arith.mulf %148, %152 : vector<8x128xf32>
    %155 = arith.addf %153, %154 : vector<8x128xf32>
    %156 = math.tanh %155 : vector<8x128xf32>
    %157 = arith.mulf %150, %156 : vector<8x128xf32>
    %158 = tpu.concatenate %157, %135 in 1 : vector<8x128xf32>, vector<8x128xf32> -> vector<8x256xf32>
    %cst_35 = arith.constant dense<0.000000e+00> : vector<8x512xf32>
    %159 = tpu.matmul %158, %8, %cst_35 {dimension_numbers = #tpu.dot_dimension_numbers<[1], [0], [0], [1], [0, 0, 1, 1], [], []>} : vector<8x256xf32>, vector<256x512xf32>, vector<8x512xf32> -> vector<8x512xf32>
    %160 = arith.addf %159, %11 : vector<8x512xf32>
    %161 = vector.extract_strided_slice %160 {offsets = [0, 0], sizes = [8, 384], strides = [1, 1]} : vector<8x512xf32> to vector<8x384xf32>
    %162 = arith.negf %161 : vector<8x384xf32>
    %163 = math.exp %162 : vector<8x384xf32>
    %cst_36 = arith.constant 1.000000e+00 : f32
    %164 = vector.broadcast %cst_36 : f32 to vector<8x384xf32>
    %165 = arith.addf %164, %163 : vector<8x384xf32>
    %166 = arith.divf %164, %165 : vector<8x384xf32>
    %167 = vector.extract_strided_slice %166 {offsets = [0, 0], sizes = [8, 128], strides = [1, 1]} : vector<8x384xf32> to vector<8x128xf32>
    %168 = vector.extract_strided_slice %166 {offsets = [0, 128], sizes = [8, 128], strides = [1, 1]} : vector<8x384xf32> to vector<8x128xf32>
    %169 = vector.extract_strided_slice %166 {offsets = [0, 256], sizes = [8, 128], strides = [1, 1]} : vector<8x384xf32> to vector<8x128xf32>
    %170 = vector.extract_strided_slice %160 {offsets = [0, 384], sizes = [8, 128], strides = [1, 1]} : vector<8x512xf32> to vector<8x128xf32>
    %171 = math.tanh %170 : vector<8x128xf32>
    %172 = arith.mulf %168, %133 : vector<8x128xf32>
    %173 = arith.mulf %167, %171 : vector<8x128xf32>
    %174 = arith.addf %172, %173 : vector<8x128xf32>
    %175 = math.tanh %174 : vector<8x128xf32>
    %176 = arith.mulf %169, %175 : vector<8x128xf32>
    %c4_i32 = arith.constant 4 : i32
    %c8_i32_37 = arith.constant 8 : i32
    %177 = arith.muli %c4_i32, %c8_i32_37 : i32
    %178 = tpu.assume_multiple %177, 8 : i32
    %179 = arith.index_cast %178 : i32 to index
    %c0_38 = arith.constant 0 : index
    %180 = vector.load %arg9[%179, %c0_38] : memref<64x512xf32, #tpu.memory_space<vmem>>, vector<8x512xf32>
    %cst_39 = arith.constant dense<0.000000e+00> : vector<8x512xf32>
    %181 = tpu.matmul %157, %7, %cst_39 {dimension_numbers = #tpu.dot_dimension_numbers<[1], [0], [0], [1], [0, 0, 1, 1], [], []>} : vector<8x128xf32>, vector<128x512xf32>, vector<8x512xf32> -> vector<8x512xf32>
    %182 = arith.addf %180, %181 : vector<8x512xf32>
    %183 = vector.extract_strided_slice %182 {offsets = [0, 0], sizes = [8, 384], strides = [1, 1]} : vector<8x512xf32> to vector<8x384xf32>
    %184 = arith.negf %183 : vector<8x384xf32>
    %185 = math.exp %184 : vector<8x384xf32>
    %cst_40 = arith.constant 1.000000e+00 : f32
    %186 = vector.broadcast %cst_40 : f32 to vector<8x384xf32>
    %187 = arith.addf %186, %185 : vector<8x384xf32>
    %188 = arith.divf %186, %187 : vector<8x384xf32>
    %189 = vector.extract_strided_slice %188 {offsets = [0, 0], sizes = [8, 128], strides = [1, 1]} : vector<8x384xf32> to vector<8x128xf32>
    %190 = vector.extract_strided_slice %188 {offsets = [0, 128], sizes = [8, 128], strides = [1, 1]} : vector<8x384xf32> to vector<8x128xf32>
    %191 = vector.extract_strided_slice %188 {offsets = [0, 256], sizes = [8, 128], strides = [1, 1]} : vector<8x384xf32> to vector<8x128xf32>
    %192 = vector.extract_strided_slice %182 {offsets = [0, 384], sizes = [8, 128], strides = [1, 1]} : vector<8x512xf32> to vector<8x128xf32>
    %193 = math.tanh %192 : vector<8x128xf32>
    %194 = arith.mulf %190, %155 : vector<8x128xf32>
    %195 = arith.mulf %189, %193 : vector<8x128xf32>
    %196 = arith.addf %194, %195 : vector<8x128xf32>
    %197 = math.tanh %196 : vector<8x128xf32>
    %198 = arith.mulf %191, %197 : vector<8x128xf32>
    %199 = tpu.concatenate %198, %176 in 1 : vector<8x128xf32>, vector<8x128xf32> -> vector<8x256xf32>
    %cst_41 = arith.constant dense<0.000000e+00> : vector<8x512xf32>
    %200 = tpu.matmul %199, %8, %cst_41 {dimension_numbers = #tpu.dot_dimension_numbers<[1], [0], [0], [1], [0, 0, 1, 1], [], []>} : vector<8x256xf32>, vector<256x512xf32>, vector<8x512xf32> -> vector<8x512xf32>
    %201 = arith.addf %200, %11 : vector<8x512xf32>
    %202 = vector.extract_strided_slice %201 {offsets = [0, 0], sizes = [8, 384], strides = [1, 1]} : vector<8x512xf32> to vector<8x384xf32>
    %203 = arith.negf %202 : vector<8x384xf32>
    %204 = math.exp %203 : vector<8x384xf32>
    %cst_42 = arith.constant 1.000000e+00 : f32
    %205 = vector.broadcast %cst_42 : f32 to vector<8x384xf32>
    %206 = arith.addf %205, %204 : vector<8x384xf32>
    %207 = arith.divf %205, %206 : vector<8x384xf32>
    %208 = vector.extract_strided_slice %207 {offsets = [0, 0], sizes = [8, 128], strides = [1, 1]} : vector<8x384xf32> to vector<8x128xf32>
    %209 = vector.extract_strided_slice %207 {offsets = [0, 128], sizes = [8, 128], strides = [1, 1]} : vector<8x384xf32> to vector<8x128xf32>
    %210 = vector.extract_strided_slice %207 {offsets = [0, 256], sizes = [8, 128], strides = [1, 1]} : vector<8x384xf32> to vector<8x128xf32>
    %211 = vector.extract_strided_slice %201 {offsets = [0, 384], sizes = [8, 128], strides = [1, 1]} : vector<8x512xf32> to vector<8x128xf32>
    %212 = math.tanh %211 : vector<8x128xf32>
    %213 = arith.mulf %209, %174 : vector<8x128xf32>
    %214 = arith.mulf %208, %212 : vector<8x128xf32>
    %215 = arith.addf %213, %214 : vector<8x128xf32>
    %216 = math.tanh %215 : vector<8x128xf32>
    %217 = arith.mulf %210, %216 : vector<8x128xf32>
    %c5_i32 = arith.constant 5 : i32
    %c8_i32_43 = arith.constant 8 : i32
    %218 = arith.muli %c5_i32, %c8_i32_43 : i32
    %219 = tpu.assume_multiple %218, 8 : i32
    %220 = arith.index_cast %219 : i32 to index
    %c0_44 = arith.constant 0 : index
    %221 = vector.load %arg9[%220, %c0_44] : memref<64x512xf32, #tpu.memory_space<vmem>>, vector<8x512xf32>
    %cst_45 = arith.constant dense<0.000000e+00> : vector<8x512xf32>
    %222 = tpu.matmul %198, %7, %cst_45 {dimension_numbers = #tpu.dot_dimension_numbers<[1], [0], [0], [1], [0, 0, 1, 1], [], []>} : vector<8x128xf32>, vector<128x512xf32>, vector<8x512xf32> -> vector<8x512xf32>
    %223 = arith.addf %221, %222 : vector<8x512xf32>
    %224 = vector.extract_strided_slice %223 {offsets = [0, 0], sizes = [8, 384], strides = [1, 1]} : vector<8x512xf32> to vector<8x384xf32>
    %225 = arith.negf %224 : vector<8x384xf32>
    %226 = math.exp %225 : vector<8x384xf32>
    %cst_46 = arith.constant 1.000000e+00 : f32
    %227 = vector.broadcast %cst_46 : f32 to vector<8x384xf32>
    %228 = arith.addf %227, %226 : vector<8x384xf32>
    %229 = arith.divf %227, %228 : vector<8x384xf32>
    %230 = vector.extract_strided_slice %229 {offsets = [0, 0], sizes = [8, 128], strides = [1, 1]} : vector<8x384xf32> to vector<8x128xf32>
    %231 = vector.extract_strided_slice %229 {offsets = [0, 128], sizes = [8, 128], strides = [1, 1]} : vector<8x384xf32> to vector<8x128xf32>
    %232 = vector.extract_strided_slice %229 {offsets = [0, 256], sizes = [8, 128], strides = [1, 1]} : vector<8x384xf32> to vector<8x128xf32>
    %233 = vector.extract_strided_slice %223 {offsets = [0, 384], sizes = [8, 128], strides = [1, 1]} : vector<8x512xf32> to vector<8x128xf32>
    %234 = math.tanh %233 : vector<8x128xf32>
    %235 = arith.mulf %231, %196 : vector<8x128xf32>
    %236 = arith.mulf %230, %234 : vector<8x128xf32>
    %237 = arith.addf %235, %236 : vector<8x128xf32>
    %238 = math.tanh %237 : vector<8x128xf32>
    %239 = arith.mulf %232, %238 : vector<8x128xf32>
    %240 = tpu.concatenate %239, %217 in 1 : vector<8x128xf32>, vector<8x128xf32> -> vector<8x256xf32>
    %cst_47 = arith.constant dense<0.000000e+00> : vector<8x512xf32>
    %241 = tpu.matmul %240, %8, %cst_47 {dimension_numbers = #tpu.dot_dimension_numbers<[1], [0], [0], [1], [0, 0, 1, 1], [], []>} : vector<8x256xf32>, vector<256x512xf32>, vector<8x512xf32> -> vector<8x512xf32>
    %242 = arith.addf %241, %11 : vector<8x512xf32>
    %243 = vector.extract_strided_slice %242 {offsets = [0, 0], sizes = [8, 384], strides = [1, 1]} : vector<8x512xf32> to vector<8x384xf32>
    %244 = arith.negf %243 : vector<8x384xf32>
    %245 = math.exp %244 : vector<8x384xf32>
    %cst_48 = arith.constant 1.000000e+00 : f32
    %246 = vector.broadcast %cst_48 : f32 to vector<8x384xf32>
    %247 = arith.addf %246, %245 : vector<8x384xf32>
    %248 = arith.divf %246, %247 : vector<8x384xf32>
    %249 = vector.extract_strided_slice %248 {offsets = [0, 0], sizes = [8, 128], strides = [1, 1]} : vector<8x384xf32> to vector<8x128xf32>
    %250 = vector.extract_strided_slice %248 {offsets = [0, 128], sizes = [8, 128], strides = [1, 1]} : vector<8x384xf32> to vector<8x128xf32>
    %251 = vector.extract_strided_slice %248 {offsets = [0, 256], sizes = [8, 128], strides = [1, 1]} : vector<8x384xf32> to vector<8x128xf32>
    %252 = vector.extract_strided_slice %242 {offsets = [0, 384], sizes = [8, 128], strides = [1, 1]} : vector<8x512xf32> to vector<8x128xf32>
    %253 = math.tanh %252 : vector<8x128xf32>
    %254 = arith.mulf %250, %215 : vector<8x128xf32>
    %255 = arith.mulf %249, %253 : vector<8x128xf32>
    %256 = arith.addf %254, %255 : vector<8x128xf32>
    %257 = math.tanh %256 : vector<8x128xf32>
    %258 = arith.mulf %251, %257 : vector<8x128xf32>
    %c6_i32 = arith.constant 6 : i32
    %c8_i32_49 = arith.constant 8 : i32
    %259 = arith.muli %c6_i32, %c8_i32_49 : i32
    %260 = tpu.assume_multiple %259, 8 : i32
    %261 = arith.index_cast %260 : i32 to index
    %c0_50 = arith.constant 0 : index
    %262 = vector.load %arg9[%261, %c0_50] : memref<64x512xf32, #tpu.memory_space<vmem>>, vector<8x512xf32>
    %cst_51 = arith.constant dense<0.000000e+00> : vector<8x512xf32>
    %263 = tpu.matmul %239, %7, %cst_51 {dimension_numbers = #tpu.dot_dimension_numbers<[1], [0], [0], [1], [0, 0, 1, 1], [], []>} : vector<8x128xf32>, vector<128x512xf32>, vector<8x512xf32> -> vector<8x512xf32>
    %264 = arith.addf %262, %263 : vector<8x512xf32>
    %265 = vector.extract_strided_slice %264 {offsets = [0, 0], sizes = [8, 384], strides = [1, 1]} : vector<8x512xf32> to vector<8x384xf32>
    %266 = arith.negf %265 : vector<8x384xf32>
    %267 = math.exp %266 : vector<8x384xf32>
    %cst_52 = arith.constant 1.000000e+00 : f32
    %268 = vector.broadcast %cst_52 : f32 to vector<8x384xf32>
    %269 = arith.addf %268, %267 : vector<8x384xf32>
    %270 = arith.divf %268, %269 : vector<8x384xf32>
    %271 = vector.extract_strided_slice %270 {offsets = [0, 0], sizes = [8, 128], strides = [1, 1]} : vector<8x384xf32> to vector<8x128xf32>
    %272 = vector.extract_strided_slice %270 {offsets = [0, 128], sizes = [8, 128], strides = [1, 1]} : vector<8x384xf32> to vector<8x128xf32>
    %273 = vector.extract_strided_slice %270 {offsets = [0, 256], sizes = [8, 128], strides = [1, 1]} : vector<8x384xf32> to vector<8x128xf32>
    %274 = vector.extract_strided_slice %264 {offsets = [0, 384], sizes = [8, 128], strides = [1, 1]} : vector<8x512xf32> to vector<8x128xf32>
    %275 = math.tanh %274 : vector<8x128xf32>
    %276 = arith.mulf %272, %237 : vector<8x128xf32>
    %277 = arith.mulf %271, %275 : vector<8x128xf32>
    %278 = arith.addf %276, %277 : vector<8x128xf32>
    %279 = math.tanh %278 : vector<8x128xf32>
    %280 = arith.mulf %273, %279 : vector<8x128xf32>
    %281 = tpu.concatenate %280, %258 in 1 : vector<8x128xf32>, vector<8x128xf32> -> vector<8x256xf32>
    %cst_53 = arith.constant dense<0.000000e+00> : vector<8x512xf32>
    %282 = tpu.matmul %281, %8, %cst_53 {dimension_numbers = #tpu.dot_dimension_numbers<[1], [0], [0], [1], [0, 0, 1, 1], [], []>} : vector<8x256xf32>, vector<256x512xf32>, vector<8x512xf32> -> vector<8x512xf32>
    %283 = arith.addf %282, %11 : vector<8x512xf32>
    %284 = vector.extract_strided_slice %283 {offsets = [0, 0], sizes = [8, 384], strides = [1, 1]} : vector<8x512xf32> to vector<8x384xf32>
    %285 = arith.negf %284 : vector<8x384xf32>
    %286 = math.exp %285 : vector<8x384xf32>
    %cst_54 = arith.constant 1.000000e+00 : f32
    %287 = vector.broadcast %cst_54 : f32 to vector<8x384xf32>
    %288 = arith.addf %287, %286 : vector<8x384xf32>
    %289 = arith.divf %287, %288 : vector<8x384xf32>
    %290 = vector.extract_strided_slice %289 {offsets = [0, 0], sizes = [8, 128], strides = [1, 1]} : vector<8x384xf32> to vector<8x128xf32>
    %291 = vector.extract_strided_slice %289 {offsets = [0, 128], sizes = [8, 128], strides = [1, 1]} : vector<8x384xf32> to vector<8x128xf32>
    %292 = vector.extract_strided_slice %289 {offsets = [0, 256], sizes = [8, 128], strides = [1, 1]} : vector<8x384xf32> to vector<8x128xf32>
    %293 = vector.extract_strided_slice %283 {offsets = [0, 384], sizes = [8, 128], strides = [1, 1]} : vector<8x512xf32> to vector<8x128xf32>
    %294 = math.tanh %293 : vector<8x128xf32>
    %295 = arith.mulf %291, %256 : vector<8x128xf32>
    %296 = arith.mulf %290, %294 : vector<8x128xf32>
    %297 = arith.addf %295, %296 : vector<8x128xf32>
    %298 = math.tanh %297 : vector<8x128xf32>
    %299 = arith.mulf %292, %298 : vector<8x128xf32>
    %c7_i32 = arith.constant 7 : i32
    %c8_i32_55 = arith.constant 8 : i32
    %300 = arith.muli %c7_i32, %c8_i32_55 : i32
    %301 = tpu.assume_multiple %300, 8 : i32
    %302 = arith.index_cast %301 : i32 to index
    %c0_56 = arith.constant 0 : index
    %303 = vector.load %arg9[%302, %c0_56] : memref<64x512xf32, #tpu.memory_space<vmem>>, vector<8x512xf32>
    %cst_57 = arith.constant dense<0.000000e+00> : vector<8x512xf32>
    %304 = tpu.matmul %280, %7, %cst_57 {dimension_numbers = #tpu.dot_dimension_numbers<[1], [0], [0], [1], [0, 0, 1, 1], [], []>} : vector<8x128xf32>, vector<128x512xf32>, vector<8x512xf32> -> vector<8x512xf32>
    %305 = arith.addf %303, %304 : vector<8x512xf32>
    %306 = vector.extract_strided_slice %305 {offsets = [0, 0], sizes = [8, 384], strides = [1, 1]} : vector<8x512xf32> to vector<8x384xf32>
    %307 = arith.negf %306 : vector<8x384xf32>
    %308 = math.exp %307 : vector<8x384xf32>
    %cst_58 = arith.constant 1.000000e+00 : f32
    %309 = vector.broadcast %cst_58 : f32 to vector<8x384xf32>
    %310 = arith.addf %309, %308 : vector<8x384xf32>
    %311 = arith.divf %309, %310 : vector<8x384xf32>
    %312 = vector.extract_strided_slice %311 {offsets = [0, 0], sizes = [8, 128], strides = [1, 1]} : vector<8x384xf32> to vector<8x128xf32>
    %313 = vector.extract_strided_slice %311 {offsets = [0, 128], sizes = [8, 128], strides = [1, 1]} : vector<8x384xf32> to vector<8x128xf32>
    %314 = vector.extract_strided_slice %311 {offsets = [0, 256], sizes = [8, 128], strides = [1, 1]} : vector<8x384xf32> to vector<8x128xf32>
    %315 = vector.extract_strided_slice %305 {offsets = [0, 384], sizes = [8, 128], strides = [1, 1]} : vector<8x512xf32> to vector<8x128xf32>
    %316 = math.tanh %315 : vector<8x128xf32>
    %317 = arith.mulf %313, %278 : vector<8x128xf32>
    %318 = arith.mulf %312, %316 : vector<8x128xf32>
    %319 = arith.addf %317, %318 : vector<8x128xf32>
    %320 = math.tanh %319 : vector<8x128xf32>
    %321 = arith.mulf %314, %320 : vector<8x128xf32>
    %322 = tpu.concatenate %321, %299 in 1 : vector<8x128xf32>, vector<8x128xf32> -> vector<8x256xf32>
    %cst_59 = arith.constant dense<0.000000e+00> : vector<8x512xf32>
    %323 = tpu.matmul %322, %8, %cst_59 {dimension_numbers = #tpu.dot_dimension_numbers<[1], [0], [0], [1], [0, 0, 1, 1], [], []>} : vector<8x256xf32>, vector<256x512xf32>, vector<8x512xf32> -> vector<8x512xf32>
    %324 = arith.addf %323, %11 : vector<8x512xf32>
    %325 = vector.extract_strided_slice %324 {offsets = [0, 0], sizes = [8, 384], strides = [1, 1]} : vector<8x512xf32> to vector<8x384xf32>
    %326 = arith.negf %325 : vector<8x384xf32>
    %327 = math.exp %326 : vector<8x384xf32>
    %cst_60 = arith.constant 1.000000e+00 : f32
    %328 = vector.broadcast %cst_60 : f32 to vector<8x384xf32>
    %329 = arith.addf %328, %327 : vector<8x384xf32>
    %330 = arith.divf %328, %329 : vector<8x384xf32>
    %331 = vector.extract_strided_slice %330 {offsets = [0, 0], sizes = [8, 128], strides = [1, 1]} : vector<8x384xf32> to vector<8x128xf32>
    %332 = vector.extract_strided_slice %330 {offsets = [0, 128], sizes = [8, 128], strides = [1, 1]} : vector<8x384xf32> to vector<8x128xf32>
    %333 = vector.extract_strided_slice %330 {offsets = [0, 256], sizes = [8, 128], strides = [1, 1]} : vector<8x384xf32> to vector<8x128xf32>
    %334 = vector.extract_strided_slice %324 {offsets = [0, 384], sizes = [8, 128], strides = [1, 1]} : vector<8x512xf32> to vector<8x128xf32>
    %335 = math.tanh %334 : vector<8x128xf32>
    %336 = arith.mulf %332, %297 : vector<8x128xf32>
    %337 = arith.mulf %331, %335 : vector<8x128xf32>
    %338 = arith.addf %336, %337 : vector<8x128xf32>
    %339 = math.tanh %338 : vector<8x128xf32>
    %340 = arith.mulf %333, %339 : vector<8x128xf32>
    %c8_i32_61 = arith.constant 8 : i32
    %c0_62 = arith.constant 0 : index
    %c0_63 = arith.constant 0 : index
    %341 = vector.load %arg6[%c0_62, %c0_63] : memref<1x128xf32, #tpu.memory_space<vmem>>, vector<1x128xf32>
    %342 = vector.broadcast %341 : vector<1x128xf32> to vector<8x128xf32>
    %343 = arith.mulf %340, %342 : vector<8x128xf32>
    %cst_64 = arith.constant dense<0.000000e+00> : vector<8xf32>
    %344 = vector.multi_reduction <add>, %343, %cst_64 [1] : vector<8x128xf32> to vector<8xf32>
    %345 = vector.shape_cast %344 : vector<8xf32> to vector<8x1xf32>
    %c0_65 = arith.constant 0 : index
    %346 = memref.load %arg7[%c0_65] : memref<1xf32, #tpu.memory_space<smem>>
    %347 = vector.broadcast %346 : f32 to vector<8x1xf32>
    %348 = arith.addf %345, %347 : vector<8x1xf32>
    %349 = vector.shape_cast %348 : vector<8x1xf32> to vector<8x1xf32>
    %350 = vector.broadcast %349 : vector<8x1xf32> to vector<8x128xf32>
    %c0_66 = arith.constant 0 : index
    %c0_67 = arith.constant 0 : index
    %351 = vector.load %arg8[%c0_66, %c0_67] : memref<8x128xf32, #tpu.memory_space<vmem>>, vector<8x128xf32>
    tpu.vector_store %arg8[%c0_66, %c0_67], %350 {strides = array<i32>} : memref<8x128xf32, #tpu.memory_space<vmem>>, vector<8x128xf32>,
    return
  }
}

</mosaic_0001>

<llo_original>
// kernel: tpu_custom_call.1
$region0: #{tpu_custom_call.1}
  #allocation0 [shape = 'u32[]', space=smem, size = 0x4, offset = 0x4, fixed_abs, tag = 'smem constant byte address 0x4 - core index']
  #allocation1 [shape = 'u32[72,128]{1,0:T(1,128)}', space=vmem, size = 0x9000, scoped, tag = 'internal scratch']
  #allocation2 [shape = 'f32[64,512]{1,0:T(8,128)}', space=vmem, size = 0x20000, scoped, tag = 'scratch operand']
  #allocation3 [shape = 'f32[1]{0:T(128)S(6)}', space=smem, size = 0x200, scoped, tag = 'scoped memory for tpu_custom_call.1']
  %s0 = inlined_call_operand.hbm [shape: f32[64,128], index: 0, kind: input, shape index: {}]
  %s1 = inlined_call_operand.hbm [shape: f32[128,512], index: 1, kind: input, shape index: {}]
  %s2 = inlined_call_operand.hbm [shape: f32[128,512], index: 2, kind: input, shape index: {}]
  %s3 = inlined_call_operand.vmem [shape: f32[1,512], index: 3, kind: input, shape index: {}]
  %s4 = inlined_call_operand.hbm [shape: f32[256,512], index: 4, kind: input, shape index: {}]
  %s5 = inlined_call_operand.hbm [shape: f32[1,512], index: 5, kind: input, shape index: {}]
  %s6 = inlined_call_operand.vmem [shape: f32[1,128], index: 6, kind: input, shape index: {}]
  %s7 = inlined_call_operand.<no memory space> [shape: f32[1], index: 7, kind: input, shape index: {}]
  %s8 = inlined_call_operand.hbm [shape: f32[8,128], index: 8, kind: output, shape index: {}]
  %s9 = sld [smem:[#allocation0]]
  $region62: #{tpu_custom_call.1} parent=0
    _
  %s11 = ssub.s32 1, %s9
  %s12 = scalar_select 0, %s11, %s9
  %13 = sst [smem:[#allocation3]] %s7
  $region1: #{tpu_custom_call.1} parent=0
    #allocation4 [shape = 'u8[32768]{0}', space=vmem, size = 0x8000, scoped, tag = 'input window, operand 0, single buffered']
    #allocation5 [shape = 's32[1]{0}', space=sflag, size = 0x4, scoped, tag = 'scoped memory for tpu_custom_call.1']
    #allocation6 [shape = 's32[1]{0}', space=sflag, size = 0x4, scoped, tag = 'scoped memory for tpu_custom_call.1']
    #allocation7 [shape = 'u8[262144]{0}', space=vmem, size = 0x40000, scoped, tag = 'input window, operand 1, single buffered']
    #allocation8 [shape = 's32[1]{0}', space=sflag, size = 0x4, scoped, tag = 'scoped memory for tpu_custom_call.1']
    #allocation9 [shape = 'u8[262144]{0}', space=vmem, size = 0x40000, scoped, tag = 'input window, operand 2, single buffered']
    #allocation10 [shape = 'u8[524288]{0}', space=vmem, size = 0x80000, scoped, tag = 'input window, operand 4, single buffered']
    #allocation11 [shape = 's32[1]{0}', space=sflag, size = 0x4, scoped, tag = 'scoped memory for tpu_custom_call.1']
    #allocation12 [shape = 'u8[2048]{0}', space=vmem, size = 0x800, scoped, tag = 'input window, operand 5, single buffered']
    #allocation13 [shape = 'u8[4096]{0}', space=vmem, size = 0x1000, scoped, tag = 'output window, operand 0, single buffered']
    %14 = vsyncpa [#allocation5], 0
    %15 = vsyncpa [#allocation8], 0
    %16 = vsyncpa [#allocation11], 0
    %17 = vsyncpa [#allocation6], 0
    // Predicated region
    $region2: #{tpu_custom_call.1} parent=1 // pred_check
      _
    $region3: #{tpu_custom_call.1} parent=1 // pred_check_branch
      %19 = sbr.rel (0) target = $region5
    $region4: #{tpu_custom_call.1} parent=1 // pred_region
      %21 = vsyncadd [#allocation5], 0
      %s22 = sshll.u32 %s0, 4
      %s23 = int_to_ptr.hbm [resolvable:$true] %s22
      %s24 = sshll.u32 [#allocation4], 4
      %s25 = int_to_ptr.vmem [resolvable:$true] %s24
      %30 = dma.hbm_to_vmem [thread:$0]  %s23, 1024, %s25, [#allocation5], 128, 128, 8
    $region5: #{tpu_custom_call.1} parent=1 // pred_fallthru
      _
    // Predicated region
    $region6: #{tpu_custom_call.1} parent=1 // pred_check
      _
    $region7: #{tpu_custom_call.1} parent=1 // pred_check_branch
      %32 = sbr.rel (0) target = $region9
    $region8: #{tpu_custom_call.1} parent=1 // pred_region
      %34 = vsyncadd [#allocation8], 0
      %s35 = sshll.u32 %s1, 4
      %s36 = int_to_ptr.hbm [resolvable:$true] %s35
      %s37 = sshll.u32 [#allocation7], 4
      %s38 = int_to_ptr.vmem [resolvable:$true] %s37
      %43 = dma.hbm_to_vmem [thread:$0]  %s36, 8192, %s38, [#allocation8], 512, 512, 32
    $region9: #{tpu_custom_call.1} parent=1 // pred_fallthru
      _
    // Predicated region
    $region10: #{tpu_custom_call.1} parent=1 // pred_check
      _
    $region11: #{tpu_custom_call.1} parent=1 // pred_check_branch
      %45 = sbr.rel (0) target = $region13
    $region12: #{tpu_custom_call.1} parent=1 // pred_region
      %47 = vsyncadd [#allocation8], 0
      %s48 = sshll.u32 %s2, 4
      %s49 = int_to_ptr.hbm [resolvable:$true] %s48
      %s50 = sshll.u32 [#allocation9], 4
      %s51 = int_to_ptr.vmem [resolvable:$true] %s50
      %56 = dma.hbm_to_vmem [thread:$0]  %s49, 8192, %s51, [#allocation8], 512, 512, 32
    $region13: #{tpu_custom_call.1} parent=1 // pred_fallthru
      _
    // Predicated region
    $region14: #{tpu_custom_call.1} parent=1 // pred_check
      _
    $region15: #{tpu_custom_call.1} parent=1 // pred_check_branch
      %58 = sbr.rel (0) target = $region17
    $region16: #{tpu_custom_call.1} parent=1 // pred_region
      _
    $region17: #{tpu_custom_call.1} parent=1 // pred_fallthru
      _
    // Predicated region
    $region18: #{tpu_custom_call.1} parent=1 // pred_check
      _
    $region19: #{tpu_custom_call.1} parent=1 // pred_check_branch
      %60 = sbr.rel (0) target = $region21
    $region20: #{tpu_custom_call.1} parent=1 // pred_region
      %62 = vsyncadd [#allocation11], 0
      %s63 = sshll.u32 %s4, 4
      %s64 = int_to_ptr.hbm [resolvable:$true] %s63
      %s65 = sshll.u32 [#allocation10], 4
      %s66 = int_to_ptr.vmem [resolvable:$true] %s65
      %71 = dma.hbm_to_vmem [thread:$0]  %s64, 16384, %s66, [#allocation11], 512, 512, 32
    $region21: #{tpu_custom_call.1} parent=1 // pred_fallthru
      _
    // Predicated region
    $region22: #{tpu_custom_call.1} parent=1 // pred_check
      _
    $region23: #{tpu_custom_call.1} parent=1 // pred_check_branch
      %73 = sbr.rel (0) target = $region25
    $region24: #{tpu_custom_call.1} parent=1 // pred_region
      %75 = vsyncadd [#allocation11], 0
      %s77 = sshll.u32 %s5, 4
      %s78 = int_to_ptr.hbm [resolvable:$true] %s77
      %s79 = sshll.u32 [#allocation12], 4
      %s80 = int_to_ptr.vmem [resolvable:$true] %s79
      %82 = dma.hbm_to_vmem [thread:$0]  %s78, 64, %s80, [#allocation11]
    $region25: #{tpu_custom_call.1} parent=1 // pred_fallthru
      _
    // Predicated region
    $region26: #{tpu_custom_call.1} parent=1 // pred_check
      _
    $region27: #{tpu_custom_call.1} parent=1 // pred_check_branch
      %84 = sbr.rel (0) target = $region29
    $region28: #{tpu_custom_call.1} parent=1 // pred_region
      _
    $region29: #{tpu_custom_call.1} parent=1 // pred_fallthru
      _
    // Predicated region
    $region30: #{tpu_custom_call.1} parent=1 // pred_check
      _
    $region31: #{tpu_custom_call.1} parent=1 // pred_check_branch
      %86 = sbr.rel (0) target = $region33
    $region32: #{tpu_custom_call.1} parent=1 // pred_region
      _
    $region33: #{tpu_custom_call.1} parent=1 // pred_fallthru
      _
    // Predicated region
    $region34: #{tpu_custom_call.1} parent=1 // pred_check
      _
    $region35: #{tpu_custom_call.1} parent=1 // pred_check_branch
      %88 = sbr.rel (0) target = $region37
    $region36: #{tpu_custom_call.1} parent=1 // pred_region
      %90 = dma.done [#allocation5], 1024
    $region37: #{tpu_custom_call.1} parent=1 // pred_fallthru
      _
    // Predicated region
    $region38: #{tpu_custom_call.1} parent=1 // pred_check
      _
    $region39: #{tpu_custom_call.1} parent=1 // pred_check_branch
      %92 = sbr.rel (0) target = $region41
    $region40: #{tpu_custom_call.1} parent=1 // pred_region
      %94 = dma.done [#allocation8], 8192
    $region41: #{tpu_custom_call.1} parent=1 // pred_fallthru
      _
    // Predicated region
    $region42: #{tpu_custom_call.1} parent=1 // pred_check
      _
    $region43: #{tpu_custom_call.1} parent=1 // pred_check_branch
      %96 = sbr.rel (0) target = $region45
    $region44: #{tpu_custom_call.1} parent=1 // pred_region
      %98 = dma.done [#allocation8], 8192
    $region45: #{tpu_custom_call.1} parent=1 // pred_fallthru
      _
    // Predicated region
    $region46: #{tpu_custom_call.1} parent=1 // pred_check
      _
    $region47: #{tpu_custom_call.1} parent=1 // pred_check_branch
      %100 = sbr.rel (0) target = $region49
    $region48: #{tpu_custom_call.1} parent=1 // pred_region
      %102 = dma.done [#allocation11], 16384
    $region49: #{tpu_custom_call.1} parent=1 // pred_fallthru
      _
    // Predicated region
    $region50: #{tpu_custom_call.1} parent=1 // pred_check
      _
    $region51: #{tpu_custom_call.1} parent=1 // pred_check_branch
      %104 = sbr.rel (0) target = $region53
    $region52: #{tpu_custom_call.1} parent=1 // pred_region
      %106 = dma.done [#allocation11], 64
    $region53: #{tpu_custom_call.1} parent=1 // pred_fallthru
      _
    %v107 = vld [vmem:[#allocation4] sm:$0xff]
    %v108 = vld [vmem:[#allocation4 + $0x8] sm:$0xff]
    %v109 = vld [vmem:[#allocation4 + $0x10] sm:$0xff]
    %v110 = vld [vmem:[#allocation4 + $0x18] sm:$0xff]
    %v111 = vld [vmem:[#allocation4 + $0x20] sm:$0xff]
    %v112 = vld [vmem:[#allocation4 + $0x28] sm:$0xff]
    %v113 = vld [vmem:[#allocation4 + $0x30] sm:$0xff]
    %v114 = vld [vmem:[#allocation4 + $0x38] sm:$0xff]
    %v115 = vld [vmem:[#allocation7] sm:$0xff]
    %v116 = vld [vmem:[#allocation7 + $0x8] sm:$0xff]
    %v117 = vld [vmem:[#allocation7 + $0x10] sm:$0xff]
    %v118 = vld [vmem:[#allocation7 + $0x18] sm:$0xff]
    %v119 = vld [vmem:[#allocation7 + $0x20] sm:$0xff]
    %v120 = vld [vmem:[#allocation7 + $0x28] sm:$0xff]
    %v121 = vld [vmem:[#allocation7 + $0x30] sm:$0xff]
    %v122 = vld [vmem:[#allocation7 + $0x38] sm:$0xff]
    %v123 = vld [vmem:[#allocation7 + $0x40] sm:$0xff]
    %v124 = vld [vmem:[#allocation7 + $0x48] sm:$0xff]
    %v125 = vld [vmem:[#allocation7 + $0x50] sm:$0xff]
    %v126 = vld [vmem:[#allocation7 + $0x58] sm:$0xff]
    %v127 = vld [vmem:[#allocation7 + $0x60] sm:$0xff]
    %v128 = vld [vmem:[#allocation7 + $0x68] sm:$0xff]
    %v129 = vld [vmem:[#allocation7 + $0x70] sm:$0xff]
    %v130 = vld [vmem:[#allocation7 + $0x78] sm:$0xff]
    %v131 = vld [vmem:[#allocation7 + $0x80] sm:$0xff]
    %v132 = vld [vmem:[#allocation7 + $0x88] sm:$0xff]
    %v133 = vld [vmem:[#allocation7 + $0x90] sm:$0xff]
    %v134 = vld [vmem:[#allocation7 + $0x98] sm:$0xff]
    %v135 = vld [vmem:[#allocation7 + $0xa0] sm:$0xff]
    %v136 = vld [vmem:[#allocation7 + $0xa8] sm:$0xff]
    %v137 = vld [vmem:[#allocation7 + $0xb0] sm:$0xff]
    %v138 = vld [vmem:[#allocation7 + $0xb8] sm:$0xff]
    %v139 = vld [vmem:[#allocation7 + $0xc0] sm:$0xff]
    %v140 = vld [vmem:[#allocation7 + $0xc8] sm:$0xff]
    %v141 = vld [vmem:[#allocation7 + $0xd0] sm:$0xff]
    %v142 = vld [vmem:[#allocation7 + $0xd8] sm:$0xff]
    %v143 = vld [vmem:[#allocation7 + $0xe0] sm:$0xff]
    %v144 = vld [vmem:[#allocation7 + $0xe8] sm:$0xff]
    %v145 = vld [vmem:[#allocation7 + $0xf0] sm:$0xff]
    %v146 = vld [vmem:[#allocation7 + $0xf8] sm:$0xff]
    %v147 = vld [vmem:[#allocation7 + $0x100] sm:$0xff]
    %v148 = vld [vmem:[#allocation7 + $0x108] sm:$0xff]
    %v149 = vld [vmem:[#allocation7 + $0x110] sm:$0xff]
    %v150 = vld [vmem:[#allocation7 + $0x118] sm:$0xff]
    %v151 = vld [vmem:[#allocation7 + $0x120] sm:$0xff]
    %v152 = vld [vmem:[#allocation7 + $0x128] sm:$0xff]
    %v153 = vld [vmem:[#allocation7 + $0x130] sm:$0xff]
    %v154 = vld [vmem:[#allocation7 + $0x138] sm:$0xff]
    %v155 = vld [vmem:[#allocation7 + $0x140] sm:$0xff]
    %v156 = vld [vmem:[#allocation7 + $0x148] sm:$0xff]
    %v157 = vld [vmem:[#allocation7 + $0x150] sm:$0xff]
    %v158 = vld [vmem:[#allocation7 + $0x158] sm:$0xff]
    %v159 = vld [vmem:[#allocation7 + $0x160] sm:$0xff]
    %v160 = vld [vmem:[#allocation7 + $0x168] sm:$0xff]
    %v161 = vld [vmem:[#allocation7 + $0x170] sm:$0xff]
    %v162 = vld [vmem:[#allocation7 + $0x178] sm:$0xff]
    %v163 = vld [vmem:[#allocation7 + $0x180] sm:$0xff]
    %v164 = vld [vmem:[#allocation7 + $0x188] sm:$0xff]
    %v165 = vld [vmem:[#allocation7 + $0x190] sm:$0xff]
    %v166 = vld [vmem:[#allocation7 + $0x198] sm:$0xff]
    %v167 = vld [vmem:[#allocation7 + $0x1a0] sm:$0xff]
    %v168 = vld [vmem:[#allocation7 + $0x1a8] sm:$0xff]
    %v169 = vld [vmem:[#allocation7 + $0x1b0] sm:$0xff]
    %v170 = vld [vmem:[#allocation7 + $0x1b8] sm:$0xff]
    %v171 = vld [vmem:[#allocation7 + $0x1c0] sm:$0xff]
    %v172 = vld [vmem:[#allocation7 + $0x1c8] sm:$0xff]
    %v173 = vld [vmem:[#allocation7 + $0x1d0] sm:$0xff]
    %v174 = vld [vmem:[#allocation7 + $0x1d8] sm:$0xff]
    %v175 = vld [vmem:[#allocation7 + $0x1e0] sm:$0xff]
    %v176 = vld [vmem:[#allocation7 + $0x1e8] sm:$0xff]
    %v177 = vld [vmem:[#allocation7 + $0x1f0] sm:$0xff]
    %v178 = vld [vmem:[#allocation7 + $0x1f8] sm:$0xff]
    %v179 = vld [vmem:[%s3] sm:$0xf]
    %v181 = vperm.slane %v179, 0
    %v182 = vperm.slane %v179, 1
    %v183 = vperm.slane %v179, 2
    %v184 = vperm.slane %v179, 3
    %189 = vmatpush.msra.mxu0 %v175
    %190 = vmatpush.msra.mxu0 %v171
    %191 = vmatpush.msra.mxu0 %v167
    %192 = vmatpush.msra.mxu0 %v163
    %193 = vmatpush.msra.mxu0 %v159
    %194 = vmatpush.msra.mxu0 %v155
    %195 = vmatpush.msra.mxu0 %v151
    %196 = vmatpush.msra.mxu0 %v147
    %197 = vmatpush.msra.mxu0 %v143
    %198 = vmatpush.msra.mxu0 %v139
    %199 = vmatpush.msra.mxu0 %v135
    %200 = vmatpush.msra.mxu0 %v131
    %201 = vmatpush.msra.mxu0 %v127
    %202 = vmatpush.msra.mxu0 %v123
    %203 = vmatpush.msra.mxu0 %v119
    %204 = vmatpush.msra.mxu0 %v115
    %205 = vmatmul.f32.gmra.mxu0 %v107
    %v206 = vpop.f32.mrf.mxu0
    %v207 = vadd.f32 %v181, %v206
    %208 = vmatmul.f32.gmra.mxu0 %v108
    %v209 = vpop.f32.mrf.mxu0
    %v210 = vadd.f32 %v181, %v209
    %211 = vmatmul.f32.gmra.mxu0 %v109
    %v212 = vpop.f32.mrf.mxu0
    %v213 = vadd.f32 %v181, %v212
    %214 = vmatmul.f32.gmra.mxu0 %v110
    %v215 = vpop.f32.mrf.mxu0
    %v216 = vadd.f32 %v181, %v215
    %217 = vmatmul.f32.gmra.mxu0 %v111
    %v218 = vpop.f32.mrf.mxu0
    %v219 = vadd.f32 %v181, %v218
    %220 = vmatmul.f32.gmra.mxu0 %v112
    %v221 = vpop.f32.mrf.mxu0
    %v222 = vadd.f32 %v181, %v221
    %223 = vmatmul.f32.gmra.mxu0 %v113
    %v224 = vpop.f32.mrf.mxu0
    %v225 = vadd.f32 %v181, %v224
    %226 = vmatmul.f32.gmra.mxu0 %v114
    %v227 = vpop.f32.mrf.mxu0
    %v228 = vadd.f32 %v181, %v227
    %229 = vdwg.mxu0
    %230 = vmatpush.msra.mxu0 %v176
    %231 = vmatpush.msra.mxu0 %v172
    %232 = vmatpush.msra.mxu0 %v168
    %233 = vmatpush.msra.mxu0 %v164
    %234 = vmatpush.msra.mxu0 %v160
    %235 = vmatpush.msra.mxu0 %v156
    %236 = vmatpush.msra.mxu0 %v152
    %237 = vmatpush.msra.mxu0 %v148
    %238 = vmatpush.msra.mxu0 %v144
    %239 = vmatpush.msra.mxu0 %v140
    %240 = vmatpush.msra.mxu0 %v136
    %241 = vmatpush.msra.mxu0 %v132
    %242 = vmatpush.msra.mxu0 %v128
    %243 = vmatpush.msra.mxu0 %v124
    %244 = vmatpush.msra.mxu0 %v120
    %245 = vmatpush.msra.mxu0 %v116
    %246 = vmatmul.f32.gmra.mxu0 %v107
    %v247 = vpop.f32.mrf.mxu0
    %v248 = vadd.f32 %v182, %v247
    %249 = vmatmul.f32.gmra.mxu0 %v108
    %v250 = vpop.f32.mrf.mxu0
    %v251 = vadd.f32 %v182, %v250
    %252 = vmatmul.f32.gmra.mxu0 %v109
    %v253 = vpop.f32.mrf.mxu0
    %v254 = vadd.f32 %v182, %v253
    %255 = vmatmul.f32.gmra.mxu0 %v110
    %v256 = vpop.f32.mrf.mxu0
    %v257 = vadd.f32 %v182, %v256
    %258 = vmatmul.f32.gmra.mxu0 %v111
    %v259 = vpop.f32.mrf.mxu0
    %v260 = vadd.f32 %v182, %v259
    %261 = vmatmul.f32.gmra.mxu0 %v112
    %v262 = vpop.f32.mrf.mxu0
    %v263 = vadd.f32 %v182, %v262
    %264 = vmatmul.f32.gmra.mxu0 %v113
    %v265 = vpop.f32.mrf.mxu0
    %v266 = vadd.f32 %v182, %v265
    %267 = vmatmul.f32.gmra.mxu0 %v114
    %v268 = vpop.f32.mrf.mxu0
    %v269 = vadd.f32 %v182, %v268
    %270 = vdwg.mxu0
    %271 = vmatpush.msra.mxu0 %v177
    %272 = vmatpush.msra.mxu0 %v173
    %273 = vmatpush.msra.mxu0 %v169
    %274 = vmatpush.msra.mxu0 %v165
    %275 = vmatpush.msra.mxu0 %v161
    %276 = vmatpush.msra.mxu0 %v157
    %277 = vmatpush.msra.mxu0 %v153
    %278 = vmatpush.msra.mxu0 %v149
    %279 = vmatpush.msra.mxu0 %v145
    %280 = vmatpush.msra.mxu0 %v141
    %281 = vmatpush.msra.mxu0 %v137
    %282 = vmatpush.msra.mxu0 %v133
    %283 = vmatpush.msra.mxu0 %v129
    %284 = vmatpush.msra.mxu0 %v125
    %285 = vmatpush.msra.mxu0 %v121
    %286 = vmatpush.msra.mxu0 %v117
    %287 = vmatmul.f32.gmra.mxu0 %v107
    %v288 = vpop.f32.mrf.mxu0
    %v289 = vadd.f32 %v183, %v288
    %290 = vmatmul.f32.gmra.mxu0 %v108
    %v291 = vpop.f32.mrf.mxu0
    %v292 = vadd.f32 %v183, %v291
    %293 = vmatmul.f32.gmra.mxu0 %v109
    %v294 = vpop.f32.mrf.mxu0
    %v295 = vadd.f32 %v183, %v294
    %296 = vmatmul.f32.gmra.mxu0 %v110
    %v297 = vpop.f32.mrf.mxu0
    %v298 = vadd.f32 %v183, %v297
    %299 = vmatmul.f32.gmra.mxu0 %v111
    %v300 = vpop.f32.mrf.mxu0
    %v301 = vadd.f32 %v183, %v300
    %302 = vmatmul.f32.gmra.mxu0 %v112
    %v303 = vpop.f32.mrf.mxu0
    %v304 = vadd.f32 %v183, %v303
    %305 = vmatmul.f32.gmra.mxu0 %v113
    %v306 = vpop.f32.mrf.mxu0
    %v307 = vadd.f32 %v183, %v306
    %308 = vmatmul.f32.gmra.mxu0 %v114
    %v309 = vpop.f32.mrf.mxu0
    %v310 = vadd.f32 %v183, %v309
    %311 = vdwg.mxu0
    %312 = vmatpush.msra.mxu0 %v178
    %313 = vmatpush.msra.mxu0 %v174
    %314 = vmatpush.msra.mxu0 %v170
    %315 = vmatpush.msra.mxu0 %v166
    %316 = vmatpush.msra.mxu0 %v162
    %317 = vmatpush.msra.mxu0 %v158
    %318 = vmatpush.msra.mxu0 %v154
    %319 = vmatpush.msra.mxu0 %v150
    %320 = vmatpush.msra.mxu0 %v146
    %321 = vmatpush.msra.mxu0 %v142
    %322 = vmatpush.msra.mxu0 %v138
    %323 = vmatpush.msra.mxu0 %v134
    %324 = vmatpush.msra.mxu0 %v130
    %325 = vmatpush.msra.mxu0 %v126
    %326 = vmatpush.msra.mxu0 %v122
    %327 = vmatpush.msra.mxu0 %v118
    %328 = vmatmul.f32.gmra.mxu0 %v107
    %v329 = vpop.f32.mrf.mxu0
    %v330 = vadd.f32 %v184, %v329
    %331 = vmatmul.f32.gmra.mxu0 %v108
    %v332 = vpop.f32.mrf.mxu0
    %v333 = vadd.f32 %v184, %v332
    %334 = vmatmul.f32.gmra.mxu0 %v109
    %v335 = vpop.f32.mrf.mxu0
    %v336 = vadd.f32 %v184, %v335
    %337 = vmatmul.f32.gmra.mxu0 %v110
    %v338 = vpop.f32.mrf.mxu0
    %v339 = vadd.f32 %v184, %v338
    %340 = vmatmul.f32.gmra.mxu0 %v111
    %v341 = vpop.f32.mrf.mxu0
    %v342 = vadd.f32 %v184, %v341
    %343 = vmatmul.f32.gmra.mxu0 %v112
    %v344 = vpop.f32.mrf.mxu0
    %v345 = vadd.f32 %v184, %v344
    %346 = vmatmul.f32.gmra.mxu0 %v113
    %v347 = vpop.f32.mrf.mxu0
    %v348 = vadd.f32 %v184, %v347
    %349 = vmatmul.f32.gmra.mxu0 %v114
    %v350 = vpop.f32.mrf.mxu0
    %v351 = vadd.f32 %v184, %v350
    %352 = vdwg.mxu0
    %353 = vst [vmem:[#allocation2] sm:$0xff] %v207
    %354 = vst [vmem:[#allocation2 + $0x8] sm:$0xff] %v248
    %355 = vst [vmem:[#allocation2 + $0x10] sm:$0xff] %v289
    %356 = vst [vmem:[#allocation2 + $0x18] sm:$0xff] %v330
    %357 = vst [vmem:[#allocation2 + $0x20] sm:$0xff] %v210
    %358 = vst [vmem:[#allocation2 + $0x28] sm:$0xff] %v251
    %359 = vst [vmem:[#allocation2 + $0x30] sm:$0xff] %v292
    %360 = vst [vmem:[#allocation2 + $0x38] sm:$0xff] %v333
    %361 = vst [vmem:[#allocation2 + $0x40] sm:$0xff] %v213
    %362 = vst [vmem:[#allocation2 + $0x48] sm:$0xff] %v254
    %363 = vst [vmem:[#allocation2 + $0x50] sm:$0xff] %v295
    %364 = vst [vmem:[#allocation2 + $0x58] sm:$0xff] %v336
    %365 = vst [vmem:[#allocation2 + $0x60] sm:$0xff] %v216
    %366 = vst [vmem:[#allocation2 + $0x68] sm:$0xff] %v257
    %367 = vst [vmem:[#allocation2 + $0x70] sm:$0xff] %v298
    %368 = vst [vmem:[#allocation2 + $0x78] sm:$0xff] %v339
    %369 = vst [vmem:[#allocation2 + $0x80] sm:$0xff] %v219
    %370 = vst [vmem:[#allocation2 + $0x88] sm:$0xff] %v260
    %371 = vst [vmem:[#allocation2 + $0x90] sm:$0xff] %v301
    %372 = vst [vmem:[#allocation2 + $0x98] sm:$0xff] %v342
    %373 = vst [vmem:[#allocation2 + $0xa0] sm:$0xff] %v222
    %374 = vst [vmem:[#allocation2 + $0xa8] sm:$0xff] %v263
    %375 = vst [vmem:[#allocation2 + $0xb0] sm:$0xff] %v304
    %376 = vst [vmem:[#allocation2 + $0xb8] sm:$0xff] %v345
    %377 = vst [vmem:[#allocation2 + $0xc0] sm:$0xff] %v225
    %378 = vst [vmem:[#allocation2 + $0xc8] sm:$0xff] %v266
    %379 = vst [vmem:[#allocation2 + $0xd0] sm:$0xff] %v307
    %380 = vst [vmem:[#allocation2 + $0xd8] sm:$0xff] %v348
    %381 = vst [vmem:[#allocation2 + $0xe0] sm:$0xff] %v228
    %382 = vst [vmem:[#allocation2 + $0xe8] sm:$0xff] %v269
    %383 = vst [vmem:[#allocation2 + $0xf0] sm:$0xff] %v310
    %384 = vst [vmem:[#allocation2 + $0xf8] sm:$0xff] %v351
    %v385 = vld [vmem:[#allocation9] sm:$0xff]
    %v386 = vld [vmem:[#allocation9 + $0x8] sm:$0xff]
    %v387 = vld [vmem:[#allocation9 + $0x10] sm:$0xff]
    %v388 = vld [vmem:[#allocation9 + $0x18] sm:$0xff]
    %v389 = vld [vmem:[#allocation9 + $0x20] sm:$0xff]
    %v390 = vld [vmem:[#allocation9 + $0x28] sm:$0xff]
    %v391 = vld [vmem:[#allocation9 + $0x30] sm:$0xff]
    %v392 = vld [vmem:[#allocation9 + $0x38] sm:$0xff]
    %v393 = vld [vmem:[#allocation9 + $0x40] sm:$0xff]
    %v394 = vld [vmem:[#allocation9 + $0x48] sm:$0xff]
    %v395 = vld [vmem:[#allocation9 + $0x50] sm:$0xff]
    %v396 = vld [vmem:[#allocation9 + $0x58] sm:$0xff]
    %v397 = vld [vmem:[#allocation9 + $0x60] sm:$0xff]
    %v398 = vld [vmem:[#allocation9 + $0x68] sm:$0xff]
    %v399 = vld [vmem:[#allocation9 + $0x70] sm:$0xff]
    %v400 = vld [vmem:[#allocation9 + $0x78] sm:$0xff]
    %v401 = vld [vmem:[#allocation9 + $0x80] sm:$0xff]
    %v402 = vld [vmem:[#allocation9 + $0x88] sm:$0xff]
    %v403 = vld [vmem:[#allocation9 + $0x90] sm:$0xff]
    %v404 = vld [vmem:[#allocation9 + $0x98] sm:$0xff]
    %v405 = vld [vmem:[#allocation9 + $0xa0] sm:$0xff]
    %v406 = vld [vmem:[#allocation9 + $0xa8] sm:$0xff]
    %v407 = vld [vmem:[#allocation9 + $0xb0] sm:$0xff]
    %v408 = vld [vmem:[#allocation9 + $0xb8] sm:$0xff]
    %v409 = vld [vmem:[#allocation9 + $0xc0] sm:$0xff]
    %v410 = vld [vmem:[#allocation9 + $0xc8] sm:$0xff]
    %v411 = vld [vmem:[#allocation9 + $0xd0] sm:$0xff]
    %v412 = vld [vmem:[#allocation9 + $0xd8] sm:$0xff]
    %v413 = vld [vmem:[#allocation9 + $0xe0] sm:$0xff]
    %v414 = vld [vmem:[#allocation9 + $0xe8] sm:$0xff]
    %v415 = vld [vmem:[#allocation9 + $0xf0] sm:$0xff]
    %v416 = vld [vmem:[#allocation9 + $0xf8] sm:$0xff]
    %v417 = vld [vmem:[#allocation9 + $0x100] sm:$0xff]
    %v418 = vld [vmem:[#allocation9 + $0x108] sm:$0xff]
    %v419 = vld [vmem:[#allocation9 + $0x110] sm:$0xff]
    %v420 = vld [vmem:[#allocation9 + $0x118] sm:$0xff]
    %v421 = vld [vmem:[#allocation9 + $0x120] sm:$0xff]
    %v422 = vld [vmem:[#allocation9 + $0x128] sm:$0xff]
    %v423 = vld [vmem:[#allocation9 + $0x130] sm:$0xff]
    %v424 = vld [vmem:[#allocation9 + $0x138] sm:$0xff]
    %v425 = vld [vmem:[#allocation9 + $0x140] sm:$0xff]
    %v426 = vld [vmem:[#allocation9 + $0x148] sm:$0xff]
    %v427 = vld [vmem:[#allocation9 + $0x150] sm:$0xff]
    %v428 = vld [vmem:[#allocation9 + $0x158] sm:$0xff]
    %v429 = vld [vmem:[#allocation9 + $0x160] sm:$0xff]
    %v430 = vld [vmem:[#allocation9 + $0x168] sm:$0xff]
    %v431 = vld [vmem:[#allocation9 + $0x170] sm:$0xff]
    %v432 = vld [vmem:[#allocation9 + $0x178] sm:$0xff]
    %v433 = vld [vmem:[#allocation9 + $0x180] sm:$0xff]
    %v434 = vld [vmem:[#allocation9 + $0x188] sm:$0xff]
    %v435 = vld [vmem:[#allocation9 + $0x190] sm:$0xff]
    %v436 = vld [vmem:[#allocation9 + $0x198] sm:$0xff]
    %v437 = vld [vmem:[#allocation9 + $0x1a0] sm:$0xff]
    %v438 = vld [vmem:[#allocation9 + $0x1a8] sm:$0xff]
    %v439 = vld [vmem:[#allocation9 + $0x1b0] sm:$0xff]
    %v440 = vld [vmem:[#allocation9 + $0x1b8] sm:$0xff]
    %v441 = vld [vmem:[#allocation9 + $0x1c0] sm:$0xff]
    %v442 = vld [vmem:[#allocation9 + $0x1c8] sm:$0xff]
    %v443 = vld [vmem:[#allocation9 + $0x1d0] sm:$0xff]
    %v444 = vld [vmem:[#allocation9 + $0x1d8] sm:$0xff]
    %v445 = vld [vmem:[#allocation9 + $0x1e0] sm:$0xff]
    %v446 = vld [vmem:[#allocation9 + $0x1e8] sm:$0xff]
    %v447 = vld [vmem:[#allocation9 + $0x1f0] sm:$0xff]
    %v448 = vld [vmem:[#allocation9 + $0x1f8] sm:$0xff]
    %v449 = vld [vmem:[#allocation10] sm:$0xff]
    %v450 = vld [vmem:[#allocation10 + $0x8] sm:$0xff]
    %v451 = vld [vmem:[#allocation10 + $0x10] sm:$0xff]
    %v452 = vld [vmem:[#allocation10 + $0x18] sm:$0xff]
    %v453 = vld [vmem:[#allocation10 + $0x20] sm:$0xff]
    %v454 = vld [vmem:[#allocation10 + $0x28] sm:$0xff]
    %v455 = vld [vmem:[#allocation10 + $0x30] sm:$0xff]
    %v456 = vld [vmem:[#allocation10 + $0x38] sm:$0xff]
    %v457 = vld [vmem:[#allocation10 + $0x40] sm:$0xff]
    %v458 = vld [vmem:[#allocation10 + $0x48] sm:$0xff]
    %v459 = vld [vmem:[#allocation10 + $0x50] sm:$0xff]
    %v460 = vld [vmem:[#allocation10 + $0x58] sm:$0xff]
    %v461 = vld [vmem:[#allocation10 + $0x60] sm:$0xff]
    %v462 = vld [vmem:[#allocation10 + $0x68] sm:$0xff]
    %v463 = vld [vmem:[#allocation10 + $0x70] sm:$0xff]
    %v464 = vld [vmem:[#allocation10 + $0x78] sm:$0xff]
    %v465 = vld [vmem:[#allocation10 + $0x80] sm:$0xff]
    %v466 = vld [vmem:[#allocation10 + $0x88] sm:$0xff]
    %v467 = vld [vmem:[#allocation10 + $0x90] sm:$0xff]
    %v468 = vld [vmem:[#allocation10 + $0x98] sm:$0xff]
    %v469 = vld [vmem:[#allocation10 + $0xa0] sm:$0xff]
    %v470 = vld [vmem:[#allocation10 + $0xa8] sm:$0xff]
    %v471 = vld [vmem:[#allocation10 + $0xb0] sm:$0xff]
    %v472 = vld [vmem:[#allocation10 + $0xb8] sm:$0xff]
    %v473 = vld [vmem:[#allocation10 + $0xc0] sm:$0xff]
    %v474 = vld [vmem:[#allocation10 + $0xc8] sm:$0xff]
    %v475 = vld [vmem:[#allocation10 + $0xd0] sm:$0xff]
    %v476 = vld [vmem:[#allocation10 + $0xd8] sm:$0xff]
    %v477 = vld [vmem:[#allocation10 + $0xe0] sm:$0xff]
    %v478 = vld [vmem:[#allocation10 + $0xe8] sm:$0xff]
    %v479 = vld [vmem:[#allocation10 + $0xf0] sm:$0xff]
    %v480 = vld [vmem:[#allocation10 + $0xf8] sm:$0xff]
    %v481 = vld [vmem:[#allocation10 + $0x100] sm:$0xff]
    %v482 = vld [vmem:[#allocation10 + $0x108] sm:$0xff]
    %v483 = vld [vmem:[#allocation10 + $0x110] sm:$0xff]
    %v484 = vld [vmem:[#allocation10 + $0x118] sm:$0xff]
    %v485 = vld [vmem:[#allocation10 + $0x120] sm:$0xff]
    %v486 = vld [vmem:[#allocation10 + $0x128] sm:$0xff]
    %v487 = vld [vmem:[#allocation10 + $0x130] sm:$0xff]
    %v488 = vld [vmem:[#allocation10 + $0x138] sm:$0xff]
    %v489 = vld [vmem:[#allocation10 + $0x140] sm:$0xff]
    %v490 = vld [vmem:[#allocation10 + $0x148] sm:$0xff]
    %v491 = vld [vmem:[#allocation10 + $0x150] sm:$0xff]
    %v492 = vld [vmem:[#allocation10 + $0x158] sm:$0xff]
    %v493 = vld [vmem:[#allocation10 + $0x160] sm:$0xff]
    %v494 = vld [vmem:[#allocation10 + $0x168] sm:$0xff]
    %v495 = vld [vmem:[#allocation10 + $0x170] sm:$0xff]
    %v496 = vld [vmem:[#allocation10 + $0x178] sm:$0xff]
    %v497 = vld [vmem:[#allocation10 + $0x180] sm:$0xff]
    %v498 = vld [vmem:[#allocation10 + $0x188] sm:$0xff]
    %v499 = vld [vmem:[#allocation10 + $0x190] sm:$0xff]
    %v500 = vld [vmem:[#allocation10 + $0x198] sm:$0xff]
    %v501 = vld [vmem:[#allocation10 + $0x1a0] sm:$0xff]
    %v502 = vld [vmem:[#allocation10 + $0x1a8] sm:$0xff]
    %v503 = vld [vmem:[#allocation10 + $0x1b0] sm:$0xff]
    %v504 = vld [vmem:[#allocation10 + $0x1b8] sm:$0xff]
    %v505 = vld [vmem:[#allocation10 + $0x1c0] sm:$0xff]
    %v506 = vld [vmem:[#allocation10 + $0x1c8] sm:$0xff]
    %v507 = vld [vmem:[#allocation10 + $0x1d0] sm:$0xff]
    %v508 = vld [vmem:[#allocation10 + $0x1d8] sm:$0xff]
    %v509 = vld [vmem:[#allocation10 + $0x1e0] sm:$0xff]
    %v510 = vld [vmem:[#allocation10 + $0x1e8] sm:$0xff]
    %v511 = vld [vmem:[#allocation10 + $0x1f0] sm:$0xff]
    %v512 = vld [vmem:[#allocation10 + $0x1f8] sm:$0xff]
    %v513 = vld [vmem:[#allocation10 + $0x200] sm:$0xff]
    %v514 = vld [vmem:[#allocation10 + $0x208] sm:$0xff]
    %v515 = vld [vmem:[#allocation10 + $0x210] sm:$0xff]
    %v516 = vld [vmem:[#allocation10 + $0x218] sm:$0xff]
    %v517 = vld [vmem:[#allocation10 + $0x220] sm:$0xff]
    %v518 = vld [vmem:[#allocation10 + $0x228] sm:$0xff]
    %v519 = vld [vmem:[#allocation10 + $0x230] sm:$0xff]
    %v520 = vld [vmem:[#allocation10 + $0x238] sm:$0xff]
    %v521 = vld [vmem:[#allocation10 + $0x240] sm:$0xff]
    %v522 = vld [vmem:[#allocation10 + $0x248] sm:$0xff]
    %v523 = vld [vmem:[#allocation10 + $0x250] sm:$0xff]
    %v524 = vld [vmem:[#allocation10 + $0x258] sm:$0xff]
    %v525 = vld [vmem:[#allocation10 + $0x260] sm:$0xff]
    %v526 = vld [vmem:[#allocation10 + $0x268] sm:$0xff]
    %v527 = vld [vmem:[#allocation10 + $0x270] sm:$0xff]
    %v528 = vld [vmem:[#allocation10 + $0x278] sm:$0xff]
    %v529 = vld [vmem:[#allocation10 + $0x280] sm:$0xff]
    %v530 = vld [vmem:[#allocation10 + $0x288] sm:$0xff]
    %v531 = vld [vmem:[#allocation10 + $0x290] sm:$0xff]
    %v532 = vld [vmem:[#allocation10 + $0x298] sm:$0xff]
    %v533 = vld [vmem:[#allocation10 + $0x2a0] sm:$0xff]
    %v534 = vld [vmem:[#allocation10 + $0x2a8] sm:$0xff]
    %v535 = vld [vmem:[#allocation10 + $0x2b0] sm:$0xff]
    %v536 = vld [vmem:[#allocation10 + $0x2b8] sm:$0xff]
    %v537 = vld [vmem:[#allocation10 + $0x2c0] sm:$0xff]
    %v538 = vld [vmem:[#allocation10 + $0x2c8] sm:$0xff]
    %v539 = vld [vmem:[#allocation10 + $0x2d0] sm:$0xff]
    %v540 = vld [vmem:[#allocation10 + $0x2d8] sm:$0xff]
    %v541 = vld [vmem:[#allocation10 + $0x2e0] sm:$0xff]
    %v542 = vld [vmem:[#allocation10 + $0x2e8] sm:$0xff]
    %v543 = vld [vmem:[#allocation10 + $0x2f0] sm:$0xff]
    %v544 = vld [vmem:[#allocation10 + $0x2f8] sm:$0xff]
    %v545 = vld [vmem:[#allocation10 + $0x300] sm:$0xff]
    %v546 = vld [vmem:[#allocation10 + $0x308] sm:$0xff]
    %v547 = vld [vmem:[#allocation10 + $0x310] sm:$0xff]
    %v548 = vld [vmem:[#allocation10 + $0x318] sm:$0xff]
    %v549 = vld [vmem:[#allocation10 + $0x320] sm:$0xff]
    %v550 = vld [vmem:[#allocation10 + $0x328] sm:$0xff]
    %v551 = vld [vmem:[#allocation10 + $0x330] sm:$0xff]
    %v552 = vld [vmem:[#allocation10 + $0x338] sm:$0xff]
    %v553 = vld [vmem:[#allocation10 + $0x340] sm:$0xff]
    %v554 = vld [vmem:[#allocation10 + $0x348] sm:$0xff]
    %v555 = vld [vmem:[#allocation10 + $0x350] sm:$0xff]
    %v556 = vld [vmem:[#allocation10 + $0x358] sm:$0xff]
    %v557 = vld [vmem:[#allocation10 + $0x360] sm:$0xff]
    %v558 = vld [vmem:[#allocation10 + $0x368] sm:$0xff]
    %v559 = vld [vmem:[#allocation10 + $0x370] sm:$0xff]
    %v560 = vld [vmem:[#allocation10 + $0x378] sm:$0xff]
    %v561 = vld [vmem:[#allocation10 + $0x380] sm:$0xff]
    %v562 = vld [vmem:[#allocation10 + $0x388] sm:$0xff]
    %v563 = vld [vmem:[#allocation10 + $0x390] sm:$0xff]
    %v564 = vld [vmem:[#allocation10 + $0x398] sm:$0xff]
    %v565 = vld [vmem:[#allocation10 + $0x3a0] sm:$0xff]
    %v566 = vld [vmem:[#allocation10 + $0x3a8] sm:$0xff]
    %v567 = vld [vmem:[#allocation10 + $0x3b0] sm:$0xff]
    %v568 = vld [vmem:[#allocation10 + $0x3b8] sm:$0xff]
    %v569 = vld [vmem:[#allocation10 + $0x3c0] sm:$0xff]
    %v570 = vld [vmem:[#allocation10 + $0x3c8] sm:$0xff]
    %v571 = vld [vmem:[#allocation10 + $0x3d0] sm:$0xff]
    %v572 = vld [vmem:[#allocation10 + $0x3d8] sm:$0xff]
    %v573 = vld [vmem:[#allocation10 + $0x3e0] sm:$0xff]
    %v574 = vld [vmem:[#allocation10 + $0x3e8] sm:$0xff]
    %v575 = vld [vmem:[#allocation10 + $0x3f0] sm:$0xff]
    %v576 = vld [vmem:[#allocation10 + $0x3f8] sm:$0xff]
    %v577 = vld [vmem:[#allocation12] sm:$0xf]
    %v579 = vperm.slane %v577, 0
    %v580 = vperm.slane %v577, 1
    %v581 = vperm.slane %v577, 2
    %v582 = vperm.slane %v577, 3
    %s587 = smul.u32 0, 4
    %s588 = smul.addr %s587, 8
    %s589 = scalar_lea.vmem [#allocation2], %s588
    %v590 = vld [vmem:[%s589] sm:$0xff]
    %v591 = vld [vmem:[%s589 + $0x8] sm:$0xff]
    %v592 = vld [vmem:[%s589 + $0x10] sm:$0xff]
    %v593 = vld [vmem:[%s589 + $0x18] sm:$0xff]
    %594 = vmatpush.msra.mxu0 %v445
    %595 = vmatpush.msra.mxu0 %v441
    %596 = vmatpush.msra.mxu0 %v437
    %597 = vmatpush.msra.mxu0 %v433
    %598 = vmatpush.msra.mxu0 %v429
    %599 = vmatpush.msra.mxu0 %v425
    %600 = vmatpush.msra.mxu0 %v421
    %601 = vmatpush.msra.mxu0 %v417
    %602 = vmatpush.msra.mxu0 %v413
    %603 = vmatpush.msra.mxu0 %v409
    %604 = vmatpush.msra.mxu0 %v405
    %605 = vmatpush.msra.mxu0 %v401
    %606 = vmatpush.msra.mxu0 %v397
    %607 = vmatpush.msra.mxu0 %v393
    %608 = vmatpush.msra.mxu0 %v389
    %609 = vmatpush.msra.mxu0 %v385
    %610 = vmatmul.f32.gmra.mxu0 0.0
    %v611 = vpop.f32.mrf.mxu0
    %v612 = vadd.f32 0.0, %v611
    %613 = vdwg.mxu0
    %614 = vmatpush.msra.mxu0 %v446
    %615 = vmatpush.msra.mxu0 %v442
    %616 = vmatpush.msra.mxu0 %v438
    %617 = vmatpush.msra.mxu0 %v434
    %618 = vmatpush.msra.mxu0 %v430
    %619 = vmatpush.msra.mxu0 %v426
    %620 = vmatpush.msra.mxu0 %v422
    %621 = vmatpush.msra.mxu0 %v418
    %622 = vmatpush.msra.mxu0 %v414
    %623 = vmatpush.msra.mxu0 %v410
    %624 = vmatpush.msra.mxu0 %v406
    %625 = vmatpush.msra.mxu0 %v402
    %626 = vmatpush.msra.mxu0 %v398
    %627 = vmatpush.msra.mxu0 %v394
    %628 = vmatpush.msra.mxu0 %v390
    %629 = vmatpush.msra.mxu0 %v386
    %630 = vmatmul.f32.gmra.mxu0 0.0
    %v631 = vpop.f32.mrf.mxu0
    %v632 = vadd.f32 0.0, %v631
    %633 = vdwg.mxu0
    %634 = vmatpush.msra.mxu0 %v447
    %635 = vmatpush.msra.mxu0 %v443
    %636 = vmatpush.msra.mxu0 %v439
    %637 = vmatpush.msra.mxu0 %v435
    %638 = vmatpush.msra.mxu0 %v431
    %639 = vmatpush.msra.mxu0 %v427
    %640 = vmatpush.msra.mxu0 %v423
    %641 = vmatpush.msra.mxu0 %v419
    %642 = vmatpush.msra.mxu0 %v415
    %643 = vmatpush.msra.mxu0 %v411
    %644 = vmatpush.msra.mxu0 %v407
    %645 = vmatpush.msra.mxu0 %v403
    %646 = vmatpush.msra.mxu0 %v399
    %647 = vmatpush.msra.mxu0 %v395
    %648 = vmatpush.msra.mxu0 %v391
    %649 = vmatpush.msra.mxu0 %v387
    %650 = vmatmul.f32.gmra.mxu0 0.0
    %v651 = vpop.f32.mrf.mxu0
    %v652 = vadd.f32 0.0, %v651
    %653 = vdwg.mxu0
    %654 = vmatpush.msra.mxu0 %v448
    %655 = vmatpush.msra.mxu0 %v444
    %656 = vmatpush.msra.mxu0 %v440
    %657 = vmatpush.msra.mxu0 %v436
    %658 = vmatpush.msra.mxu0 %v432
    %659 = vmatpush.msra.mxu0 %v428
    %660 = vmatpush.msra.mxu0 %v424
    %661 = vmatpush.msra.mxu0 %v420
    %662 = vmatpush.msra.mxu0 %v416
    %663 = vmatpush.msra.mxu0 %v412
    %664 = vmatpush.msra.mxu0 %v408
    %665 = vmatpush.msra.mxu0 %v404
    %666 = vmatpush.msra.mxu0 %v400
    %667 = vmatpush.msra.mxu0 %v396
    %668 = vmatpush.msra.mxu0 %v392
    %669 = vmatpush.msra.mxu0 %v388
    %670 = vmatmul.f32.gmra.mxu0 0.0
    %v671 = vpop.f32.mrf.mxu0
    %v672 = vadd.f32 0.0, %v671
    %673 = vdwg.mxu0
    %v674 = vadd.f32 %v590, %v612
    %v675 = vadd.f32 %v591, %v632
    %v676 = vadd.f32 %v592, %v652
    %v677 = vadd.f32 %v593, %v672
    %v678 = vxor.u32 %v674, 2147483648
    %v679 = vxor.u32 %v675, 2147483648
    %v680 = vxor.u32 %v676, 2147483648
    %v681 = vmul.f32 %v678, 1.442695
    %v682 = vpow.pop %v681
    %v683 = vmul.f32 %v679, 1.442695
    %v684 = vpow.pop %v683
    %v685 = vmul.f32 %v680, 1.442695
    %v686 = vpow.pop %v685
    %v687 = vadd.f32 %v682, 1.0
    %v688 = vadd.f32 %v684, 1.0
    %v689 = vadd.f32 %v686, 1.0
    %v690 = vrcp.pop %v687
    %v691 = vmul.f32 %v687, %v690
    %v692 = vsub.f32 1.0, %v691
    %v693 = vmul.f32 %v690, %v692
    %v694 = vadd.f32 %v690, %v693
    %vm695 = vweird.f32 %v687
    %vm696 = vweird.f32 %v690
    %vm697 = vmor %vm695, %vm696
    %v698 = vsel %vm697, %v690, %v694
    %v699 = vand.u32 2147483647, %v687
    %vm700 = vcmp.eq.f32.partialorder %v699, 8.507059e+37
    %v701 = vand.u32 %v687, 2147483648
    %v702 = vor.u32 1.1754944e-38, %v701
    %v703 = vsel %vm700, %v702, %v698
    %v704 = vmul.f32 1.0, %v703
    %v705 = vrcp.pop %v688
    %v706 = vmul.f32 %v688, %v705
    %v707 = vsub.f32 1.0, %v706
    %v708 = vmul.f32 %v705, %v707
    %v709 = vadd.f32 %v705, %v708
    %vm710 = vweird.f32 %v688
    %vm711 = vweird.f32 %v705
    %vm712 = vmor %vm710, %vm711
    %v713 = vsel %vm712, %v705, %v709
    %v714 = vand.u32 2147483647, %v688
    %vm715 = vcmp.eq.f32.partialorder %v714, 8.507059e+37
    %v716 = vand.u32 %v688, 2147483648
    %v717 = vor.u32 1.1754944e-38, %v716
    %v718 = vsel %vm715, %v717, %v713
    %v719 = vmul.f32 1.0, %v718
    %v720 = vrcp.pop %v689
    %v721 = vmul.f32 %v689, %v720
    %v722 = vsub.f32 1.0, %v721
    %v723 = vmul.f32 %v720, %v722
    %v724 = vadd.f32 %v720, %v723
    %vm725 = vweird.f32 %v689
    %vm726 = vweird.f32 %v720
    %vm727 = vmor %vm725, %vm726
    %v728 = vsel %vm727, %v720, %v724
    %v729 = vand.u32 2147483647, %v689
    %vm730 = vcmp.eq.f32.partialorder %v729, 8.507059e+37
    %v731 = vand.u32 %v689, 2147483648
    %v732 = vor.u32 1.1754944e-38, %v731
    %v733 = vsel %vm730, %v732, %v728
    %v734 = vmul.f32 1.0, %v733
    %v735 = vtanh.pop %v677
    %v736 = vmul.f32 %v719, 0.0
    %v737 = vmul.f32 %v704, %v735
    %v738 = vadd.f32 %v736, %v737
    %v739 = vtanh.pop %v738
    %v740 = vmul.f32 %v734, %v739
    %741 = vmatpush.msra.mxu0 %v509
    %742 = vmatpush.msra.mxu0 %v505
    %743 = vmatpush.msra.mxu0 %v501
    %744 = vmatpush.msra.mxu0 %v497
    %745 = vmatpush.msra.mxu0 %v493
    %746 = vmatpush.msra.mxu0 %v489
    %747 = vmatpush.msra.mxu0 %v485
    %748 = vmatpush.msra.mxu0 %v481
    %749 = vmatpush.msra.mxu0 %v477
    %750 = vmatpush.msra.mxu0 %v473
    %751 = vmatpush.msra.mxu0 %v469
    %752 = vmatpush.msra.mxu0 %v465
    %753 = vmatpush.msra.mxu0 %v461
    %754 = vmatpush.msra.mxu0 %v457
    %755 = vmatpush.msra.mxu0 %v453
    %756 = vmatpush.msra.mxu0 %v449
    %757 = vmatmul.f32.gmra.mxu0 %v740
    %v758 = vpop.f32.mrf.mxu0
    %v759 = vadd.f32 %v579, %v758
    %760 = vdwg.mxu0
    %761 = vmatpush.msra.mxu0 %v573
    %762 = vmatpush.msra.mxu0 %v569
    %763 = vmatpush.msra.mxu0 %v565
    %764 = vmatpush.msra.mxu0 %v561
    %765 = vmatpush.msra.mxu0 %v557
    %766 = vmatpush.msra.mxu0 %v553
    %767 = vmatpush.msra.mxu0 %v549
    %768 = vmatpush.msra.mxu0 %v545
    %769 = vmatpush.msra.mxu0 %v541
    %770 = vmatpush.msra.mxu0 %v537
    %771 = vmatpush.msra.mxu0 %v533
    %772 = vmatpush.msra.mxu0 %v529
    %773 = vmatpush.msra.mxu0 %v525
    %774 = vmatpush.msra.mxu0 %v521
    %775 = vmatpush.msra.mxu0 %v517
    %776 = vmatpush.msra.mxu0 %v513
    %777 = vmatmul.f32.gmra.mxu0 0.0
    %v778 = vpop.f32.mrf.mxu0
    %v779 = vadd.f32 %v759, %v778
    %780 = vdwg.mxu0
    %781 = vmatpush.msra.mxu0 %v510
    %782 = vmatpush.msra.mxu0 %v506
    %783 = vmatpush.msra.mxu0 %v502
    %784 = vmatpush.msra.mxu0 %v498
    %785 = vmatpush.msra.mxu0 %v494
    %786 = vmatpush.msra.mxu0 %v490
    %787 = vmatpush.msra.mxu0 %v486
    %788 = vmatpush.msra.mxu0 %v482
    %789 = vmatpush.msra.mxu0 %v478
    %790 = vmatpush.msra.mxu0 %v474
    %791 = vmatpush.msra.mxu0 %v470
    %792 = vmatpush.msra.mxu0 %v466
    %793 = vmatpush.msra.mxu0 %v462
    %794 = vmatpush.msra.mxu0 %v458
    %795 = vmatpush.msra.mxu0 %v454
    %796 = vmatpush.msra.mxu0 %v450
    %797 = vmatmul.f32.gmra.mxu0 %v740
    %v798 = vpop.f32.mrf.mxu0
    %v799 = vadd.f32 %v580, %v798
    %800 = vdwg.mxu0
    %801 = vmatpush.msra.mxu0 %v574
    %802 = vmatpush.msra.mxu0 %v570
    %803 = vmatpush.msra.mxu0 %v566
    %804 = vmatpush.msra.mxu0 %v562
    %805 = vmatpush.msra.mxu0 %v558
    %806 = vmatpush.msra.mxu0 %v554
    %807 = vmatpush.msra.mxu0 %v550
    %808 = vmatpush.msra.mxu0 %v546
    %809 = vmatpush.msra.mxu0 %v542
    %810 = vmatpush.msra.mxu0 %v538
    %811 = vmatpush.msra.mxu0 %v534
    %812 = vmatpush.msra.mxu0 %v530
    %813 = vmatpush.msra.mxu0 %v526
    %814 = vmatpush.msra.mxu0 %v522
    %815 = vmatpush.msra.mxu0 %v518
    %816 = vmatpush.msra.mxu0 %v514
    %817 = vmatmul.f32.gmra.mxu0 0.0
    %v818 = vpop.f32.mrf.mxu0
    %v819 = vadd.f32 %v799, %v818
    %820 = vdwg.mxu0
    %821 = vmatpush.msra.mxu0 %v511
    %822 = vmatpush.msra.mxu0 %v507
    %823 = vmatpush.msra.mxu0 %v503
    %824 = vmatpush.msra.mxu0 %v499
    %825 = vmatpush.msra.mxu0 %v495
    %826 = vmatpush.msra.mxu0 %v491
    %827 = vmatpush.msra.mxu0 %v487
    %828 = vmatpush.msra.mxu0 %v483
    %829 = vmatpush.msra.mxu0 %v479
    %830 = vmatpush.msra.mxu0 %v475
    %831 = vmatpush.msra.mxu0 %v471
    %832 = vmatpush.msra.mxu0 %v467
    %833 = vmatpush.msra.mxu0 %v463
    %834 = vmatpush.msra.mxu0 %v459
    %835 = vmatpush.msra.mxu0 %v455
    %836 = vmatpush.msra.mxu0 %v451
    %837 = vmatmul.f32.gmra.mxu0 %v740
    %v838 = vpop.f32.mrf.mxu0
    %v839 = vadd.f32 %v581, %v838
    %840 = vdwg.mxu0
    %841 = vmatpush.msra.mxu0 %v575
    %842 = vmatpush.msra.mxu0 %v571
    %843 = vmatpush.msra.mxu0 %v567
    %844 = vmatpush.msra.mxu0 %v563
    %845 = vmatpush.msra.mxu0 %v559
    %846 = vmatpush.msra.mxu0 %v555
    %847 = vmatpush.msra.mxu0 %v551
    %848 = vmatpush.msra.mxu0 %v547
    %849 = vmatpush.msra.mxu0 %v543
    %850 = vmatpush.msra.mxu0 %v539
    %851 = vmatpush.msra.mxu0 %v535
    %852 = vmatpush.msra.mxu0 %v531
    %853 = vmatpush.msra.mxu0 %v527
    %854 = vmatpush.msra.mxu0 %v523
    %855 = vmatpush.msra.mxu0 %v519
    %856 = vmatpush.msra.mxu0 %v515
    %857 = vmatmul.f32.gmra.mxu0 0.0
    %v858 = vpop.f32.mrf.mxu0
    %v859 = vadd.f32 %v839, %v858
    %860 = vdwg.mxu0
    %861 = vmatpush.msra.mxu0 %v512
    %862 = vmatpush.msra.mxu0 %v508
    %863 = vmatpush.msra.mxu0 %v504
    %864 = vmatpush.msra.mxu0 %v500
    %865 = vmatpush.msra.mxu0 %v496
    %866 = vmatpush.msra.mxu0 %v492
    %867 = vmatpush.msra.mxu0 %v488
    %868 = vmatpush.msra.mxu0 %v484
    %869 = vmatpush.msra.mxu0 %v480
    %870 = vmatpush.msra.mxu0 %v476
    %871 = vmatpush.msra.mxu0 %v472
    %872 = vmatpush.msra.mxu0 %v468
    %873 = vmatpush.msra.mxu0 %v464
    %874 = vmatpush.msra.mxu0 %v460
    %875 = vmatpush.msra.mxu0 %v456
    %876 = vmatpush.msra.mxu0 %v452
    %877 = vmatmul.f32.gmra.mxu0 %v740
    %v878 = vpop.f32.mrf.mxu0
    %v879 = vadd.f32 %v582, %v878
    %880 = vdwg.mxu0
    %881 = vmatpush.msra.mxu0 %v576
    %882 = vmatpush.msra.mxu0 %v572
    %883 = vmatpush.msra.mxu0 %v568
    %884 = vmatpush.msra.mxu0 %v564
    %885 = vmatpush.msra.mxu0 %v560
    %886 = vmatpush.msra.mxu0 %v556
    %887 = vmatpush.msra.mxu0 %v552
    %888 = vmatpush.msra.mxu0 %v548
    %889 = vmatpush.msra.mxu0 %v544
    %890 = vmatpush.msra.mxu0 %v540
    %891 = vmatpush.msra.mxu0 %v536
    %892 = vmatpush.msra.mxu0 %v532
    %893 = vmatpush.msra.mxu0 %v528
    %894 = vmatpush.msra.mxu0 %v524
    %895 = vmatpush.msra.mxu0 %v520
    %896 = vmatpush.msra.mxu0 %v516
    %897 = vmatmul.f32.gmra.mxu0 0.0
    %v898 = vpop.f32.mrf.mxu0
    %v899 = vadd.f32 %v879, %v898
    %900 = vdwg.mxu0
    %v901 = vxor.u32 %v779, 2147483648
    %v902 = vxor.u32 %v819, 2147483648
    %v903 = vxor.u32 %v859, 2147483648
    %v904 = vmul.f32 %v901, 1.442695
    %v905 = vpow.pop %v904
    %v906 = vmul.f32 %v902, 1.442695
    %v907 = vpow.pop %v906
    %v908 = vmul.f32 %v903, 1.442695
    %v909 = vpow.pop %v908
    %v910 = vadd.f32 %v905, 1.0
    %v911 = vadd.f32 %v907, 1.0
    %v912 = vadd.f32 %v909, 1.0
    %v913 = vrcp.pop %v910
    %v914 = vmul.f32 %v910, %v913
    %v915 = vsub.f32 1.0, %v914
    %v916 = vmul.f32 %v913, %v915
    %v917 = vadd.f32 %v913, %v916
    %vm918 = vweird.f32 %v910
    %vm919 = vweird.f32 %v913
    %vm920 = vmor %vm918, %vm919
    %v921 = vsel %vm920, %v913, %v917
    %v922 = vand.u32 2147483647, %v910
    %vm923 = vcmp.eq.f32.partialorder %v922, 8.507059e+37
    %v924 = vand.u32 %v910, 2147483648
    %v925 = vor.u32 1.1754944e-38, %v924
    %v926 = vsel %vm923, %v925, %v921
    %v927 = vmul.f32 1.0, %v926
    %v928 = vrcp.pop %v911
    %v929 = vmul.f32 %v911, %v928
    %v930 = vsub.f32 1.0, %v929
    %v931 = vmul.f32 %v928, %v930
    %v932 = vadd.f32 %v928, %v931
    %vm933 = vweird.f32 %v911
    %vm934 = vweird.f32 %v928
    %vm935 = vmor %vm933, %vm934
    %v936 = vsel %vm935, %v928, %v932
    %v937 = vand.u32 2147483647, %v911
    %vm938 = vcmp.eq.f32.partialorder %v937, 8.507059e+37
    %v939 = vand.u32 %v911, 2147483648
    %v940 = vor.u32 1.1754944e-38, %v939
    %v941 = vsel %vm938, %v940, %v936
    %v942 = vmul.f32 1.0, %v941
    %v943 = vrcp.pop %v912
    %v944 = vmul.f32 %v912, %v943
    %v945 = vsub.f32 1.0, %v944
    %v946 = vmul.f32 %v943, %v945
    %v947 = vadd.f32 %v943, %v946
    %vm948 = vweird.f32 %v912
    %vm949 = vweird.f32 %v943
    %vm950 = vmor %vm948, %vm949
    %v951 = vsel %vm950, %v943, %v947
    %v952 = vand.u32 2147483647, %v912
    %vm953 = vcmp.eq.f32.partialorder %v952, 8.507059e+37
    %v954 = vand.u32 %v912, 2147483648
    %v955 = vor.u32 1.1754944e-38, %v954
    %v956 = vsel %vm953, %v955, %v951
    %v957 = vmul.f32 1.0, %v956
    %v958 = vtanh.pop %v899
    %v959 = vmul.f32 %v942, 0.0
    %v960 = vmul.f32 %v927, %v958
    %v961 = vadd.f32 %v959, %v960
    %v962 = vtanh.pop %v961
    %v963 = vmul.f32 %v957, %v962
    %s964 = smul.u32 1, 4
    %s965 = smul.addr %s964, 8
    %s966 = scalar_lea.vmem [#allocation2], %s965
    %v967 = vld [vmem:[%s966] sm:$0xff]
    %v968 = vld [vmem:[%s966 + $0x8] sm:$0xff]
    %v969 = vld [vmem:[%s966 + $0x10] sm:$0xff]
    %v970 = vld [vmem:[%s966 + $0x18] sm:$0xff]
    %971 = vmatpush.msra.mxu0 %v445
    %972 = vmatpush.msra.mxu0 %v441
    %973 = vmatpush.msra.mxu0 %v437
    %974 = vmatpush.msra.mxu0 %v433
    %975 = vmatpush.msra.mxu0 %v429
    %976 = vmatpush.msra.mxu0 %v425
    %977 = vmatpush.msra.mxu0 %v421
    %978 = vmatpush.msra.mxu0 %v417
    %979 = vmatpush.msra.mxu0 %v413
    %980 = vmatpush.msra.mxu0 %v409
    %981 = vmatpush.msra.mxu0 %v405
    %982 = vmatpush.msra.mxu0 %v401
    %983 = vmatpush.msra.mxu0 %v397
    %984 = vmatpush.msra.mxu0 %v393
    %985 = vmatpush.msra.mxu0 %v389
    %986 = vmatpush.msra.mxu0 %v385
    %987 = vmatmul.f32.gmra.mxu0 %v740
    %v988 = vpop.f32.mrf.mxu0
    %v989 = vadd.f32 0.0, %v988
    %990 = vdwg.mxu0
    %991 = vmatpush.msra.mxu0 %v446
    %992 = vmatpush.msra.mxu0 %v442
    %993 = vmatpush.msra.mxu0 %v438
    %994 = vmatpush.msra.mxu0 %v434
    %995 = vmatpush.msra.mxu0 %v430
    %996 = vmatpush.msra.mxu0 %v426
    %997 = vmatpush.msra.mxu0 %v422
    %998 = vmatpush.msra.mxu0 %v418
    %999 = vmatpush.msra.mxu0 %v414
    %1000 = vmatpush.msra.mxu0 %v410
    %1001 = vmatpush.msra.mxu0 %v406
    %1002 = vmatpush.msra.mxu0 %v402
    %1003 = vmatpush.msra.mxu0 %v398
    %1004 = vmatpush.msra.mxu0 %v394
    %1005 = vmatpush.msra.mxu0 %v390
    %1006 = vmatpush.msra.mxu0 %v386
    %1007 = vmatmul.f32.gmra.mxu0 %v740
    %v1008 = vpop.f32.mrf.mxu0
    %v1009 = vadd.f32 0.0, %v1008
    %1010 = vdwg.mxu0
    %1011 = vmatpush.msra.mxu0 %v447
    %1012 = vmatpush.msra.mxu0 %v443
    %1013 = vmatpush.msra.mxu0 %v439
    %1014 = vmatpush.msra.mxu0 %v435
    %1015 = vmatpush.msra.mxu0 %v431
    %1016 = vmatpush.msra.mxu0 %v427
    %1017 = vmatpush.msra.mxu0 %v423
    %1018 = vmatpush.msra.mxu0 %v419
    %1019 = vmatpush.msra.mxu0 %v415
    %1020 = vmatpush.msra.mxu0 %v411
    %1021 = vmatpush.msra.mxu0 %v407
    %1022 = vmatpush.msra.mxu0 %v403
    %1023 = vmatpush.msra.mxu0 %v399
    %1024 = vmatpush.msra.mxu0 %v395
    %1025 = vmatpush.msra.mxu0 %v391
    %1026 = vmatpush.msra.mxu0 %v387
    %1027 = vmatmul.f32.gmra.mxu0 %v740
    %v1028 = vpop.f32.mrf.mxu0
    %v1029 = vadd.f32 0.0, %v1028
    %1030 = vdwg.mxu0
    %1031 = vmatpush.msra.mxu0 %v448
    %1032 = vmatpush.msra.mxu0 %v444
    %1033 = vmatpush.msra.mxu0 %v440
    %1034 = vmatpush.msra.mxu0 %v436
    %1035 = vmatpush.msra.mxu0 %v432
    %1036 = vmatpush.msra.mxu0 %v428
    %1037 = vmatpush.msra.mxu0 %v424
    %1038 = vmatpush.msra.mxu0 %v420
    %1039 = vmatpush.msra.mxu0 %v416
    %1040 = vmatpush.msra.mxu0 %v412
    %1041 = vmatpush.msra.mxu0 %v408
    %1042 = vmatpush.msra.mxu0 %v404
    %1043 = vmatpush.msra.mxu0 %v400
    %1044 = vmatpush.msra.mxu0 %v396
    %1045 = vmatpush.msra.mxu0 %v392
    %1046 = vmatpush.msra.mxu0 %v388
    %1047 = vmatmul.f32.gmra.mxu0 %v740
    %v1048 = vpop.f32.mrf.mxu0
    %v1049 = vadd.f32 0.0, %v1048
    %1050 = vdwg.mxu0
    %v1051 = vadd.f32 %v967, %v989
    %v1052 = vadd.f32 %v968, %v1009
    %v1053 = vadd.f32 %v969, %v1029
    %v1054 = vadd.f32 %v970, %v1049
    %v1055 = vxor.u32 %v1051, 2147483648
    %v1056 = vxor.u32 %v1052, 2147483648
    %v1057 = vxor.u32 %v1053, 2147483648
    %v1058 = vmul.f32 %v1055, 1.442695
    %v1059 = vpow.pop %v1058
    %v1060 = vmul.f32 %v1056, 1.442695
    %v1061 = vpow.pop %v1060
    %v1062 = vmul.f32 %v1057, 1.442695
    %v1063 = vpow.pop %v1062
    %v1064 = vadd.f32 %v1059, 1.0
    %v1065 = vadd.f32 %v1061, 1.0
    %v1066 = vadd.f32 %v1063, 1.0
    %v1067 = vrcp.pop %v1064
    %v1068 = vmul.f32 %v1064, %v1067
    %v1069 = vsub.f32 1.0, %v1068
    %v1070 = vmul.f32 %v1067, %v1069
    %v1071 = vadd.f32 %v1067, %v1070
    %vm1072 = vweird.f32 %v1064
    %vm1073 = vweird.f32 %v1067
    %vm1074 = vmor %vm1072, %vm1073
    %v1075 = vsel %vm1074, %v1067, %v1071
    %v1076 = vand.u32 2147483647, %v1064
    %vm1077 = vcmp.eq.f32.partialorder %v1076, 8.507059e+37
    %v1078 = vand.u32 %v1064, 2147483648
    %v1079 = vor.u32 1.1754944e-38, %v1078
    %v1080 = vsel %vm1077, %v1079, %v1075
    %v1081 = vmul.f32 1.0, %v1080
    %v1082 = vrcp.pop %v1065
    %v1083 = vmul.f32 %v1065, %v1082
    %v1084 = vsub.f32 1.0, %v1083
    %v1085 = vmul.f32 %v1082, %v1084
    %v1086 = vadd.f32 %v1082, %v1085
    %vm1087 = vweird.f32 %v1065
    %vm1088 = vweird.f32 %v1082
    %vm1089 = vmor %vm1087, %vm1088
    %v1090 = vsel %vm1089, %v1082, %v1086
    %v1091 = vand.u32 2147483647, %v1065
    %vm1092 = vcmp.eq.f32.partialorder %v1091, 8.507059e+37
    %v1093 = vand.u32 %v1065, 2147483648
    %v1094 = vor.u32 1.1754944e-38, %v1093
    %v1095 = vsel %vm1092, %v1094, %v1090
    %v1096 = vmul.f32 1.0, %v1095
    %v1097 = vrcp.pop %v1066
    %v1098 = vmul.f32 %v1066, %v1097
    %v1099 = vsub.f32 1.0, %v1098
    %v1100 = vmul.f32 %v1097, %v1099
    %v1101 = vadd.f32 %v1097, %v1100
    %vm1102 = vweird.f32 %v1066
    %vm1103 = vweird.f32 %v1097
    %vm1104 = vmor %vm1102, %vm1103
    %v1105 = vsel %vm1104, %v1097, %v1101
    %v1106 = vand.u32 2147483647, %v1066
    %vm1107 = vcmp.eq.f32.partialorder %v1106, 8.507059e+37
    %v1108 = vand.u32 %v1066, 2147483648
    %v1109 = vor.u32 1.1754944e-38, %v1108
    %v1110 = vsel %vm1107, %v1109, %v1105
    %v1111 = vmul.f32 1.0, %v1110
    %v1112 = vtanh.pop %v1054
    %v1113 = vmul.f32 %v1096, %v738
    %v1114 = vmul.f32 %v1081, %v1112
    %v1115 = vadd.f32 %v1113, %v1114
    %v1116 = vtanh.pop %v1115
    %v1117 = vmul.f32 %v1111, %v1116
    %1118 = vmatpush.msra.mxu0 %v509
    %1119 = vmatpush.msra.mxu0 %v505
    %1120 = vmatpush.msra.mxu0 %v501
    %1121 = vmatpush.msra.mxu0 %v497
    %1122 = vmatpush.msra.mxu0 %v493
    %1123 = vmatpush.msra.mxu0 %v489
    %1124 = vmatpush.msra.mxu0 %v485
    %1125 = vmatpush.msra.mxu0 %v481
    %1126 = vmatpush.msra.mxu0 %v477
    %1127 = vmatpush.msra.mxu0 %v473
    %1128 = vmatpush.msra.mxu0 %v469
    %1129 = vmatpush.msra.mxu0 %v465
    %1130 = vmatpush.msra.mxu0 %v461
    %1131 = vmatpush.msra.mxu0 %v457
    %1132 = vmatpush.msra.mxu0 %v453
    %1133 = vmatpush.msra.mxu0 %v449
    %1134 = vmatmul.f32.gmra.mxu0 %v1117
    %v1135 = vpop.f32.mrf.mxu0
    %v1136 = vadd.f32 %v579, %v1135
    %1137 = vdwg.mxu0
    %1138 = vmatpush.msra.mxu0 %v573
    %1139 = vmatpush.msra.mxu0 %v569
    %1140 = vmatpush.msra.mxu0 %v565
    %1141 = vmatpush.msra.mxu0 %v561
    %1142 = vmatpush.msra.mxu0 %v557
    %1143 = vmatpush.msra.mxu0 %v553
    %1144 = vmatpush.msra.mxu0 %v549
    %1145 = vmatpush.msra.mxu0 %v545
    %1146 = vmatpush.msra.mxu0 %v541
    %1147 = vmatpush.msra.mxu0 %v537
    %1148 = vmatpush.msra.mxu0 %v533
    %1149 = vmatpush.msra.mxu0 %v529
    %1150 = vmatpush.msra.mxu0 %v525
    %1151 = vmatpush.msra.mxu0 %v521
    %1152 = vmatpush.msra.mxu0 %v517
    %1153 = vmatpush.msra.mxu0 %v513
    %1154 = vmatmul.f32.gmra.mxu0 %v963
    %v1155 = vpop.f32.mrf.mxu0
    %v1156 = vadd.f32 %v1136, %v1155
    %1157 = vdwg.mxu0
    %1158 = vmatpush.msra.mxu0 %v510
    %1159 = vmatpush.msra.mxu0 %v506
    %1160 = vmatpush.msra.mxu0 %v502
    %1161 = vmatpush.msra.mxu0 %v498
    %1162 = vmatpush.msra.mxu0 %v494
    %1163 = vmatpush.msra.mxu0 %v490
    %1164 = vmatpush.msra.mxu0 %v486
    %1165 = vmatpush.msra.mxu0 %v482
    %1166 = vmatpush.msra.mxu0 %v478
    %1167 = vmatpush.msra.mxu0 %v474
    %1168 = vmatpush.msra.mxu0 %v470
    %1169 = vmatpush.msra.mxu0 %v466
    %1170 = vmatpush.msra.mxu0 %v462
    %1171 = vmatpush.msra.mxu0 %v458
    %1172 = vmatpush.msra.mxu0 %v454
    %1173 = vmatpush.msra.mxu0 %v450
    %1174 = vmatmul.f32.gmra.mxu0 %v1117
    %v1175 = vpop.f32.mrf.mxu0
    %v1176 = vadd.f32 %v580, %v1175
    %1177 = vdwg.mxu0
    %1178 = vmatpush.msra.mxu0 %v574
    %1179 = vmatpush.msra.mxu0 %v570
    %1180 = vmatpush.msra.mxu0 %v566
    %1181 = vmatpush.msra.mxu0 %v562
    %1182 = vmatpush.msra.mxu0 %v558
    %1183 = vmatpush.msra.mxu0 %v554
    %1184 = vmatpush.msra.mxu0 %v550
    %1185 = vmatpush.msra.mxu0 %v546
    %1186 = vmatpush.msra.mxu0 %v542
    %1187 = vmatpush.msra.mxu0 %v538
    %1188 = vmatpush.msra.mxu0 %v534
    %1189 = vmatpush.msra.mxu0 %v530
    %1190 = vmatpush.msra.mxu0 %v526
    %1191 = vmatpush.msra.mxu0 %v522
    %1192 = vmatpush.msra.mxu0 %v518
    %1193 = vmatpush.msra.mxu0 %v514
    %1194 = vmatmul.f32.gmra.mxu0 %v963
    %v1195 = vpop.f32.mrf.mxu0
    %v1196 = vadd.f32 %v1176, %v1195
    %1197 = vdwg.mxu0
    %1198 = vmatpush.msra.mxu0 %v511
    %1199 = vmatpush.msra.mxu0 %v507
    %1200 = vmatpush.msra.mxu0 %v503
    %1201 = vmatpush.msra.mxu0 %v499
    %1202 = vmatpush.msra.mxu0 %v495
    %1203 = vmatpush.msra.mxu0 %v491
    %1204 = vmatpush.msra.mxu0 %v487
    %1205 = vmatpush.msra.mxu0 %v483
    %1206 = vmatpush.msra.mxu0 %v479
    %1207 = vmatpush.msra.mxu0 %v475
    %1208 = vmatpush.msra.mxu0 %v471
    %1209 = vmatpush.msra.mxu0 %v467
    %1210 = vmatpush.msra.mxu0 %v463
    %1211 = vmatpush.msra.mxu0 %v459
    %1212 = vmatpush.msra.mxu0 %v455
    %1213 = vmatpush.msra.mxu0 %v451
    %1214 = vmatmul.f32.gmra.mxu0 %v1117
    %v1215 = vpop.f32.mrf.mxu0
    %v1216 = vadd.f32 %v581, %v1215
    %1217 = vdwg.mxu0
    %1218 = vmatpush.msra.mxu0 %v575
    %1219 = vmatpush.msra.mxu0 %v571
    %1220 = vmatpush.msra.mxu0 %v567
    %1221 = vmatpush.msra.mxu0 %v563
    %1222 = vmatpush.msra.mxu0 %v559
    %1223 = vmatpush.msra.mxu0 %v555
    %1224 = vmatpush.msra.mxu0 %v551
    %1225 = vmatpush.msra.mxu0 %v547
    %1226 = vmatpush.msra.mxu0 %v543
    %1227 = vmatpush.msra.mxu0 %v539
    %1228 = vmatpush.msra.mxu0 %v535
    %1229 = vmatpush.msra.mxu0 %v531
    %1230 = vmatpush.msra.mxu0 %v527
    %1231 = vmatpush.msra.mxu0 %v523
    %1232 = vmatpush.msra.mxu0 %v519
    %1233 = vmatpush.msra.mxu0 %v515
    %1234 = vmatmul.f32.gmra.mxu0 %v963
    %v1235 = vpop.f32.mrf.mxu0
    %v1236 = vadd.f32 %v1216, %v1235
    %1237 = vdwg.mxu0
    %1238 = vmatpush.msra.mxu0 %v512
    %1239 = vmatpush.msra.mxu0 %v508
    %1240 = vmatpush.msra.mxu0 %v504
    %1241 = vmatpush.msra.mxu0 %v500
    %1242 = vmatpush.msra.mxu0 %v496
    %1243 = vmatpush.msra.mxu0 %v492
    %1244 = vmatpush.msra.mxu0 %v488
    %1245 = vmatpush.msra.mxu0 %v484
    %1246 = vmatpush.msra.mxu0 %v480
    %1247 = vmatpush.msra.mxu0 %v476
    %1248 = vmatpush.msra.mxu0 %v472
    %1249 = vmatpush.msra.mxu0 %v468
    %1250 = vmatpush.msra.mxu0 %v464
    %1251 = vmatpush.msra.mxu0 %v460
    %1252 = vmatpush.msra.mxu0 %v456
    %1253 = vmatpush.msra.mxu0 %v452
    %1254 = vmatmul.f32.gmra.mxu0 %v1117
    %v1255 = vpop.f32.mrf.mxu0
    %v1256 = vadd.f32 %v582, %v1255
    %1257 = vdwg.mxu0
    %1258 = vmatpush.msra.mxu0 %v576
    %1259 = vmatpush.msra.mxu0 %v572
    %1260 = vmatpush.msra.mxu0 %v568
    %1261 = vmatpush.msra.mxu0 %v564
    %1262 = vmatpush.msra.mxu0 %v560
    %1263 = vmatpush.msra.mxu0 %v556
    %1264 = vmatpush.msra.mxu0 %v552
    %1265 = vmatpush.msra.mxu0 %v548
    %1266 = vmatpush.msra.mxu0 %v544
    %1267 = vmatpush.msra.mxu0 %v540
    %1268 = vmatpush.msra.mxu0 %v536
    %1269 = vmatpush.msra.mxu0 %v532
    %1270 = vmatpush.msra.mxu0 %v528
    %1271 = vmatpush.msra.mxu0 %v524
    %1272 = vmatpush.msra.mxu0 %v520
    %1273 = vmatpush.msra.mxu0 %v516
    %1274 = vmatmul.f32.gmra.mxu0 %v963
    %v1275 = vpop.f32.mrf.mxu0
    %v1276 = vadd.f32 %v1256, %v1275
    %1277 = vdwg.mxu0
    %v1278 = vxor.u32 %v1156, 2147483648
    %v1279 = vxor.u32 %v1196, 2147483648
    %v1280 = vxor.u32 %v1236, 2147483648
    %v1281 = vmul.f32 %v1278, 1.442695
    %v1282 = vpow.pop %v1281
    %v1283 = vmul.f32 %v1279, 1.442695
    %v1284 = vpow.pop %v1283
    %v1285 = vmul.f32 %v1280, 1.442695
    %v1286 = vpow.pop %v1285
    %v1287 = vadd.f32 %v1282, 1.0
    %v1288 = vadd.f32 %v1284, 1.0
    %v1289 = vadd.f32 %v1286, 1.0
    %v1290 = vrcp.pop %v1287
    %v1291 = vmul.f32 %v1287, %v1290
    %v1292 = vsub.f32 1.0, %v1291
    %v1293 = vmul.f32 %v1290, %v1292
    %v1294 = vadd.f32 %v1290, %v1293
    %vm1295 = vweird.f32 %v1287
    %vm1296 = vweird.f32 %v1290
    %vm1297 = vmor %vm1295, %vm1296
    %v1298 = vsel %vm1297, %v1290, %v1294
    %v1299 = vand.u32 2147483647, %v1287
    %vm1300 = vcmp.eq.f32.partialorder %v1299, 8.507059e+37
    %v1301 = vand.u32 %v1287, 2147483648
    %v1302 = vor.u32 1.1754944e-38, %v1301
    %v1303 = vsel %vm1300, %v1302, %v1298
    %v1304 = vmul.f32 1.0, %v1303
    %v1305 = vrcp.pop %v1288
    %v1306 = vmul.f32 %v1288, %v1305
    %v1307 = vsub.f32 1.0, %v1306
    %v1308 = vmul.f32 %v1305, %v1307
    %v1309 = vadd.f32 %v1305, %v1308
    %vm1310 = vweird.f32 %v1288
    %vm1311 = vweird.f32 %v1305
    %vm1312 = vmor %vm1310, %vm1311
    %v1313 = vsel %vm1312, %v1305, %v1309
    %v1314 = vand.u32 2147483647, %v1288
    %vm1315 = vcmp.eq.f32.partialorder %v1314, 8.507059e+37
    %v1316 = vand.u32 %v1288, 2147483648
    %v1317 = vor.u32 1.1754944e-38, %v1316
    %v1318 = vsel %vm1315, %v1317, %v1313
    %v1319 = vmul.f32 1.0, %v1318
    %v1320 = vrcp.pop %v1289
    %v1321 = vmul.f32 %v1289, %v1320
    %v1322 = vsub.f32 1.0, %v1321
    %v1323 = vmul.f32 %v1320, %v1322
    %v1324 = vadd.f32 %v1320, %v1323
    %vm1325 = vweird.f32 %v1289
    %vm1326 = vweird.f32 %v1320
    %vm1327 = vmor %vm1325, %vm1326
    %v1328 = vsel %vm1327, %v1320, %v1324
    %v1329 = vand.u32 2147483647, %v1289
    %vm1330 = vcmp.eq.f32.partialorder %v1329, 8.507059e+37
    %v1331 = vand.u32 %v1289, 2147483648
    %v1332 = vor.u32 1.1754944e-38, %v1331
    %v1333 = vsel %vm1330, %v1332, %v1328
    %v1334 = vmul.f32 1.0, %v1333
    %v1335 = vtanh.pop %v1276
    %v1336 = vmul.f32 %v1319, %v961
    %v1337 = vmul.f32 %v1304, %v1335
    %v1338 = vadd.f32 %v1336, %v1337
    %v1339 = vtanh.pop %v1338
    %v1340 = vmul.f32 %v1334, %v1339
    %s1341 = smul.u32 2, 4
    %s1342 = smul.addr %s1341, 8
    %s1343 = scalar_lea.vmem [#allocation2], %s1342
    %v1344 = vld [vmem:[%s1343] sm:$0xff]
    %v1345 = vld [vmem:[%s1343 + $0x8] sm:$0xff]
    %v1346 = vld [vmem:[%s1343 + $0x10] sm:$0xff]
    %v1347 = vld [vmem:[%s1343 + $0x18] sm:$0xff]
    %1348 = vmatpush.msra.mxu0 %v445
    %1349 = vmatpush.msra.mxu0 %v441
    %1350 = vmatpush.msra.mxu0 %v437
    %1351 = vmatpush.msra.mxu0 %v433
    %1352 = vmatpush.msra.mxu0 %v429
    %1353 = vmatpush.msra.mxu0 %v425
    %1354 = vmatpush.msra.mxu0 %v421
    %1355 = vmatpush.msra.mxu0 %v417
    %1356 = vmatpush.msra.mxu0 %v413
    %1357 = vmatpush.msra.mxu0 %v409
    %1358 = vmatpush.msra.mxu0 %v405
    %1359 = vmatpush.msra.mxu0 %v401
    %1360 = vmatpush.msra.mxu0 %v397
    %1361 = vmatpush.msra.mxu0 %v393
    %1362 = vmatpush.msra.mxu0 %v389
    %1363 = vmatpush.msra.mxu0 %v385
    %1364 = vmatmul.f32.gmra.mxu0 %v1117
    %v1365 = vpop.f32.mrf.mxu0
    %v1366 = vadd.f32 0.0, %v1365
    %1367 = vdwg.mxu0
    %1368 = vmatpush.msra.mxu0 %v446
    %1369 = vmatpush.msra.mxu0 %v442
    %1370 = vmatpush.msra.mxu0 %v438
    %1371 = vmatpush.msra.mxu0 %v434
    %1372 = vmatpush.msra.mxu0 %v430
    %1373 = vmatpush.msra.mxu0 %v426
    %1374 = vmatpush.msra.mxu0 %v422
    %1375 = vmatpush.msra.mxu0 %v418
    %1376 = vmatpush.msra.mxu0 %v414
    %1377 = vmatpush.msra.mxu0 %v410
    %1378 = vmatpush.msra.mxu0 %v406
    %1379 = vmatpush.msra.mxu0 %v402
    %1380 = vmatpush.msra.mxu0 %v398
    %1381 = vmatpush.msra.mxu0 %v394
    %1382 = vmatpush.msra.mxu0 %v390
    %1383 = vmatpush.msra.mxu0 %v386
    %1384 = vmatmul.f32.gmra.mxu0 %v1117
    %v1385 = vpop.f32.mrf.mxu0
    %v1386 = vadd.f32 0.0, %v1385
    %1387 = vdwg.mxu0
    %1388 = vmatpush.msra.mxu0 %v447
    %1389 = vmatpush.msra.mxu0 %v443
    %1390 = vmatpush.msra.mxu0 %v439
    %1391 = vmatpush.msra.mxu0 %v435
    %1392 = vmatpush.msra.mxu0 %v431
    %1393 = vmatpush.msra.mxu0 %v427
    %1394 = vmatpush.msra.mxu0 %v423
    %1395 = vmatpush.msra.mxu0 %v419
    %1396 = vmatpush.msra.mxu0 %v415
    %1397 = vmatpush.msra.mxu0 %v411
    %1398 = vmatpush.msra.mxu0 %v407
    %1399 = vmatpush.msra.mxu0 %v403
    %1400 = vmatpush.msra.mxu0 %v399
    %1401 = vmatpush.msra.mxu0 %v395
    %1402 = vmatpush.msra.mxu0 %v391
    %1403 = vmatpush.msra.mxu0 %v387
    %1404 = vmatmul.f32.gmra.mxu0 %v1117
    %v1405 = vpop.f32.mrf.mxu0
    %v1406 = vadd.f32 0.0, %v1405
    %1407 = vdwg.mxu0
    %1408 = vmatpush.msra.mxu0 %v448
    %1409 = vmatpush.msra.mxu0 %v444
    %1410 = vmatpush.msra.mxu0 %v440
    %1411 = vmatpush.msra.mxu0 %v436
    %1412 = vmatpush.msra.mxu0 %v432
    %1413 = vmatpush.msra.mxu0 %v428
    %1414 = vmatpush.msra.mxu0 %v424
    %1415 = vmatpush.msra.mxu0 %v420
    %1416 = vmatpush.msra.mxu0 %v416
    %1417 = vmatpush.msra.mxu0 %v412
    %1418 = vmatpush.msra.mxu0 %v408
    %1419 = vmatpush.msra.mxu0 %v404
    %1420 = vmatpush.msra.mxu0 %v400
    %1421 = vmatpush.msra.mxu0 %v396
    %1422 = vmatpush.msra.mxu0 %v392
    %1423 = vmatpush.msra.mxu0 %v388
    %1424 = vmatmul.f32.gmra.mxu0 %v1117
    %v1425 = vpop.f32.mrf.mxu0
    %v1426 = vadd.f32 0.0, %v1425
    %1427 = vdwg.mxu0
    %v1428 = vadd.f32 %v1344, %v1366
    %v1429 = vadd.f32 %v1345, %v1386
    %v1430 = vadd.f32 %v1346, %v1406
    %v1431 = vadd.f32 %v1347, %v1426
    %v1432 = vxor.u32 %v1428, 2147483648
    %v1433 = vxor.u32 %v1429, 2147483648
    %v1434 = vxor.u32 %v1430, 2147483648
    %v1435 = vmul.f32 %v1432, 1.442695
    %v1436 = vpow.pop %v1435
    %v1437 = vmul.f32 %v1433, 1.442695
    %v1438 = vpow.pop %v1437
    %v1439 = vmul.f32 %v1434, 1.442695
    %v1440 = vpow.pop %v1439
    %v1441 = vadd.f32 %v1436, 1.0
    %v1442 = vadd.f32 %v1438, 1.0
    %v1443 = vadd.f32 %v1440, 1.0
    %v1444 = vrcp.pop %v1441
    %v1445 = vmul.f32 %v1441, %v1444
    %v1446 = vsub.f32 1.0, %v1445
    %v1447 = vmul.f32 %v1444, %v1446
    %v1448 = vadd.f32 %v1444, %v1447
    %vm1449 = vweird.f32 %v1441
    %vm1450 = vweird.f32 %v1444
    %vm1451 = vmor %vm1449, %vm1450
    %v1452 = vsel %vm1451, %v1444, %v1448
    %v1453 = vand.u32 2147483647, %v1441
    %vm1454 = vcmp.eq.f32.partialorder %v1453, 8.507059e+37
    %v1455 = vand.u32 %v1441, 2147483648
    %v1456 = vor.u32 1.1754944e-38, %v1455
    %v1457 = vsel %vm1454, %v1456, %v1452
    %v1458 = vmul.f32 1.0, %v1457
    %v1459 = vrcp.pop %v1442
    %v1460 = vmul.f32 %v1442, %v1459
    %v1461 = vsub.f32 1.0, %v1460
    %v1462 = vmul.f32 %v1459, %v1461
    %v1463 = vadd.f32 %v1459, %v1462
    %vm1464 = vweird.f32 %v1442
    %vm1465 = vweird.f32 %v1459
    %vm1466 = vmor %vm1464, %vm1465
    %v1467 = vsel %vm1466, %v1459, %v1463
    %v1468 = vand.u32 2147483647, %v1442
    %vm1469 = vcmp.eq.f32.partialorder %v1468, 8.507059e+37
    %v1470 = vand.u32 %v1442, 2147483648
    %v1471 = vor.u32 1.1754944e-38, %v1470
    %v1472 = vsel %vm1469, %v1471, %v1467
    %v1473 = vmul.f32 1.0, %v1472
    %v1474 = vrcp.pop %v1443
    %v1475 = vmul.f32 %v1443, %v1474
    %v1476 = vsub.f32 1.0, %v1475
    %v1477 = vmul.f32 %v1474, %v1476
    %v1478 = vadd.f32 %v1474, %v1477
    %vm1479 = vweird.f32 %v1443
    %vm1480 = vweird.f32 %v1474
    %vm1481 = vmor %vm1479, %vm1480
    %v1482 = vsel %vm1481, %v1474, %v1478
    %v1483 = vand.u32 2147483647, %v1443
    %vm1484 = vcmp.eq.f32.partialorder %v1483, 8.507059e+37
    %v1485 = vand.u32 %v1443, 2147483648
    %v1486 = vor.u32 1.1754944e-38, %v1485
    %v1487 = vsel %vm1484, %v1486, %v1482
    %v1488 = vmul.f32 1.0, %v1487
    %v1489 = vtanh.pop %v1431
    %v1490 = vmul.f32 %v1473, %v1115
    %v1491 = vmul.f32 %v1458, %v1489
    %v1492 = vadd.f32 %v1490, %v1491
    %v1493 = vtanh.pop %v1492
    %v1494 = vmul.f32 %v1488, %v1493
    %1495 = vmatpush.msra.mxu0 %v509
    %1496 = vmatpush.msra.mxu0 %v505
    %1497 = vmatpush.msra.mxu0 %v501
    %1498 = vmatpush.msra.mxu0 %v497
    %1499 = vmatpush.msra.mxu0 %v493
    %1500 = vmatpush.msra.mxu0 %v489
    %1501 = vmatpush.msra.mxu0 %v485
    %1502 = vmatpush.msra.mxu0 %v481
    %1503 = vmatpush.msra.mxu0 %v477
    %1504 = vmatpush.msra.mxu0 %v473
    %1505 = vmatpush.msra.mxu0 %v469
    %1506 = vmatpush.msra.mxu0 %v465
    %1507 = vmatpush.msra.mxu0 %v461
    %1508 = vmatpush.msra.mxu0 %v457
    %1509 = vmatpush.msra.mxu0 %v453
    %1510 = vmatpush.msra.mxu0 %v449
    %1511 = vmatmul.f32.gmra.mxu0 %v1494
    %v1512 = vpop.f32.mrf.mxu0
    %v1513 = vadd.f32 %v579, %v1512
    %1514 = vdwg.mxu0
    %1515 = vmatpush.msra.mxu0 %v573
    %1516 = vmatpush.msra.mxu0 %v569
    %1517 = vmatpush.msra.mxu0 %v565
    %1518 = vmatpush.msra.mxu0 %v561
    %1519 = vmatpush.msra.mxu0 %v557
    %1520 = vmatpush.msra.mxu0 %v553
    %1521 = vmatpush.msra.mxu0 %v549
    %1522 = vmatpush.msra.mxu0 %v545
    %1523 = vmatpush.msra.mxu0 %v541
    %1524 = vmatpush.msra.mxu0 %v537
    %1525 = vmatpush.msra.mxu0 %v533
    %1526 = vmatpush.msra.mxu0 %v529
    %1527 = vmatpush.msra.mxu0 %v525
    %1528 = vmatpush.msra.mxu0 %v521
    %1529 = vmatpush.msra.mxu0 %v517
    %1530 = vmatpush.msra.mxu0 %v513
    %1531 = vmatmul.f32.gmra.mxu0 %v1340
    %v1532 = vpop.f32.mrf.mxu0
    %v1533 = vadd.f32 %v1513, %v1532
    %1534 = vdwg.mxu0
    %1535 = vmatpush.msra.mxu0 %v510
    %1536 = vmatpush.msra.mxu0 %v506
    %1537 = vmatpush.msra.mxu0 %v502
    %1538 = vmatpush.msra.mxu0 %v498
    %1539 = vmatpush.msra.mxu0 %v494
    %1540 = vmatpush.msra.mxu0 %v490
    %1541 = vmatpush.msra.mxu0 %v486
    %1542 = vmatpush.msra.mxu0 %v482
    %1543 = vmatpush.msra.mxu0 %v478
    %1544 = vmatpush.msra.mxu0 %v474
    %1545 = vmatpush.msra.mxu0 %v470
    %1546 = vmatpush.msra.mxu0 %v466
    %1547 = vmatpush.msra.mxu0 %v462
    %1548 = vmatpush.msra.mxu0 %v458
    %1549 = vmatpush.msra.mxu0 %v454
    %1550 = vmatpush.msra.mxu0 %v450
    %1551 = vmatmul.f32.gmra.mxu0 %v1494
    %v1552 = vpop.f32.mrf.mxu0
    %v1553 = vadd.f32 %v580, %v1552
    %1554 = vdwg.mxu0
    %1555 = vmatpush.msra.mxu0 %v574
    %1556 = vmatpush.msra.mxu0 %v570
    %1557 = vmatpush.msra.mxu0 %v566
    %1558 = vmatpush.msra.mxu0 %v562
    %1559 = vmatpush.msra.mxu0 %v558
    %1560 = vmatpush.msra.mxu0 %v554
    %1561 = vmatpush.msra.mxu0 %v550
    %1562 = vmatpush.msra.mxu0 %v546
    %1563 = vmatpush.msra.mxu0 %v542
    %1564 = vmatpush.msra.mxu0 %v538
    %1565 = vmatpush.msra.mxu0 %v534
    %1566 = vmatpush.msra.mxu0 %v530
    %1567 = vmatpush.msra.mxu0 %v526
    %1568 = vmatpush.msra.mxu0 %v522
    %1569 = vmatpush.msra.mxu0 %v518
    %1570 = vmatpush.msra.mxu0 %v514
    %1571 = vmatmul.f32.gmra.mxu0 %v1340
    %v1572 = vpop.f32.mrf.mxu0
    %v1573 = vadd.f32 %v1553, %v1572
    %1574 = vdwg.mxu0
    %1575 = vmatpush.msra.mxu0 %v511
    %1576 = vmatpush.msra.mxu0 %v507
    %1577 = vmatpush.msra.mxu0 %v503
    %1578 = vmatpush.msra.mxu0 %v499
    %1579 = vmatpush.msra.mxu0 %v495
    %1580 = vmatpush.msra.mxu0 %v491
    %1581 = vmatpush.msra.mxu0 %v487
    %1582 = vmatpush.msra.mxu0 %v483
    %1583 = vmatpush.msra.mxu0 %v479
    %1584 = vmatpush.msra.mxu0 %v475
    %1585 = vmatpush.msra.mxu0 %v471
    %1586 = vmatpush.msra.mxu0 %v467
    %1587 = vmatpush.msra.mxu0 %v463
    %1588 = vmatpush.msra.mxu0 %v459
    %1589 = vmatpush.msra.mxu0 %v455
    %1590 = vmatpush.msra.mxu0 %v451
    %1591 = vmatmul.f32.gmra.mxu0 %v1494
    %v1592 = vpop.f32.mrf.mxu0
    %v1593 = vadd.f32 %v581, %v1592
    %1594 = vdwg.mxu0
    %1595 = vmatpush.msra.mxu0 %v575
    %1596 = vmatpush.msra.mxu0 %v571
    %1597 = vmatpush.msra.mxu0 %v567
    %1598 = vmatpush.msra.mxu0 %v563
    %1599 = vmatpush.msra.mxu0 %v559
    %1600 = vmatpush.msra.mxu0 %v555
    %1601 = vmatpush.msra.mxu0 %v551
    %1602 = vmatpush.msra.mxu0 %v547
    %1603 = vmatpush.msra.mxu0 %v543
    %1604 = vmatpush.msra.mxu0 %v539
    %1605 = vmatpush.msra.mxu0 %v535
    %1606 = vmatpush.msra.mxu0 %v531
    %1607 = vmatpush.msra.mxu0 %v527
    %1608 = vmatpush.msra.mxu0 %v523
    %1609 = vmatpush.msra.mxu0 %v519
    %1610 = vmatpush.msra.mxu0 %v515
    %1611 = vmatmul.f32.gmra.mxu0 %v1340
    %v1612 = vpop.f32.mrf.mxu0
    %v1613 = vadd.f32 %v1593, %v1612
    %1614 = vdwg.mxu0
    %1615 = vmatpush.msra.mxu0 %v512
    %1616 = vmatpush.msra.mxu0 %v508
    %1617 = vmatpush.msra.mxu0 %v504
    %1618 = vmatpush.msra.mxu0 %v500
    %1619 = vmatpush.msra.mxu0 %v496
    %1620 = vmatpush.msra.mxu0 %v492
    %1621 = vmatpush.msra.mxu0 %v488
    %1622 = vmatpush.msra.mxu0 %v484
    %1623 = vmatpush.msra.mxu0 %v480
    %1624 = vmatpush.msra.mxu0 %v476
    %1625 = vmatpush.msra.mxu0 %v472
    %1626 = vmatpush.msra.mxu0 %v468
    %1627 = vmatpush.msra.mxu0 %v464
    %1628 = vmatpush.msra.mxu0 %v460
    %1629 = vmatpush.msra.mxu0 %v456
    %1630 = vmatpush.msra.mxu0 %v452
    %1631 = vmatmul.f32.gmra.mxu0 %v1494
    %v1632 = vpop.f32.mrf.mxu0
    %v1633 = vadd.f32 %v582, %v1632
    %1634 = vdwg.mxu0
    %1635 = vmatpush.msra.mxu0 %v576
    %1636 = vmatpush.msra.mxu0 %v572
    %1637 = vmatpush.msra.mxu0 %v568
    %1638 = vmatpush.msra.mxu0 %v564
    %1639 = vmatpush.msra.mxu0 %v560
    %1640 = vmatpush.msra.mxu0 %v556
    %1641 = vmatpush.msra.mxu0 %v552
    %1642 = vmatpush.msra.mxu0 %v548
    %1643 = vmatpush.msra.mxu0 %v544
    %1644 = vmatpush.msra.mxu0 %v540
    %1645 = vmatpush.msra.mxu0 %v536
    %1646 = vmatpush.msra.mxu0 %v532
    %1647 = vmatpush.msra.mxu0 %v528
    %1648 = vmatpush.msra.mxu0 %v524
    %1649 = vmatpush.msra.mxu0 %v520
    %1650 = vmatpush.msra.mxu0 %v516
    %1651 = vmatmul.f32.gmra.mxu0 %v1340
    %v1652 = vpop.f32.mrf.mxu0
    %v1653 = vadd.f32 %v1633, %v1652
    %1654 = vdwg.mxu0
    %v1655 = vxor.u32 %v1533, 2147483648
    %v1656 = vxor.u32 %v1573, 2147483648
    %v1657 = vxor.u32 %v1613, 2147483648
    %v1658 = vmul.f32 %v1655, 1.442695
    %v1659 = vpow.pop %v1658
    %v1660 = vmul.f32 %v1656, 1.442695
    %v1661 = vpow.pop %v1660
    %v1662 = vmul.f32 %v1657, 1.442695
    %v1663 = vpow.pop %v1662
    %v1664 = vadd.f32 %v1659, 1.0
    %v1665 = vadd.f32 %v1661, 1.0
    %v1666 = vadd.f32 %v1663, 1.0
    %v1667 = vrcp.pop %v1664
    %v1668 = vmul.f32 %v1664, %v1667
    %v1669 = vsub.f32 1.0, %v1668
    %v1670 = vmul.f32 %v1667, %v1669
    %v1671 = vadd.f32 %v1667, %v1670
    %vm1672 = vweird.f32 %v1664
    %vm1673 = vweird.f32 %v1667
    %vm1674 = vmor %vm1672, %vm1673
    %v1675 = vsel %vm1674, %v1667, %v1671
    %v1676 = vand.u32 2147483647, %v1664
    %vm1677 = vcmp.eq.f32.partialorder %v1676, 8.507059e+37
    %v1678 = vand.u32 %v1664, 2147483648
    %v1679 = vor.u32 1.1754944e-38, %v1678
    %v1680 = vsel %vm1677, %v1679, %v1675
    %v1681 = vmul.f32 1.0, %v1680
    %v1682 = vrcp.pop %v1665
    %v1683 = vmul.f32 %v1665, %v1682
    %v1684 = vsub.f32 1.0, %v1683
    %v1685 = vmul.f32 %v1682, %v1684
    %v1686 = vadd.f32 %v1682, %v1685
    %vm1687 = vweird.f32 %v1665
    %vm1688 = vweird.f32 %v1682
    %vm1689 = vmor %vm1687, %vm1688
    %v1690 = vsel %vm1689, %v1682, %v1686
    %v1691 = vand.u32 2147483647, %v1665
    %vm1692 = vcmp.eq.f32.partialorder %v1691, 8.507059e+37
    %v1693 = vand.u32 %v1665, 2147483648
    %v1694 = vor.u32 1.1754944e-38, %v1693
    %v1695 = vsel %vm1692, %v1694, %v1690
    %v1696 = vmul.f32 1.0, %v1695
    %v1697 = vrcp.pop %v1666
    %v1698 = vmul.f32 %v1666, %v1697
    %v1699 = vsub.f32 1.0, %v1698
    %v1700 = vmul.f32 %v1697, %v1699
    %v1701 = vadd.f32 %v1697, %v1700
    %vm1702 = vweird.f32 %v1666
    %vm1703 = vweird.f32 %v1697
    %vm1704 = vmor %vm1702, %vm1703
    %v1705 = vsel %vm1704, %v1697, %v1701
    %v1706 = vand.u32 2147483647, %v1666
    %vm1707 = vcmp.eq.f32.partialorder %v1706, 8.507059e+37
    %v1708 = vand.u32 %v1666, 2147483648
    %v1709 = vor.u32 1.1754944e-38, %v1708
    %v1710 = vsel %vm1707, %v1709, %v1705
    %v1711 = vmul.f32 1.0, %v1710
    %v1712 = vtanh.pop %v1653
    %v1713 = vmul.f32 %v1696, %v1338
    %v1714 = vmul.f32 %v1681, %v1712
    %v1715 = vadd.f32 %v1713, %v1714
    %v1716 = vtanh.pop %v1715
    %v1717 = vmul.f32 %v1711, %v1716
    %s1718 = smul.u32 3, 4
    %s1719 = smul.addr %s1718, 8
    %s1720 = scalar_lea.vmem [#allocation2], %s1719
    %v1721 = vld [vmem:[%s1720] sm:$0xff]
    %v1722 = vld [vmem:[%s1720 + $0x8] sm:$0xff]
    %v1723 = vld [vmem:[%s1720 + $0x10] sm:$0xff]
    %v1724 = vld [vmem:[%s1720 + $0x18] sm:$0xff]
    %1725 = vmatpush.msra.mxu0 %v445
    %1726 = vmatpush.msra.mxu0 %v441
    %1727 = vmatpush.msra.mxu0 %v437
    %1728 = vmatpush.msra.mxu0 %v433
    %1729 = vmatpush.msra.mxu0 %v429
    %1730 = vmatpush.msra.mxu0 %v425
    %1731 = vmatpush.msra.mxu0 %v421
    %1732 = vmatpush.msra.mxu0 %v417
    %1733 = vmatpush.msra.mxu0 %v413
    %1734 = vmatpush.msra.mxu0 %v409
    %1735 = vmatpush.msra.mxu0 %v405
    %1736 = vmatpush.msra.mxu0 %v401
    %1737 = vmatpush.msra.mxu0 %v397
    %1738 = vmatpush.msra.mxu0 %v393
    %1739 = vmatpush.msra.mxu0 %v389
    %1740 = vmatpush.msra.mxu0 %v385
    %1741 = vmatmul.f32.gmra.mxu0 %v1494
    %v1742 = vpop.f32.mrf.mxu0
    %v1743 = vadd.f32 0.0, %v1742
    %1744 = vdwg.mxu0
    %1745 = vmatpush.msra.mxu0 %v446
    %1746 = vmatpush.msra.mxu0 %v442
    %1747 = vmatpush.msra.mxu0 %v438
    %1748 = vmatpush.msra.mxu0 %v434
    %1749 = vmatpush.msra.mxu0 %v430
    %1750 = vmatpush.msra.mxu0 %v426
    %1751 = vmatpush.msra.mxu0 %v422
    %1752 = vmatpush.msra.mxu0 %v418
    %1753 = vmatpush.msra.mxu0 %v414
    %1754 = vmatpush.msra.mxu0 %v410
    %1755 = vmatpush.msra.mxu0 %v406
    %1756 = vmatpush.msra.mxu0 %v402
    %1757 = vmatpush.msra.mxu0 %v398
    %1758 = vmatpush.msra.mxu0 %v394
    %1759 = vmatpush.msra.mxu0 %v390
    %1760 = vmatpush.msra.mxu0 %v386
    %1761 = vmatmul.f32.gmra.mxu0 %v1494
    %v1762 = vpop.f32.mrf.mxu0
    %v1763 = vadd.f32 0.0, %v1762
    %1764 = vdwg.mxu0
    %1765 = vmatpush.msra.mxu0 %v447
    %1766 = vmatpush.msra.mxu0 %v443
    %1767 = vmatpush.msra.mxu0 %v439
    %1768 = vmatpush.msra.mxu0 %v435
    %1769 = vmatpush.msra.mxu0 %v431
    %1770 = vmatpush.msra.mxu0 %v427
    %1771 = vmatpush.msra.mxu0 %v423
    %1772 = vmatpush.msra.mxu0 %v419
    %1773 = vmatpush.msra.mxu0 %v415
    %1774 = vmatpush.msra.mxu0 %v411
    %1775 = vmatpush.msra.mxu0 %v407
    %1776 = vmatpush.msra.mxu0 %v403
    %1777 = vmatpush.msra.mxu0 %v399
    %1778 = vmatpush.msra.mxu0 %v395
    %1779 = vmatpush.msra.mxu0 %v391
    %1780 = vmatpush.msra.mxu0 %v387
    %1781 = vmatmul.f32.gmra.mxu0 %v1494
    %v1782 = vpop.f32.mrf.mxu0
    %v1783 = vadd.f32 0.0, %v1782
    %1784 = vdwg.mxu0
    %1785 = vmatpush.msra.mxu0 %v448
    %1786 = vmatpush.msra.mxu0 %v444
    %1787 = vmatpush.msra.mxu0 %v440
    %1788 = vmatpush.msra.mxu0 %v436
    %1789 = vmatpush.msra.mxu0 %v432
    %1790 = vmatpush.msra.mxu0 %v428
    %1791 = vmatpush.msra.mxu0 %v424
    %1792 = vmatpush.msra.mxu0 %v420
    %1793 = vmatpush.msra.mxu0 %v416
    %1794 = vmatpush.msra.mxu0 %v412
    %1795 = vmatpush.msra.mxu0 %v408
    %1796 = vmatpush.msra.mxu0 %v404
    %1797 = vmatpush.msra.mxu0 %v400
    %1798 = vmatpush.msra.mxu0 %v396
    %1799 = vmatpush.msra.mxu0 %v392
    %1800 = vmatpush.msra.mxu0 %v388
    %1801 = vmatmul.f32.gmra.mxu0 %v1494
    %v1802 = vpop.f32.mrf.mxu0
    %v1803 = vadd.f32 0.0, %v1802
    %1804 = vdwg.mxu0
    %v1805 = vadd.f32 %v1721, %v1743
    %v1806 = vadd.f32 %v1722, %v1763
    %v1807 = vadd.f32 %v1723, %v1783
    %v1808 = vadd.f32 %v1724, %v1803
    %v1809 = vxor.u32 %v1805, 2147483648
    %v1810 = vxor.u32 %v1806, 2147483648
    %v1811 = vxor.u32 %v1807, 2147483648
    %v1812 = vmul.f32 %v1809, 1.442695
    %v1813 = vpow.pop %v1812
    %v1814 = vmul.f32 %v1810, 1.442695
    %v1815 = vpow.pop %v1814
    %v1816 = vmul.f32 %v1811, 1.442695
    %v1817 = vpow.pop %v1816
    %v1818 = vadd.f32 %v1813, 1.0
    %v1819 = vadd.f32 %v1815, 1.0
    %v1820 = vadd.f32 %v1817, 1.0
    %v1821 = vrcp.pop %v1818
    %v1822 = vmul.f32 %v1818, %v1821
    %v1823 = vsub.f32 1.0, %v1822
    %v1824 = vmul.f32 %v1821, %v1823
    %v1825 = vadd.f32 %v1821, %v1824
    %vm1826 = vweird.f32 %v1818
    %vm1827 = vweird.f32 %v1821
    %vm1828 = vmor %vm1826, %vm1827
    %v1829 = vsel %vm1828, %v1821, %v1825
    %v1830 = vand.u32 2147483647, %v1818
    %vm1831 = vcmp.eq.f32.partialorder %v1830, 8.507059e+37
    %v1832 = vand.u32 %v1818, 2147483648
    %v1833 = vor.u32 1.1754944e-38, %v1832
    %v1834 = vsel %vm1831, %v1833, %v1829
    %v1835 = vmul.f32 1.0, %v1834
    %v1836 = vrcp.pop %v1819
    %v1837 = vmul.f32 %v1819, %v1836
    %v1838 = vsub.f32 1.0, %v1837
    %v1839 = vmul.f32 %v1836, %v1838
    %v1840 = vadd.f32 %v1836, %v1839
    %vm1841 = vweird.f32 %v1819
    %vm1842 = vweird.f32 %v1836
    %vm1843 = vmor %vm1841, %vm1842
    %v1844 = vsel %vm1843, %v1836, %v1840
    %v1845 = vand.u32 2147483647, %v1819
    %vm1846 = vcmp.eq.f32.partialorder %v1845, 8.507059e+37
    %v1847 = vand.u32 %v1819, 2147483648
    %v1848 = vor.u32 1.1754944e-38, %v1847
    %v1849 = vsel %vm1846, %v1848, %v1844
    %v1850 = vmul.f32 1.0, %v1849
    %v1851 = vrcp.pop %v1820
    %v1852 = vmul.f32 %v1820, %v1851
    %v1853 = vsub.f32 1.0, %v1852
    %v1854 = vmul.f32 %v1851, %v1853
    %v1855 = vadd.f32 %v1851, %v1854
    %vm1856 = vweird.f32 %v1820
    %vm1857 = vweird.f32 %v1851
    %vm1858 = vmor %vm1856, %vm1857
    %v1859 = vsel %vm1858, %v1851, %v1855
    %v1860 = vand.u32 2147483647, %v1820
    %vm1861 = vcmp.eq.f32.partialorder %v1860, 8.507059e+37
    %v1862 = vand.u32 %v1820, 2147483648
    %v1863 = vor.u32 1.1754944e-38, %v1862
    %v1864 = vsel %vm1861, %v1863, %v1859
    %v1865 = vmul.f32 1.0, %v1864
    %v1866 = vtanh.pop %v1808
    %v1867 = vmul.f32 %v1850, %v1492
    %v1868 = vmul.f32 %v1835, %v1866
    %v1869 = vadd.f32 %v1867, %v1868
    %v1870 = vtanh.pop %v1869
    %v1871 = vmul.f32 %v1865, %v1870
    %1872 = vmatpush.msra.mxu0 %v509
    %1873 = vmatpush.msra.mxu0 %v505
    %1874 = vmatpush.msra.mxu0 %v501
    %1875 = vmatpush.msra.mxu0 %v497
    %1876 = vmatpush.msra.mxu0 %v493
    %1877 = vmatpush.msra.mxu0 %v489
    %1878 = vmatpush.msra.mxu0 %v485
    %1879 = vmatpush.msra.mxu0 %v481
    %1880 = vmatpush.msra.mxu0 %v477
    %1881 = vmatpush.msra.mxu0 %v473
    %1882 = vmatpush.msra.mxu0 %v469
    %1883 = vmatpush.msra.mxu0 %v465
    %1884 = vmatpush.msra.mxu0 %v461
    %1885 = vmatpush.msra.mxu0 %v457
    %1886 = vmatpush.msra.mxu0 %v453
    %1887 = vmatpush.msra.mxu0 %v449
    %1888 = vmatmul.f32.gmra.mxu0 %v1871
    %v1889 = vpop.f32.mrf.mxu0
    %v1890 = vadd.f32 %v579, %v1889
    %1891 = vdwg.mxu0
    %1892 = vmatpush.msra.mxu0 %v573
    %1893 = vmatpush.msra.mxu0 %v569
    %1894 = vmatpush.msra.mxu0 %v565
    %1895 = vmatpush.msra.mxu0 %v561
    %1896 = vmatpush.msra.mxu0 %v557
    %1897 = vmatpush.msra.mxu0 %v553
    %1898 = vmatpush.msra.mxu0 %v549
    %1899 = vmatpush.msra.mxu0 %v545
    %1900 = vmatpush.msra.mxu0 %v541
    %1901 = vmatpush.msra.mxu0 %v537
    %1902 = vmatpush.msra.mxu0 %v533
    %1903 = vmatpush.msra.mxu0 %v529
    %1904 = vmatpush.msra.mxu0 %v525
    %1905 = vmatpush.msra.mxu0 %v521
    %1906 = vmatpush.msra.mxu0 %v517
    %1907 = vmatpush.msra.mxu0 %v513
    %1908 = vmatmul.f32.gmra.mxu0 %v1717
    %v1909 = vpop.f32.mrf.mxu0
    %v1910 = vadd.f32 %v1890, %v1909
    %1911 = vdwg.mxu0
    %1912 = vmatpush.msra.mxu0 %v510
    %1913 = vmatpush.msra.mxu0 %v506
    %1914 = vmatpush.msra.mxu0 %v502
    %1915 = vmatpush.msra.mxu0 %v498
    %1916 = vmatpush.msra.mxu0 %v494
    %1917 = vmatpush.msra.mxu0 %v490
    %1918 = vmatpush.msra.mxu0 %v486
    %1919 = vmatpush.msra.mxu0 %v482
    %1920 = vmatpush.msra.mxu0 %v478
    %1921 = vmatpush.msra.mxu0 %v474
    %1922 = vmatpush.msra.mxu0 %v470
    %1923 = vmatpush.msra.mxu0 %v466
    %1924 = vmatpush.msra.mxu0 %v462
    %1925 = vmatpush.msra.mxu0 %v458
    %1926 = vmatpush.msra.mxu0 %v454
    %1927 = vmatpush.msra.mxu0 %v450
    %1928 = vmatmul.f32.gmra.mxu0 %v1871
    %v1929 = vpop.f32.mrf.mxu0
    %v1930 = vadd.f32 %v580, %v1929
    %1931 = vdwg.mxu0
    %1932 = vmatpush.msra.mxu0 %v574
    %1933 = vmatpush.msra.mxu0 %v570
    %1934 = vmatpush.msra.mxu0 %v566
    %1935 = vmatpush.msra.mxu0 %v562
    %1936 = vmatpush.msra.mxu0 %v558
    %1937 = vmatpush.msra.mxu0 %v554
    %1938 = vmatpush.msra.mxu0 %v550
    %1939 = vmatpush.msra.mxu0 %v546
    %1940 = vmatpush.msra.mxu0 %v542
    %1941 = vmatpush.msra.mxu0 %v538
    %1942 = vmatpush.msra.mxu0 %v534
    %1943 = vmatpush.msra.mxu0 %v530
    %1944 = vmatpush.msra.mxu0 %v526
    %1945 = vmatpush.msra.mxu0 %v522
    %1946 = vmatpush.msra.mxu0 %v518
    %1947 = vmatpush.msra.mxu0 %v514
    %1948 = vmatmul.f32.gmra.mxu0 %v1717
    %v1949 = vpop.f32.mrf.mxu0
    %v1950 = vadd.f32 %v1930, %v1949
    %1951 = vdwg.mxu0
    %1952 = vmatpush.msra.mxu0 %v511
    %1953 = vmatpush.msra.mxu0 %v507
    %1954 = vmatpush.msra.mxu0 %v503
    %1955 = vmatpush.msra.mxu0 %v499
    %1956 = vmatpush.msra.mxu0 %v495
    %1957 = vmatpush.msra.mxu0 %v491
    %1958 = vmatpush.msra.mxu0 %v487
    %1959 = vmatpush.msra.mxu0 %v483
    %1960 = vmatpush.msra.mxu0 %v479
    %1961 = vmatpush.msra.mxu0 %v475
    %1962 = vmatpush.msra.mxu0 %v471
    %1963 = vmatpush.msra.mxu0 %v467
    %1964 = vmatpush.msra.mxu0 %v463
    %1965 = vmatpush.msra.mxu0 %v459
    %1966 = vmatpush.msra.mxu0 %v455
    %1967 = vmatpush.msra.mxu0 %v451
    %1968 = vmatmul.f32.gmra.mxu0 %v1871
    %v1969 = vpop.f32.mrf.mxu0
    %v1970 = vadd.f32 %v581, %v1969
    %1971 = vdwg.mxu0
    %1972 = vmatpush.msra.mxu0 %v575
    %1973 = vmatpush.msra.mxu0 %v571
    %1974 = vmatpush.msra.mxu0 %v567
    %1975 = vmatpush.msra.mxu0 %v563
    %1976 = vmatpush.msra.mxu0 %v559
    %1977 = vmatpush.msra.mxu0 %v555
    %1978 = vmatpush.msra.mxu0 %v551
    %1979 = vmatpush.msra.mxu0 %v547
    %1980 = vmatpush.msra.mxu0 %v543
    %1981 = vmatpush.msra.mxu0 %v539
    %1982 = vmatpush.msra.mxu0 %v535
    %1983 = vmatpush.msra.mxu0 %v531
    %1984 = vmatpush.msra.mxu0 %v527
    %1985 = vmatpush.msra.mxu0 %v523
    %1986 = vmatpush.msra.mxu0 %v519
    %1987 = vmatpush.msra.mxu0 %v515
    %1988 = vmatmul.f32.gmra.mxu0 %v1717
    %v1989 = vpop.f32.mrf.mxu0
    %v1990 = vadd.f32 %v1970, %v1989
    %1991 = vdwg.mxu0
    %1992 = vmatpush.msra.mxu0 %v512
    %1993 = vmatpush.msra.mxu0 %v508
    %1994 = vmatpush.msra.mxu0 %v504
    %1995 = vmatpush.msra.mxu0 %v500
    %1996 = vmatpush.msra.mxu0 %v496
    %1997 = vmatpush.msra.mxu0 %v492
    %1998 = vmatpush.msra.mxu0 %v488
    %1999 = vmatpush.msra.mxu0 %v484
    %2000 = vmatpush.msra.mxu0 %v480
    %2001 = vmatpush.msra.mxu0 %v476
    %2002 = vmatpush.msra.mxu0 %v472
    %2003 = vmatpush.msra.mxu0 %v468
    %2004 = vmatpush.msra.mxu0 %v464
    %2005 = vmatpush.msra.mxu0 %v460
    %2006 = vmatpush.msra.mxu0 %v456
    %2007 = vmatpush.msra.mxu0 %v452
    %2008 = vmatmul.f32.gmra.mxu0 %v1871
    %v2009 = vpop.f32.mrf.mxu0
    %v2010 = vadd.f32 %v582, %v2009
    %2011 = vdwg.mxu0
    %2012 = vmatpush.msra.mxu0 %v576
    %2013 = vmatpush.msra.mxu0 %v572
    %2014 = vmatpush.msra.mxu0 %v568
    %2015 = vmatpush.msra.mxu0 %v564
    %2016 = vmatpush.msra.mxu0 %v560
    %2017 = vmatpush.msra.mxu0 %v556
    %2018 = vmatpush.msra.mxu0 %v552
    %2019 = vmatpush.msra.mxu0 %v548
    %2020 = vmatpush.msra.mxu0 %v544
    %2021 = vmatpush.msra.mxu0 %v540
    %2022 = vmatpush.msra.mxu0 %v536
    %2023 = vmatpush.msra.mxu0 %v532
    %2024 = vmatpush.msra.mxu0 %v528
    %2025 = vmatpush.msra.mxu0 %v524
    %2026 = vmatpush.msra.mxu0 %v520
    %2027 = vmatpush.msra.mxu0 %v516
    %2028 = vmatmul.f32.gmra.mxu0 %v1717
    %v2029 = vpop.f32.mrf.mxu0
    %v2030 = vadd.f32 %v2010, %v2029
    %2031 = vdwg.mxu0
    %v2032 = vxor.u32 %v1910, 2147483648
    %v2033 = vxor.u32 %v1950, 2147483648
    %v2034 = vxor.u32 %v1990, 2147483648
    %v2035 = vmul.f32 %v2032, 1.442695
    %v2036 = vpow.pop %v2035
    %v2037 = vmul.f32 %v2033, 1.442695
    %v2038 = vpow.pop %v2037
    %v2039 = vmul.f32 %v2034, 1.442695
    %v2040 = vpow.pop %v2039
    %v2041 = vadd.f32 %v2036, 1.0
    %v2042 = vadd.f32 %v2038, 1.0
    %v2043 = vadd.f32 %v2040, 1.0
    %v2044 = vrcp.pop %v2041
    %v2045 = vmul.f32 %v2041, %v2044
    %v2046 = vsub.f32 1.0, %v2045
    %v2047 = vmul.f32 %v2044, %v2046
    %v2048 = vadd.f32 %v2044, %v2047
    %vm2049 = vweird.f32 %v2041
    %vm2050 = vweird.f32 %v2044
    %vm2051 = vmor %vm2049, %vm2050
    %v2052 = vsel %vm2051, %v2044, %v2048
    %v2053 = vand.u32 2147483647, %v2041
    %vm2054 = vcmp.eq.f32.partialorder %v2053, 8.507059e+37
    %v2055 = vand.u32 %v2041, 2147483648
    %v2056 = vor.u32 1.1754944e-38, %v2055
    %v2057 = vsel %vm2054, %v2056, %v2052
    %v2058 = vmul.f32 1.0, %v2057
    %v2059 = vrcp.pop %v2042
    %v2060 = vmul.f32 %v2042, %v2059
    %v2061 = vsub.f32 1.0, %v2060
    %v2062 = vmul.f32 %v2059, %v2061
    %v2063 = vadd.f32 %v2059, %v2062
    %vm2064 = vweird.f32 %v2042
    %vm2065 = vweird.f32 %v2059
    %vm2066 = vmor %vm2064, %vm2065
    %v2067 = vsel %vm2066, %v2059, %v2063
    %v2068 = vand.u32 2147483647, %v2042
    %vm2069 = vcmp.eq.f32.partialorder %v2068, 8.507059e+37
    %v2070 = vand.u32 %v2042, 2147483648
    %v2071 = vor.u32 1.1754944e-38, %v2070
    %v2072 = vsel %vm2069, %v2071, %v2067
    %v2073 = vmul.f32 1.0, %v2072
    %v2074 = vrcp.pop %v2043
    %v2075 = vmul.f32 %v2043, %v2074
    %v2076 = vsub.f32 1.0, %v2075
    %v2077 = vmul.f32 %v2074, %v2076
    %v2078 = vadd.f32 %v2074, %v2077
    %vm2079 = vweird.f32 %v2043
    %vm2080 = vweird.f32 %v2074
    %vm2081 = vmor %vm2079, %vm2080
    %v2082 = vsel %vm2081, %v2074, %v2078
    %v2083 = vand.u32 2147483647, %v2043
    %vm2084 = vcmp.eq.f32.partialorder %v2083, 8.507059e+37
    %v2085 = vand.u32 %v2043, 2147483648
    %v2086 = vor.u32 1.1754944e-38, %v2085
    %v2087 = vsel %vm2084, %v2086, %v2082
    %v2088 = vmul.f32 1.0, %v2087
    %v2089 = vtanh.pop %v2030
    %v2090 = vmul.f32 %v2073, %v1715
    %v2091 = vmul.f32 %v2058, %v2089
    %v2092 = vadd.f32 %v2090, %v2091
    %v2093 = vtanh.pop %v2092
    %v2094 = vmul.f32 %v2088, %v2093
    %s2095 = smul.u32 4, 4
    %s2096 = smul.addr %s2095, 8
    %s2097 = scalar_lea.vmem [#allocation2], %s2096
    %v2098 = vld [vmem:[%s2097] sm:$0xff]
    %v2099 = vld [vmem:[%s2097 + $0x8] sm:$0xff]
    %v2100 = vld [vmem:[%s2097 + $0x10] sm:$0xff]
    %v2101 = vld [vmem:[%s2097 + $0x18] sm:$0xff]
    %2102 = vmatpush.msra.mxu0 %v445
    %2103 = vmatpush.msra.mxu0 %v441
    %2104 = vmatpush.msra.mxu0 %v437
    %2105 = vmatpush.msra.mxu0 %v433
    %2106 = vmatpush.msra.mxu0 %v429
    %2107 = vmatpush.msra.mxu0 %v425
    %2108 = vmatpush.msra.mxu0 %v421
    %2109 = vmatpush.msra.mxu0 %v417
    %2110 = vmatpush.msra.mxu0 %v413
    %2111 = vmatpush.msra.mxu0 %v409
    %2112 = vmatpush.msra.mxu0 %v405
    %2113 = vmatpush.msra.mxu0 %v401
    %2114 = vmatpush.msra.mxu0 %v397
    %2115 = vmatpush.msra.mxu0 %v393
    %2116 = vmatpush.msra.mxu0 %v389
    %2117 = vmatpush.msra.mxu0 %v385
    %2118 = vmatmul.f32.gmra.mxu0 %v1871
    %v2119 = vpop.f32.mrf.mxu0
    %v2120 = vadd.f32 0.0, %v2119
    %2121 = vdwg.mxu0
    %2122 = vmatpush.msra.mxu0 %v446
    %2123 = vmatpush.msra.mxu0 %v442
    %2124 = vmatpush.msra.mxu0 %v438
    %2125 = vmatpush.msra.mxu0 %v434
    %2126 = vmatpush.msra.mxu0 %v430
    %2127 = vmatpush.msra.mxu0 %v426
    %2128 = vmatpush.msra.mxu0 %v422
    %2129 = vmatpush.msra.mxu0 %v418
    %2130 = vmatpush.msra.mxu0 %v414
    %2131 = vmatpush.msra.mxu0 %v410
    %2132 = vmatpush.msra.mxu0 %v406
    %2133 = vmatpush.msra.mxu0 %v402
    %2134 = vmatpush.msra.mxu0 %v398
    %2135 = vmatpush.msra.mxu0 %v394
    %2136 = vmatpush.msra.mxu0 %v390
    %2137 = vmatpush.msra.mxu0 %v386
    %2138 = vmatmul.f32.gmra.mxu0 %v1871
    %v2139 = vpop.f32.mrf.mxu0
    %v2140 = vadd.f32 0.0, %v2139
    %2141 = vdwg.mxu0
    %2142 = vmatpush.msra.mxu0 %v447
    %2143 = vmatpush.msra.mxu0 %v443
    %2144 = vmatpush.msra.mxu0 %v439
    %2145 = vmatpush.msra.mxu0 %v435
    %2146 = vmatpush.msra.mxu0 %v431
    %2147 = vmatpush.msra.mxu0 %v427
    %2148 = vmatpush.msra.mxu0 %v423
    %2149 = vmatpush.msra.mxu0 %v419
    %2150 = vmatpush.msra.mxu0 %v415
    %2151 = vmatpush.msra.mxu0 %v411
    %2152 = vmatpush.msra.mxu0 %v407
    %2153 = vmatpush.msra.mxu0 %v403
    %2154 = vmatpush.msra.mxu0 %v399
    %2155 = vmatpush.msra.mxu0 %v395
    %2156 = vmatpush.msra.mxu0 %v391
    %2157 = vmatpush.msra.mxu0 %v387
    %2158 = vmatmul.f32.gmra.mxu0 %v1871
    %v2159 = vpop.f32.mrf.mxu0
    %v2160 = vadd.f32 0.0, %v2159
    %2161 = vdwg.mxu0
    %2162 = vmatpush.msra.mxu0 %v448
    %2163 = vmatpush.msra.mxu0 %v444
    %2164 = vmatpush.msra.mxu0 %v440
    %2165 = vmatpush.msra.mxu0 %v436
    %2166 = vmatpush.msra.mxu0 %v432
    %2167 = vmatpush.msra.mxu0 %v428
    %2168 = vmatpush.msra.mxu0 %v424
    %2169 = vmatpush.msra.mxu0 %v420
    %2170 = vmatpush.msra.mxu0 %v416
    %2171 = vmatpush.msra.mxu0 %v412
    %2172 = vmatpush.msra.mxu0 %v408
    %2173 = vmatpush.msra.mxu0 %v404
    %2174 = vmatpush.msra.mxu0 %v400
    %2175 = vmatpush.msra.mxu0 %v396
    %2176 = vmatpush.msra.mxu0 %v392
    %2177 = vmatpush.msra.mxu0 %v388
    %2178 = vmatmul.f32.gmra.mxu0 %v1871
    %v2179 = vpop.f32.mrf.mxu0
    %v2180 = vadd.f32 0.0, %v2179
    %2181 = vdwg.mxu0
    %v2182 = vadd.f32 %v2098, %v2120
    %v2183 = vadd.f32 %v2099, %v2140
    %v2184 = vadd.f32 %v2100, %v2160
    %v2185 = vadd.f32 %v2101, %v2180
    %v2186 = vxor.u32 %v2182, 2147483648
    %v2187 = vxor.u32 %v2183, 2147483648
    %v2188 = vxor.u32 %v2184, 2147483648
    %v2189 = vmul.f32 %v2186, 1.442695
    %v2190 = vpow.pop %v2189
    %v2191 = vmul.f32 %v2187, 1.442695
    %v2192 = vpow.pop %v2191
    %v2193 = vmul.f32 %v2188, 1.442695
    %v2194 = vpow.pop %v2193
    %v2195 = vadd.f32 %v2190, 1.0
    %v2196 = vadd.f32 %v2192, 1.0
    %v2197 = vadd.f32 %v2194, 1.0
    %v2198 = vrcp.pop %v2195
    %v2199 = vmul.f32 %v2195, %v2198
    %v2200 = vsub.f32 1.0, %v2199
    %v2201 = vmul.f32 %v2198, %v2200
    %v2202 = vadd.f32 %v2198, %v2201
    %vm2203 = vweird.f32 %v2195
    %vm2204 = vweird.f32 %v2198
    %vm2205 = vmor %vm2203, %vm2204
    %v2206 = vsel %vm2205, %v2198, %v2202
    %v2207 = vand.u32 2147483647, %v2195
    %vm2208 = vcmp.eq.f32.partialorder %v2207, 8.507059e+37
    %v2209 = vand.u32 %v2195, 2147483648
    %v2210 = vor.u32 1.1754944e-38, %v2209
    %v2211 = vsel %vm2208, %v2210, %v2206
    %v2212 = vmul.f32 1.0, %v2211
    %v2213 = vrcp.pop %v2196
    %v2214 = vmul.f32 %v2196, %v2213
    %v2215 = vsub.f32 1.0, %v2214
    %v2216 = vmul.f32 %v2213, %v2215
    %v2217 = vadd.f32 %v2213, %v2216
    %vm2218 = vweird.f32 %v2196
    %vm2219 = vweird.f32 %v2213
    %vm2220 = vmor %vm2218, %vm2219
    %v2221 = vsel %vm2220, %v2213, %v2217
    %v2222 = vand.u32 2147483647, %v2196
    %vm2223 = vcmp.eq.f32.partialorder %v2222, 8.507059e+37
    %v2224 = vand.u32 %v2196, 2147483648
    %v2225 = vor.u32 1.1754944e-38, %v2224
    %v2226 = vsel %vm2223, %v2225, %v2221
    %v2227 = vmul.f32 1.0, %v2226
    %v2228 = vrcp.pop %v2197
    %v2229 = vmul.f32 %v2197, %v2228
    %v2230 = vsub.f32 1.0, %v2229
    %v2231 = vmul.f32 %v2228, %v2230
    %v2232 = vadd.f32 %v2228, %v2231
    %vm2233 = vweird.f32 %v2197
    %vm2234 = vweird.f32 %v2228
    %vm2235 = vmor %vm2233, %vm2234
    %v2236 = vsel %vm2235, %v2228, %v2232
    %v2237 = vand.u32 2147483647, %v2197
    %vm2238 = vcmp.eq.f32.partialorder %v2237, 8.507059e+37
    %v2239 = vand.u32 %v2197, 2147483648
    %v2240 = vor.u32 1.1754944e-38, %v2239
    %v2241 = vsel %vm2238, %v2240, %v2236
    %v2242 = vmul.f32 1.0, %v2241
    %v2243 = vtanh.pop %v2185
    %v2244 = vmul.f32 %v2227, %v1869
    %v2245 = vmul.f32 %v2212, %v2243
    %v2246 = vadd.f32 %v2244, %v2245
    %v2247 = vtanh.pop %v2246
    %v2248 = vmul.f32 %v2242, %v2247
    %2249 = vmatpush.msra.mxu0 %v509
    %2250 = vmatpush.msra.mxu0 %v505
    %2251 = vmatpush.msra.mxu0 %v501
    %2252 = vmatpush.msra.mxu0 %v497
    %2253 = vmatpush.msra.mxu0 %v493
    %2254 = vmatpush.msra.mxu0 %v489
    %2255 = vmatpush.msra.mxu0 %v485
    %2256 = vmatpush.msra.mxu0 %v481
    %2257 = vmatpush.msra.mxu0 %v477
    %2258 = vmatpush.msra.mxu0 %v473
    %2259 = vmatpush.msra.mxu0 %v469
    %2260 = vmatpush.msra.mxu0 %v465
    %2261 = vmatpush.msra.mxu0 %v461
    %2262 = vmatpush.msra.mxu0 %v457
    %2263 = vmatpush.msra.mxu0 %v453
    %2264 = vmatpush.msra.mxu0 %v449
    %2265 = vmatmul.f32.gmra.mxu0 %v2248
    %v2266 = vpop.f32.mrf.mxu0
    %v2267 = vadd.f32 %v579, %v2266
    %2268 = vdwg.mxu0
    %2269 = vmatpush.msra.mxu0 %v573
    %2270 = vmatpush.msra.mxu0 %v569
    %2271 = vmatpush.msra.mxu0 %v565
    %2272 = vmatpush.msra.mxu0 %v561
    %2273 = vmatpush.msra.mxu0 %v557
    %2274 = vmatpush.msra.mxu0 %v553
    %2275 = vmatpush.msra.mxu0 %v549
    %2276 = vmatpush.msra.mxu0 %v545
    %2277 = vmatpush.msra.mxu0 %v541
    %2278 = vmatpush.msra.mxu0 %v537
    %2279 = vmatpush.msra.mxu0 %v533
    %2280 = vmatpush.msra.mxu0 %v529
    %2281 = vmatpush.msra.mxu0 %v525
    %2282 = vmatpush.msra.mxu0 %v521
    %2283 = vmatpush.msra.mxu0 %v517
    %2284 = vmatpush.msra.mxu0 %v513
    %2285 = vmatmul.f32.gmra.mxu0 %v2094
    %v2286 = vpop.f32.mrf.mxu0
    %v2287 = vadd.f32 %v2267, %v2286
    %2288 = vdwg.mxu0
    %2289 = vmatpush.msra.mxu0 %v510
    %2290 = vmatpush.msra.mxu0 %v506
    %2291 = vmatpush.msra.mxu0 %v502
    %2292 = vmatpush.msra.mxu0 %v498
    %2293 = vmatpush.msra.mxu0 %v494
    %2294 = vmatpush.msra.mxu0 %v490
    %2295 = vmatpush.msra.mxu0 %v486
    %2296 = vmatpush.msra.mxu0 %v482
    %2297 = vmatpush.msra.mxu0 %v478
    %2298 = vmatpush.msra.mxu0 %v474
    %2299 = vmatpush.msra.mxu0 %v470
    %2300 = vmatpush.msra.mxu0 %v466
    %2301 = vmatpush.msra.mxu0 %v462
    %2302 = vmatpush.msra.mxu0 %v458
    %2303 = vmatpush.msra.mxu0 %v454
    %2304 = vmatpush.msra.mxu0 %v450
    %2305 = vmatmul.f32.gmra.mxu0 %v2248
    %v2306 = vpop.f32.mrf.mxu0
    %v2307 = vadd.f32 %v580, %v2306
    %2308 = vdwg.mxu0
    %2309 = vmatpush.msra.mxu0 %v574
    %2310 = vmatpush.msra.mxu0 %v570
    %2311 = vmatpush.msra.mxu0 %v566
    %2312 = vmatpush.msra.mxu0 %v562
    %2313 = vmatpush.msra.mxu0 %v558
    %2314 = vmatpush.msra.mxu0 %v554
    %2315 = vmatpush.msra.mxu0 %v550
    %2316 = vmatpush.msra.mxu0 %v546
    %2317 = vmatpush.msra.mxu0 %v542
    %2318 = vmatpush.msra.mxu0 %v538
    %2319 = vmatpush.msra.mxu0 %v534
    %2320 = vmatpush.msra.mxu0 %v530
    %2321 = vmatpush.msra.mxu0 %v526
    %2322 = vmatpush.msra.mxu0 %v522
    %2323 = vmatpush.msra.mxu0 %v518
    %2324 = vmatpush.msra.mxu0 %v514
    %2325 = vmatmul.f32.gmra.mxu0 %v2094
    %v2326 = vpop.f32.mrf.mxu0
    %v2327 = vadd.f32 %v2307, %v2326
    %2328 = vdwg.mxu0
    %2329 = vmatpush.msra.mxu0 %v511
    %2330 = vmatpush.msra.mxu0 %v507
    %2331 = vmatpush.msra.mxu0 %v503
    %2332 = vmatpush.msra.mxu0 %v499
    %2333 = vmatpush.msra.mxu0 %v495
    %2334 = vmatpush.msra.mxu0 %v491
    %2335 = vmatpush.msra.mxu0 %v487
    %2336 = vmatpush.msra.mxu0 %v483
    %2337 = vmatpush.msra.mxu0 %v479
    %2338 = vmatpush.msra.mxu0 %v475
    %2339 = vmatpush.msra.mxu0 %v471
    %2340 = vmatpush.msra.mxu0 %v467
    %2341 = vmatpush.msra.mxu0 %v463
    %2342 = vmatpush.msra.mxu0 %v459
    %2343 = vmatpush.msra.mxu0 %v455
    %2344 = vmatpush.msra.mxu0 %v451
    %2345 = vmatmul.f32.gmra.mxu0 %v2248
    %v2346 = vpop.f32.mrf.mxu0
    %v2347 = vadd.f32 %v581, %v2346
    %2348 = vdwg.mxu0
    %2349 = vmatpush.msra.mxu0 %v575
    %2350 = vmatpush.msra.mxu0 %v571
    %2351 = vmatpush.msra.mxu0 %v567
    %2352 = vmatpush.msra.mxu0 %v563
    %2353 = vmatpush.msra.mxu0 %v559
    %2354 = vmatpush.msra.mxu0 %v555
    %2355 = vmatpush.msra.mxu0 %v551
    %2356 = vmatpush.msra.mxu0 %v547
    %2357 = vmatpush.msra.mxu0 %v543
    %2358 = vmatpush.msra.mxu0 %v539
    %2359 = vmatpush.msra.mxu0 %v535
    %2360 = vmatpush.msra.mxu0 %v531
    %2361 = vmatpush.msra.mxu0 %v527
    %2362 = vmatpush.msra.mxu0 %v523
    %2363 = vmatpush.msra.mxu0 %v519
    %2364 = vmatpush.msra.mxu0 %v515
    %2365 = vmatmul.f32.gmra.mxu0 %v2094
    %v2366 = vpop.f32.mrf.mxu0
    %v2367 = vadd.f32 %v2347, %v2366
    %2368 = vdwg.mxu0
    %2369 = vmatpush.msra.mxu0 %v512
    %2370 = vmatpush.msra.mxu0 %v508
    %2371 = vmatpush.msra.mxu0 %v504
    %2372 = vmatpush.msra.mxu0 %v500
    %2373 = vmatpush.msra.mxu0 %v496
    %2374 = vmatpush.msra.mxu0 %v492
    %2375 = vmatpush.msra.mxu0 %v488
    %2376 = vmatpush.msra.mxu0 %v484
    %2377 = vmatpush.msra.mxu0 %v480
    %2378 = vmatpush.msra.mxu0 %v476
    %2379 = vmatpush.msra.mxu0 %v472
    %2380 = vmatpush.msra.mxu0 %v468
    %2381 = vmatpush.msra.mxu0 %v464
    %2382 = vmatpush.msra.mxu0 %v460
    %2383 = vmatpush.msra.mxu0 %v456
    %2384 = vmatpush.msra.mxu0 %v452
    %2385 = vmatmul.f32.gmra.mxu0 %v2248
    %v2386 = vpop.f32.mrf.mxu0
    %v2387 = vadd.f32 %v582, %v2386
    %2388 = vdwg.mxu0
    %2389 = vmatpush.msra.mxu0 %v576
    %2390 = vmatpush.msra.mxu0 %v572
    %2391 = vmatpush.msra.mxu0 %v568
    %2392 = vmatpush.msra.mxu0 %v564
    %2393 = vmatpush.msra.mxu0 %v560
    %2394 = vmatpush.msra.mxu0 %v556
    %2395 = vmatpush.msra.mxu0 %v552
    %2396 = vmatpush.msra.mxu0 %v548
    %2397 = vmatpush.msra.mxu0 %v544
    %2398 = vmatpush.msra.mxu0 %v540
    %2399 = vmatpush.msra.mxu0 %v536
    %2400 = vmatpush.msra.mxu0 %v532
    %2401 = vmatpush.msra.mxu0 %v528
    %2402 = vmatpush.msra.mxu0 %v524
    %2403 = vmatpush.msra.mxu0 %v520
    %2404 = vmatpush.msra.mxu0 %v516
    %2405 = vmatmul.f32.gmra.mxu0 %v2094
    %v2406 = vpop.f32.mrf.mxu0
    %v2407 = vadd.f32 %v2387, %v2406
    %2408 = vdwg.mxu0
    %v2409 = vxor.u32 %v2287, 2147483648
    %v2410 = vxor.u32 %v2327, 2147483648
    %v2411 = vxor.u32 %v2367, 2147483648
    %v2412 = vmul.f32 %v2409, 1.442695
    %v2413 = vpow.pop %v2412
    %v2414 = vmul.f32 %v2410, 1.442695
    %v2415 = vpow.pop %v2414
    %v2416 = vmul.f32 %v2411, 1.442695
    %v2417 = vpow.pop %v2416
    %v2418 = vadd.f32 %v2413, 1.0
    %v2419 = vadd.f32 %v2415, 1.0
    %v2420 = vadd.f32 %v2417, 1.0
    %v2421 = vrcp.pop %v2418
    %v2422 = vmul.f32 %v2418, %v2421
    %v2423 = vsub.f32 1.0, %v2422
    %v2424 = vmul.f32 %v2421, %v2423
    %v2425 = vadd.f32 %v2421, %v2424
    %vm2426 = vweird.f32 %v2418
    %vm2427 = vweird.f32 %v2421
    %vm2428 = vmor %vm2426, %vm2427
    %v2429 = vsel %vm2428, %v2421, %v2425
    %v2430 = vand.u32 2147483647, %v2418
    %vm2431 = vcmp.eq.f32.partialorder %v2430, 8.507059e+37
    %v2432 = vand.u32 %v2418, 2147483648
    %v2433 = vor.u32 1.1754944e-38, %v2432
    %v2434 = vsel %vm2431, %v2433, %v2429
    %v2435 = vmul.f32 1.0, %v2434
    %v2436 = vrcp.pop %v2419
    %v2437 = vmul.f32 %v2419, %v2436
    %v2438 = vsub.f32 1.0, %v2437
    %v2439 = vmul.f32 %v2436, %v2438
    %v2440 = vadd.f32 %v2436, %v2439
    %vm2441 = vweird.f32 %v2419
    %vm2442 = vweird.f32 %v2436
    %vm2443 = vmor %vm2441, %vm2442
    %v2444 = vsel %vm2443, %v2436, %v2440
    %v2445 = vand.u32 2147483647, %v2419
    %vm2446 = vcmp.eq.f32.partialorder %v2445, 8.507059e+37
    %v2447 = vand.u32 %v2419, 2147483648
    %v2448 = vor.u32 1.1754944e-38, %v2447
    %v2449 = vsel %vm2446, %v2448, %v2444
    %v2450 = vmul.f32 1.0, %v2449
    %v2451 = vrcp.pop %v2420
    %v2452 = vmul.f32 %v2420, %v2451
    %v2453 = vsub.f32 1.0, %v2452
    %v2454 = vmul.f32 %v2451, %v2453
    %v2455 = vadd.f32 %v2451, %v2454
    %vm2456 = vweird.f32 %v2420
    %vm2457 = vweird.f32 %v2451
    %vm2458 = vmor %vm2456, %vm2457
    %v2459 = vsel %vm2458, %v2451, %v2455
    %v2460 = vand.u32 2147483647, %v2420
    %vm2461 = vcmp.eq.f32.partialorder %v2460, 8.507059e+37
    %v2462 = vand.u32 %v2420, 2147483648
    %v2463 = vor.u32 1.1754944e-38, %v2462
    %v2464 = vsel %vm2461, %v2463, %v2459
    %v2465 = vmul.f32 1.0, %v2464
    %v2466 = vtanh.pop %v2407
    %v2467 = vmul.f32 %v2450, %v2092
    %v2468 = vmul.f32 %v2435, %v2466
    %v2469 = vadd.f32 %v2467, %v2468
    %v2470 = vtanh.pop %v2469
    %v2471 = vmul.f32 %v2465, %v2470
    %s2472 = smul.u32 5, 4
    %s2473 = smul.addr %s2472, 8
    %s2474 = scalar_lea.vmem [#allocation2], %s2473
    %v2475 = vld [vmem:[%s2474] sm:$0xff]
    %v2476 = vld [vmem:[%s2474 + $0x8] sm:$0xff]
    %v2477 = vld [vmem:[%s2474 + $0x10] sm:$0xff]
    %v2478 = vld [vmem:[%s2474 + $0x18] sm:$0xff]
    %2479 = vmatpush.msra.mxu0 %v445
    %2480 = vmatpush.msra.mxu0 %v441
    %2481 = vmatpush.msra.mxu0 %v437
    %2482 = vmatpush.msra.mxu0 %v433
    %2483 = vmatpush.msra.mxu0 %v429
    %2484 = vmatpush.msra.mxu0 %v425
    %2485 = vmatpush.msra.mxu0 %v421
    %2486 = vmatpush.msra.mxu0 %v417
    %2487 = vmatpush.msra.mxu0 %v413
    %2488 = vmatpush.msra.mxu0 %v409
    %2489 = vmatpush.msra.mxu0 %v405
    %2490 = vmatpush.msra.mxu0 %v401
    %2491 = vmatpush.msra.mxu0 %v397
    %2492 = vmatpush.msra.mxu0 %v393
    %2493 = vmatpush.msra.mxu0 %v389
    %2494 = vmatpush.msra.mxu0 %v385
    %2495 = vmatmul.f32.gmra.mxu0 %v2248
    %v2496 = vpop.f32.mrf.mxu0
    %v2497 = vadd.f32 0.0, %v2496
    %2498 = vdwg.mxu0
    %2499 = vmatpush.msra.mxu0 %v446
    %2500 = vmatpush.msra.mxu0 %v442
    %2501 = vmatpush.msra.mxu0 %v438
    %2502 = vmatpush.msra.mxu0 %v434
    %2503 = vmatpush.msra.mxu0 %v430
    %2504 = vmatpush.msra.mxu0 %v426
    %2505 = vmatpush.msra.mxu0 %v422
    %2506 = vmatpush.msra.mxu0 %v418
    %2507 = vmatpush.msra.mxu0 %v414
    %2508 = vmatpush.msra.mxu0 %v410
    %2509 = vmatpush.msra.mxu0 %v406
    %2510 = vmatpush.msra.mxu0 %v402
    %2511 = vmatpush.msra.mxu0 %v398
    %2512 = vmatpush.msra.mxu0 %v394
    %2513 = vmatpush.msra.mxu0 %v390
    %2514 = vmatpush.msra.mxu0 %v386
    %2515 = vmatmul.f32.gmra.mxu0 %v2248
    %v2516 = vpop.f32.mrf.mxu0
    %v2517 = vadd.f32 0.0, %v2516
    %2518 = vdwg.mxu0
    %2519 = vmatpush.msra.mxu0 %v447
    %2520 = vmatpush.msra.mxu0 %v443
    %2521 = vmatpush.msra.mxu0 %v439
    %2522 = vmatpush.msra.mxu0 %v435
    %2523 = vmatpush.msra.mxu0 %v431
    %2524 = vmatpush.msra.mxu0 %v427
    %2525 = vmatpush.msra.mxu0 %v423
    %2526 = vmatpush.msra.mxu0 %v419
    %2527 = vmatpush.msra.mxu0 %v415
    %2528 = vmatpush.msra.mxu0 %v411
    %2529 = vmatpush.msra.mxu0 %v407
    %2530 = vmatpush.msra.mxu0 %v403
    %2531 = vmatpush.msra.mxu0 %v399
    %2532 = vmatpush.msra.mxu0 %v395
    %2533 = vmatpush.msra.mxu0 %v391
    %2534 = vmatpush.msra.mxu0 %v387
    %2535 = vmatmul.f32.gmra.mxu0 %v2248
    %v2536 = vpop.f32.mrf.mxu0
    %v2537 = vadd.f32 0.0, %v2536
    %2538 = vdwg.mxu0
    %2539 = vmatpush.msra.mxu0 %v448
    %2540 = vmatpush.msra.mxu0 %v444
    %2541 = vmatpush.msra.mxu0 %v440
    %2542 = vmatpush.msra.mxu0 %v436
    %2543 = vmatpush.msra.mxu0 %v432
    %2544 = vmatpush.msra.mxu0 %v428
    %2545 = vmatpush.msra.mxu0 %v424
    %2546 = vmatpush.msra.mxu0 %v420
    %2547 = vmatpush.msra.mxu0 %v416
    %2548 = vmatpush.msra.mxu0 %v412
    %2549 = vmatpush.msra.mxu0 %v408
    %2550 = vmatpush.msra.mxu0 %v404
    %2551 = vmatpush.msra.mxu0 %v400
    %2552 = vmatpush.msra.mxu0 %v396
    %2553 = vmatpush.msra.mxu0 %v392
    %2554 = vmatpush.msra.mxu0 %v388
    %2555 = vmatmul.f32.gmra.mxu0 %v2248
    %v2556 = vpop.f32.mrf.mxu0
    %v2557 = vadd.f32 0.0, %v2556
    %2558 = vdwg.mxu0
    %v2559 = vadd.f32 %v2475, %v2497
    %v2560 = vadd.f32 %v2476, %v2517
    %v2561 = vadd.f32 %v2477, %v2537
    %v2562 = vadd.f32 %v2478, %v2557
    %v2563 = vxor.u32 %v2559, 2147483648
    %v2564 = vxor.u32 %v2560, 2147483648
    %v2565 = vxor.u32 %v2561, 2147483648
    %v2566 = vmul.f32 %v2563, 1.442695
    %v2567 = vpow.pop %v2566
    %v2568 = vmul.f32 %v2564, 1.442695
    %v2569 = vpow.pop %v2568
    %v2570 = vmul.f32 %v2565, 1.442695
    %v2571 = vpow.pop %v2570
    %v2572 = vadd.f32 %v2567, 1.0
    %v2573 = vadd.f32 %v2569, 1.0
    %v2574 = vadd.f32 %v2571, 1.0
    %v2575 = vrcp.pop %v2572
    %v2576 = vmul.f32 %v2572, %v2575
    %v2577 = vsub.f32 1.0, %v2576
    %v2578 = vmul.f32 %v2575, %v2577
    %v2579 = vadd.f32 %v2575, %v2578
    %vm2580 = vweird.f32 %v2572
    %vm2581 = vweird.f32 %v2575
    %vm2582 = vmor %vm2580, %vm2581
    %v2583 = vsel %vm2582, %v2575, %v2579
    %v2584 = vand.u32 2147483647, %v2572
    %vm2585 = vcmp.eq.f32.partialorder %v2584, 8.507059e+37
    %v2586 = vand.u32 %v2572, 2147483648
    %v2587 = vor.u32 1.1754944e-38, %v2586
    %v2588 = vsel %vm2585, %v2587, %v2583
    %v2589 = vmul.f32 1.0, %v2588
    %v2590 = vrcp.pop %v2573
    %v2591 = vmul.f32 %v2573, %v2590
    %v2592 = vsub.f32 1.0, %v2591
    %v2593 = vmul.f32 %v2590, %v2592
    %v2594 = vadd.f32 %v2590, %v2593
    %vm2595 = vweird.f32 %v2573
    %vm2596 = vweird.f32 %v2590
    %vm2597 = vmor %vm2595, %vm2596
    %v2598 = vsel %vm2597, %v2590, %v2594
    %v2599 = vand.u32 2147483647, %v2573
    %vm2600 = vcmp.eq.f32.partialorder %v2599, 8.507059e+37
    %v2601 = vand.u32 %v2573, 2147483648
    %v2602 = vor.u32 1.1754944e-38, %v2601
    %v2603 = vsel %vm2600, %v2602, %v2598
    %v2604 = vmul.f32 1.0, %v2603
    %v2605 = vrcp.pop %v2574
    %v2606 = vmul.f32 %v2574, %v2605
    %v2607 = vsub.f32 1.0, %v2606
    %v2608 = vmul.f32 %v2605, %v2607
    %v2609 = vadd.f32 %v2605, %v2608
    %vm2610 = vweird.f32 %v2574
    %vm2611 = vweird.f32 %v2605
    %vm2612 = vmor %vm2610, %vm2611
    %v2613 = vsel %vm2612, %v2605, %v2609
    %v2614 = vand.u32 2147483647, %v2574
    %vm2615 = vcmp.eq.f32.partialorder %v2614, 8.507059e+37
    %v2616 = vand.u32 %v2574, 2147483648
    %v2617 = vor.u32 1.1754944e-38, %v2616
    %v2618 = vsel %vm2615, %v2617, %v2613
    %v2619 = vmul.f32 1.0, %v2618
    %v2620 = vtanh.pop %v2562
    %v2621 = vmul.f32 %v2604, %v2246
    %v2622 = vmul.f32 %v2589, %v2620
    %v2623 = vadd.f32 %v2621, %v2622
    %v2624 = vtanh.pop %v2623
    %v2625 = vmul.f32 %v2619, %v2624
    %2626 = vmatpush.msra.mxu0 %v509
    %2627 = vmatpush.msra.mxu0 %v505
    %2628 = vmatpush.msra.mxu0 %v501
    %2629 = vmatpush.msra.mxu0 %v497
    %2630 = vmatpush.msra.mxu0 %v493
    %2631 = vmatpush.msra.mxu0 %v489
    %2632 = vmatpush.msra.mxu0 %v485
    %2633 = vmatpush.msra.mxu0 %v481
    %2634 = vmatpush.msra.mxu0 %v477
    %2635 = vmatpush.msra.mxu0 %v473
    %2636 = vmatpush.msra.mxu0 %v469
    %2637 = vmatpush.msra.mxu0 %v465
    %2638 = vmatpush.msra.mxu0 %v461
    %2639 = vmatpush.msra.mxu0 %v457
    %2640 = vmatpush.msra.mxu0 %v453
    %2641 = vmatpush.msra.mxu0 %v449
    %2642 = vmatmul.f32.gmra.mxu0 %v2625
    %v2643 = vpop.f32.mrf.mxu0
    %v2644 = vadd.f32 %v579, %v2643
    %2645 = vdwg.mxu0
    %2646 = vmatpush.msra.mxu0 %v573
    %2647 = vmatpush.msra.mxu0 %v569
    %2648 = vmatpush.msra.mxu0 %v565
    %2649 = vmatpush.msra.mxu0 %v561
    %2650 = vmatpush.msra.mxu0 %v557
    %2651 = vmatpush.msra.mxu0 %v553
    %2652 = vmatpush.msra.mxu0 %v549
    %2653 = vmatpush.msra.mxu0 %v545
    %2654 = vmatpush.msra.mxu0 %v541
    %2655 = vmatpush.msra.mxu0 %v537
    %2656 = vmatpush.msra.mxu0 %v533
    %2657 = vmatpush.msra.mxu0 %v529
    %2658 = vmatpush.msra.mxu0 %v525
    %2659 = vmatpush.msra.mxu0 %v521
    %2660 = vmatpush.msra.mxu0 %v517
    %2661 = vmatpush.msra.mxu0 %v513
    %2662 = vmatmul.f32.gmra.mxu0 %v2471
    %v2663 = vpop.f32.mrf.mxu0
    %v2664 = vadd.f32 %v2644, %v2663
    %2665 = vdwg.mxu0
    %2666 = vmatpush.msra.mxu0 %v510
    %2667 = vmatpush.msra.mxu0 %v506
    %2668 = vmatpush.msra.mxu0 %v502
    %2669 = vmatpush.msra.mxu0 %v498
    %2670 = vmatpush.msra.mxu0 %v494
    %2671 = vmatpush.msra.mxu0 %v490
    %2672 = vmatpush.msra.mxu0 %v486
    %2673 = vmatpush.msra.mxu0 %v482
    %2674 = vmatpush.msra.mxu0 %v478
    %2675 = vmatpush.msra.mxu0 %v474
    %2676 = vmatpush.msra.mxu0 %v470
    %2677 = vmatpush.msra.mxu0 %v466
    %2678 = vmatpush.msra.mxu0 %v462
    %2679 = vmatpush.msra.mxu0 %v458
    %2680 = vmatpush.msra.mxu0 %v454
    %2681 = vmatpush.msra.mxu0 %v450
    %2682 = vmatmul.f32.gmra.mxu0 %v2625
    %v2683 = vpop.f32.mrf.mxu0
    %v2684 = vadd.f32 %v580, %v2683
    %2685 = vdwg.mxu0
    %2686 = vmatpush.msra.mxu0 %v574
    %2687 = vmatpush.msra.mxu0 %v570
    %2688 = vmatpush.msra.mxu0 %v566
    %2689 = vmatpush.msra.mxu0 %v562
    %2690 = vmatpush.msra.mxu0 %v558
    %2691 = vmatpush.msra.mxu0 %v554
    %2692 = vmatpush.msra.mxu0 %v550
    %2693 = vmatpush.msra.mxu0 %v546
    %2694 = vmatpush.msra.mxu0 %v542
    %2695 = vmatpush.msra.mxu0 %v538
    %2696 = vmatpush.msra.mxu0 %v534
    %2697 = vmatpush.msra.mxu0 %v530
    %2698 = vmatpush.msra.mxu0 %v526
    %2699 = vmatpush.msra.mxu0 %v522
    %2700 = vmatpush.msra.mxu0 %v518
    %2701 = vmatpush.msra.mxu0 %v514
    %2702 = vmatmul.f32.gmra.mxu0 %v2471
    %v2703 = vpop.f32.mrf.mxu0
    %v2704 = vadd.f32 %v2684, %v2703
    %2705 = vdwg.mxu0
    %2706 = vmatpush.msra.mxu0 %v511
    %2707 = vmatpush.msra.mxu0 %v507
    %2708 = vmatpush.msra.mxu0 %v503
    %2709 = vmatpush.msra.mxu0 %v499
    %2710 = vmatpush.msra.mxu0 %v495
    %2711 = vmatpush.msra.mxu0 %v491
    %2712 = vmatpush.msra.mxu0 %v487
    %2713 = vmatpush.msra.mxu0 %v483
    %2714 = vmatpush.msra.mxu0 %v479
    %2715 = vmatpush.msra.mxu0 %v475
    %2716 = vmatpush.msra.mxu0 %v471
    %2717 = vmatpush.msra.mxu0 %v467
    %2718 = vmatpush.msra.mxu0 %v463
    %2719 = vmatpush.msra.mxu0 %v459
    %2720 = vmatpush.msra.mxu0 %v455
    %2721 = vmatpush.msra.mxu0 %v451
    %2722 = vmatmul.f32.gmra.mxu0 %v2625
    %v2723 = vpop.f32.mrf.mxu0
    %v2724 = vadd.f32 %v581, %v2723
    %2725 = vdwg.mxu0
    %2726 = vmatpush.msra.mxu0 %v575
    %2727 = vmatpush.msra.mxu0 %v571
    %2728 = vmatpush.msra.mxu0 %v567
    %2729 = vmatpush.msra.mxu0 %v563
    %2730 = vmatpush.msra.mxu0 %v559
    %2731 = vmatpush.msra.mxu0 %v555
    %2732 = vmatpush.msra.mxu0 %v551
    %2733 = vmatpush.msra.mxu0 %v547
    %2734 = vmatpush.msra.mxu0 %v543
    %2735 = vmatpush.msra.mxu0 %v539
    %2736 = vmatpush.msra.mxu0 %v535
    %2737 = vmatpush.msra.mxu0 %v531
    %2738 = vmatpush.msra.mxu0 %v527
    %2739 = vmatpush.msra.mxu0 %v523
    %2740 = vmatpush.msra.mxu0 %v519
    %2741 = vmatpush.msra.mxu0 %v515
    %2742 = vmatmul.f32.gmra.mxu0 %v2471
    %v2743 = vpop.f32.mrf.mxu0
    %v2744 = vadd.f32 %v2724, %v2743
    %2745 = vdwg.mxu0
    %2746 = vmatpush.msra.mxu0 %v512
    %2747 = vmatpush.msra.mxu0 %v508
    %2748 = vmatpush.msra.mxu0 %v504
    %2749 = vmatpush.msra.mxu0 %v500
    %2750 = vmatpush.msra.mxu0 %v496
    %2751 = vmatpush.msra.mxu0 %v492
    %2752 = vmatpush.msra.mxu0 %v488
    %2753 = vmatpush.msra.mxu0 %v484
    %2754 = vmatpush.msra.mxu0 %v480
    %2755 = vmatpush.msra.mxu0 %v476
    %2756 = vmatpush.msra.mxu0 %v472
    %2757 = vmatpush.msra.mxu0 %v468
    %2758 = vmatpush.msra.mxu0 %v464
    %2759 = vmatpush.msra.mxu0 %v460
    %2760 = vmatpush.msra.mxu0 %v456
    %2761 = vmatpush.msra.mxu0 %v452
    %2762 = vmatmul.f32.gmra.mxu0 %v2625
    %v2763 = vpop.f32.mrf.mxu0
    %v2764 = vadd.f32 %v582, %v2763
    %2765 = vdwg.mxu0
    %2766 = vmatpush.msra.mxu0 %v576
    %2767 = vmatpush.msra.mxu0 %v572
    %2768 = vmatpush.msra.mxu0 %v568
    %2769 = vmatpush.msra.mxu0 %v564
    %2770 = vmatpush.msra.mxu0 %v560
    %2771 = vmatpush.msra.mxu0 %v556
    %2772 = vmatpush.msra.mxu0 %v552
    %2773 = vmatpush.msra.mxu0 %v548
    %2774 = vmatpush.msra.mxu0 %v544
    %2775 = vmatpush.msra.mxu0 %v540
    %2776 = vmatpush.msra.mxu0 %v536
    %2777 = vmatpush.msra.mxu0 %v532
    %2778 = vmatpush.msra.mxu0 %v528
    %2779 = vmatpush.msra.mxu0 %v524
    %2780 = vmatpush.msra.mxu0 %v520
    %2781 = vmatpush.msra.mxu0 %v516
    %2782 = vmatmul.f32.gmra.mxu0 %v2471
    %v2783 = vpop.f32.mrf.mxu0
    %v2784 = vadd.f32 %v2764, %v2783
    %2785 = vdwg.mxu0
    %v2786 = vxor.u32 %v2664, 2147483648
    %v2787 = vxor.u32 %v2704, 2147483648
    %v2788 = vxor.u32 %v2744, 2147483648
    %v2789 = vmul.f32 %v2786, 1.442695
    %v2790 = vpow.pop %v2789
    %v2791 = vmul.f32 %v2787, 1.442695
    %v2792 = vpow.pop %v2791
    %v2793 = vmul.f32 %v2788, 1.442695
    %v2794 = vpow.pop %v2793
    %v2795 = vadd.f32 %v2790, 1.0
    %v2796 = vadd.f32 %v2792, 1.0
    %v2797 = vadd.f32 %v2794, 1.0
    %v2798 = vrcp.pop %v2795
    %v2799 = vmul.f32 %v2795, %v2798
    %v2800 = vsub.f32 1.0, %v2799
    %v2801 = vmul.f32 %v2798, %v2800
    %v2802 = vadd.f32 %v2798, %v2801
    %vm2803 = vweird.f32 %v2795
    %vm2804 = vweird.f32 %v2798
    %vm2805 = vmor %vm2803, %vm2804
    %v2806 = vsel %vm2805, %v2798, %v2802
    %v2807 = vand.u32 2147483647, %v2795
    %vm2808 = vcmp.eq.f32.partialorder %v2807, 8.507059e+37
    %v2809 = vand.u32 %v2795, 2147483648
    %v2810 = vor.u32 1.1754944e-38, %v2809
    %v2811 = vsel %vm2808, %v2810, %v2806
    %v2812 = vmul.f32 1.0, %v2811
    %v2813 = vrcp.pop %v2796
    %v2814 = vmul.f32 %v2796, %v2813
    %v2815 = vsub.f32 1.0, %v2814
    %v2816 = vmul.f32 %v2813, %v2815
    %v2817 = vadd.f32 %v2813, %v2816
    %vm2818 = vweird.f32 %v2796
    %vm2819 = vweird.f32 %v2813
    %vm2820 = vmor %vm2818, %vm2819
    %v2821 = vsel %vm2820, %v2813, %v2817
    %v2822 = vand.u32 2147483647, %v2796
    %vm2823 = vcmp.eq.f32.partialorder %v2822, 8.507059e+37
    %v2824 = vand.u32 %v2796, 2147483648
    %v2825 = vor.u32 1.1754944e-38, %v2824
    %v2826 = vsel %vm2823, %v2825, %v2821
    %v2827 = vmul.f32 1.0, %v2826
    %v2828 = vrcp.pop %v2797
    %v2829 = vmul.f32 %v2797, %v2828
    %v2830 = vsub.f32 1.0, %v2829
    %v2831 = vmul.f32 %v2828, %v2830
    %v2832 = vadd.f32 %v2828, %v2831
    %vm2833 = vweird.f32 %v2797
    %vm2834 = vweird.f32 %v2828
    %vm2835 = vmor %vm2833, %vm2834
    %v2836 = vsel %vm2835, %v2828, %v2832
    %v2837 = vand.u32 2147483647, %v2797
    %vm2838 = vcmp.eq.f32.partialorder %v2837, 8.507059e+37
    %v2839 = vand.u32 %v2797, 2147483648
    %v2840 = vor.u32 1.1754944e-38, %v2839
    %v2841 = vsel %vm2838, %v2840, %v2836
    %v2842 = vmul.f32 1.0, %v2841
    %v2843 = vtanh.pop %v2784
    %v2844 = vmul.f32 %v2827, %v2469
    %v2845 = vmul.f32 %v2812, %v2843
    %v2846 = vadd.f32 %v2844, %v2845
    %v2847 = vtanh.pop %v2846
    %v2848 = vmul.f32 %v2842, %v2847
    %s2849 = smul.u32 6, 4
    %s2850 = smul.addr %s2849, 8
    %s2851 = scalar_lea.vmem [#allocation2], %s2850
    %v2852 = vld [vmem:[%s2851] sm:$0xff]
    %v2853 = vld [vmem:[%s2851 + $0x8] sm:$0xff]
    %v2854 = vld [vmem:[%s2851 + $0x10] sm:$0xff]
    %v2855 = vld [vmem:[%s2851 + $0x18] sm:$0xff]
    %2856 = vmatpush.msra.mxu0 %v445
    %2857 = vmatpush.msra.mxu0 %v441
    %2858 = vmatpush.msra.mxu0 %v437
    %2859 = vmatpush.msra.mxu0 %v433
    %2860 = vmatpush.msra.mxu0 %v429
    %2861 = vmatpush.msra.mxu0 %v425
    %2862 = vmatpush.msra.mxu0 %v421
    %2863 = vmatpush.msra.mxu0 %v417
    %2864 = vmatpush.msra.mxu0 %v413
    %2865 = vmatpush.msra.mxu0 %v409
    %2866 = vmatpush.msra.mxu0 %v405
    %2867 = vmatpush.msra.mxu0 %v401
    %2868 = vmatpush.msra.mxu0 %v397
    %2869 = vmatpush.msra.mxu0 %v393
    %2870 = vmatpush.msra.mxu0 %v389
    %2871 = vmatpush.msra.mxu0 %v385
    %2872 = vmatmul.f32.gmra.mxu0 %v2625
    %v2873 = vpop.f32.mrf.mxu0
    %v2874 = vadd.f32 0.0, %v2873
    %2875 = vdwg.mxu0
    %2876 = vmatpush.msra.mxu0 %v446
    %2877 = vmatpush.msra.mxu0 %v442
    %2878 = vmatpush.msra.mxu0 %v438
    %2879 = vmatpush.msra.mxu0 %v434
    %2880 = vmatpush.msra.mxu0 %v430
    %2881 = vmatpush.msra.mxu0 %v426
    %2882 = vmatpush.msra.mxu0 %v422
    %2883 = vmatpush.msra.mxu0 %v418
    %2884 = vmatpush.msra.mxu0 %v414
    %2885 = vmatpush.msra.mxu0 %v410
    %2886 = vmatpush.msra.mxu0 %v406
    %2887 = vmatpush.msra.mxu0 %v402
    %2888 = vmatpush.msra.mxu0 %v398
    %2889 = vmatpush.msra.mxu0 %v394
    %2890 = vmatpush.msra.mxu0 %v390
    %2891 = vmatpush.msra.mxu0 %v386
    %2892 = vmatmul.f32.gmra.mxu0 %v2625
    %v2893 = vpop.f32.mrf.mxu0
    %v2894 = vadd.f32 0.0, %v2893
    %2895 = vdwg.mxu0
    %2896 = vmatpush.msra.mxu0 %v447
    %2897 = vmatpush.msra.mxu0 %v443
    %2898 = vmatpush.msra.mxu0 %v439
    %2899 = vmatpush.msra.mxu0 %v435
    %2900 = vmatpush.msra.mxu0 %v431
    %2901 = vmatpush.msra.mxu0 %v427
    %2902 = vmatpush.msra.mxu0 %v423
    %2903 = vmatpush.msra.mxu0 %v419
    %2904 = vmatpush.msra.mxu0 %v415
    %2905 = vmatpush.msra.mxu0 %v411
    %2906 = vmatpush.msra.mxu0 %v407
    %2907 = vmatpush.msra.mxu0 %v403
    %2908 = vmatpush.msra.mxu0 %v399
    %2909 = vmatpush.msra.mxu0 %v395
    %2910 = vmatpush.msra.mxu0 %v391
    %2911 = vmatpush.msra.mxu0 %v387
    %2912 = vmatmul.f32.gmra.mxu0 %v2625
    %v2913 = vpop.f32.mrf.mxu0
    %v2914 = vadd.f32 0.0, %v2913
    %2915 = vdwg.mxu0
    %2916 = vmatpush.msra.mxu0 %v448
    %2917 = vmatpush.msra.mxu0 %v444
    %2918 = vmatpush.msra.mxu0 %v440
    %2919 = vmatpush.msra.mxu0 %v436
    %2920 = vmatpush.msra.mxu0 %v432
    %2921 = vmatpush.msra.mxu0 %v428
    %2922 = vmatpush.msra.mxu0 %v424
    %2923 = vmatpush.msra.mxu0 %v420
    %2924 = vmatpush.msra.mxu0 %v416
    %2925 = vmatpush.msra.mxu0 %v412
    %2926 = vmatpush.msra.mxu0 %v408
    %2927 = vmatpush.msra.mxu0 %v404
    %2928 = vmatpush.msra.mxu0 %v400
    %2929 = vmatpush.msra.mxu0 %v396
    %2930 = vmatpush.msra.mxu0 %v392
    %2931 = vmatpush.msra.mxu0 %v388
    %2932 = vmatmul.f32.gmra.mxu0 %v2625
    %v2933 = vpop.f32.mrf.mxu0
    %v2934 = vadd.f32 0.0, %v2933
    %2935 = vdwg.mxu0
    %v2936 = vadd.f32 %v2852, %v2874
    %v2937 = vadd.f32 %v2853, %v2894
    %v2938 = vadd.f32 %v2854, %v2914
    %v2939 = vadd.f32 %v2855, %v2934
    %v2940 = vxor.u32 %v2936, 2147483648
    %v2941 = vxor.u32 %v2937, 2147483648
    %v2942 = vxor.u32 %v2938, 2147483648
    %v2943 = vmul.f32 %v2940, 1.442695
    %v2944 = vpow.pop %v2943
    %v2945 = vmul.f32 %v2941, 1.442695
    %v2946 = vpow.pop %v2945
    %v2947 = vmul.f32 %v2942, 1.442695
    %v2948 = vpow.pop %v2947
    %v2949 = vadd.f32 %v2944, 1.0
    %v2950 = vadd.f32 %v2946, 1.0
    %v2951 = vadd.f32 %v2948, 1.0
    %v2952 = vrcp.pop %v2949
    %v2953 = vmul.f32 %v2949, %v2952
    %v2954 = vsub.f32 1.0, %v2953
    %v2955 = vmul.f32 %v2952, %v2954
    %v2956 = vadd.f32 %v2952, %v2955
    %vm2957 = vweird.f32 %v2949
    %vm2958 = vweird.f32 %v2952
    %vm2959 = vmor %vm2957, %vm2958
    %v2960 = vsel %vm2959, %v2952, %v2956
    %v2961 = vand.u32 2147483647, %v2949
    %vm2962 = vcmp.eq.f32.partialorder %v2961, 8.507059e+37
    %v2963 = vand.u32 %v2949, 2147483648
    %v2964 = vor.u32 1.1754944e-38, %v2963
    %v2965 = vsel %vm2962, %v2964, %v2960
    %v2966 = vmul.f32 1.0, %v2965
    %v2967 = vrcp.pop %v2950
    %v2968 = vmul.f32 %v2950, %v2967
    %v2969 = vsub.f32 1.0, %v2968
    %v2970 = vmul.f32 %v2967, %v2969
    %v2971 = vadd.f32 %v2967, %v2970
    %vm2972 = vweird.f32 %v2950
    %vm2973 = vweird.f32 %v2967
    %vm2974 = vmor %vm2972, %vm2973
    %v2975 = vsel %vm2974, %v2967, %v2971
    %v2976 = vand.u32 2147483647, %v2950
    %vm2977 = vcmp.eq.f32.partialorder %v2976, 8.507059e+37
    %v2978 = vand.u32 %v2950, 2147483648
    %v2979 = vor.u32 1.1754944e-38, %v2978
    %v2980 = vsel %vm2977, %v2979, %v2975
    %v2981 = vmul.f32 1.0, %v2980
    %v2982 = vrcp.pop %v2951
    %v2983 = vmul.f32 %v2951, %v2982
    %v2984 = vsub.f32 1.0, %v2983
    %v2985 = vmul.f32 %v2982, %v2984
    %v2986 = vadd.f32 %v2982, %v2985
    %vm2987 = vweird.f32 %v2951
    %vm2988 = vweird.f32 %v2982
    %vm2989 = vmor %vm2987, %vm2988
    %v2990 = vsel %vm2989, %v2982, %v2986
    %v2991 = vand.u32 2147483647, %v2951
    %vm2992 = vcmp.eq.f32.partialorder %v2991, 8.507059e+37
    %v2993 = vand.u32 %v2951, 2147483648
    %v2994 = vor.u32 1.1754944e-38, %v2993
    %v2995 = vsel %vm2992, %v2994, %v2990
    %v2996 = vmul.f32 1.0, %v2995
    %v2997 = vtanh.pop %v2939
    %v2998 = vmul.f32 %v2981, %v2623
    %v2999 = vmul.f32 %v2966, %v2997
    %v3000 = vadd.f32 %v2998, %v2999
    %v3001 = vtanh.pop %v3000
    %v3002 = vmul.f32 %v2996, %v3001
    %3003 = vmatpush.msra.mxu0 %v509
    %3004 = vmatpush.msra.mxu0 %v505
    %3005 = vmatpush.msra.mxu0 %v501
    %3006 = vmatpush.msra.mxu0 %v497
    %3007 = vmatpush.msra.mxu0 %v493
    %3008 = vmatpush.msra.mxu0 %v489
    %3009 = vmatpush.msra.mxu0 %v485
    %3010 = vmatpush.msra.mxu0 %v481
    %3011 = vmatpush.msra.mxu0 %v477
    %3012 = vmatpush.msra.mxu0 %v473
    %3013 = vmatpush.msra.mxu0 %v469
    %3014 = vmatpush.msra.mxu0 %v465
    %3015 = vmatpush.msra.mxu0 %v461
    %3016 = vmatpush.msra.mxu0 %v457
    %3017 = vmatpush.msra.mxu0 %v453
    %3018 = vmatpush.msra.mxu0 %v449
    %3019 = vmatmul.f32.gmra.mxu0 %v3002
    %v3020 = vpop.f32.mrf.mxu0
    %v3021 = vadd.f32 %v579, %v3020
    %3022 = vdwg.mxu0
    %3023 = vmatpush.msra.mxu0 %v573
    %3024 = vmatpush.msra.mxu0 %v569
    %3025 = vmatpush.msra.mxu0 %v565
    %3026 = vmatpush.msra.mxu0 %v561
    %3027 = vmatpush.msra.mxu0 %v557
    %3028 = vmatpush.msra.mxu0 %v553
    %3029 = vmatpush.msra.mxu0 %v549
    %3030 = vmatpush.msra.mxu0 %v545
    %3031 = vmatpush.msra.mxu0 %v541
    %3032 = vmatpush.msra.mxu0 %v537
    %3033 = vmatpush.msra.mxu0 %v533
    %3034 = vmatpush.msra.mxu0 %v529
    %3035 = vmatpush.msra.mxu0 %v525
    %3036 = vmatpush.msra.mxu0 %v521
    %3037 = vmatpush.msra.mxu0 %v517
    %3038 = vmatpush.msra.mxu0 %v513
    %3039 = vmatmul.f32.gmra.mxu0 %v2848
    %v3040 = vpop.f32.mrf.mxu0
    %v3041 = vadd.f32 %v3021, %v3040
    %3042 = vdwg.mxu0
    %3043 = vmatpush.msra.mxu0 %v510
    %3044 = vmatpush.msra.mxu0 %v506
    %3045 = vmatpush.msra.mxu0 %v502
    %3046 = vmatpush.msra.mxu0 %v498
    %3047 = vmatpush.msra.mxu0 %v494
    %3048 = vmatpush.msra.mxu0 %v490
    %3049 = vmatpush.msra.mxu0 %v486
    %3050 = vmatpush.msra.mxu0 %v482
    %3051 = vmatpush.msra.mxu0 %v478
    %3052 = vmatpush.msra.mxu0 %v474
    %3053 = vmatpush.msra.mxu0 %v470
    %3054 = vmatpush.msra.mxu0 %v466
    %3055 = vmatpush.msra.mxu0 %v462
    %3056 = vmatpush.msra.mxu0 %v458
    %3057 = vmatpush.msra.mxu0 %v454
    %3058 = vmatpush.msra.mxu0 %v450
    %3059 = vmatmul.f32.gmra.mxu0 %v3002
    %v3060 = vpop.f32.mrf.mxu0
    %v3061 = vadd.f32 %v580, %v3060
    %3062 = vdwg.mxu0
    %3063 = vmatpush.msra.mxu0 %v574
    %3064 = vmatpush.msra.mxu0 %v570
    %3065 = vmatpush.msra.mxu0 %v566
    %3066 = vmatpush.msra.mxu0 %v562
    %3067 = vmatpush.msra.mxu0 %v558
    %3068 = vmatpush.msra.mxu0 %v554
    %3069 = vmatpush.msra.mxu0 %v550
    %3070 = vmatpush.msra.mxu0 %v546
    %3071 = vmatpush.msra.mxu0 %v542
    %3072 = vmatpush.msra.mxu0 %v538
    %3073 = vmatpush.msra.mxu0 %v534
    %3074 = vmatpush.msra.mxu0 %v530
    %3075 = vmatpush.msra.mxu0 %v526
    %3076 = vmatpush.msra.mxu0 %v522
    %3077 = vmatpush.msra.mxu0 %v518
    %3078 = vmatpush.msra.mxu0 %v514
    %3079 = vmatmul.f32.gmra.mxu0 %v2848
    %v3080 = vpop.f32.mrf.mxu0
    %v3081 = vadd.f32 %v3061, %v3080
    %3082 = vdwg.mxu0
    %3083 = vmatpush.msra.mxu0 %v511
    %3084 = vmatpush.msra.mxu0 %v507
    %3085 = vmatpush.msra.mxu0 %v503
    %3086 = vmatpush.msra.mxu0 %v499
    %3087 = vmatpush.msra.mxu0 %v495
    %3088 = vmatpush.msra.mxu0 %v491
    %3089 = vmatpush.msra.mxu0 %v487
    %3090 = vmatpush.msra.mxu0 %v483
    %3091 = vmatpush.msra.mxu0 %v479
    %3092 = vmatpush.msra.mxu0 %v475
    %3093 = vmatpush.msra.mxu0 %v471
    %3094 = vmatpush.msra.mxu0 %v467
    %3095 = vmatpush.msra.mxu0 %v463
    %3096 = vmatpush.msra.mxu0 %v459
    %3097 = vmatpush.msra.mxu0 %v455
    %3098 = vmatpush.msra.mxu0 %v451
    %3099 = vmatmul.f32.gmra.mxu0 %v3002
    %v3100 = vpop.f32.mrf.mxu0
    %v3101 = vadd.f32 %v581, %v3100
    %3102 = vdwg.mxu0
    %3103 = vmatpush.msra.mxu0 %v575
    %3104 = vmatpush.msra.mxu0 %v571
    %3105 = vmatpush.msra.mxu0 %v567
    %3106 = vmatpush.msra.mxu0 %v563
    %3107 = vmatpush.msra.mxu0 %v559
    %3108 = vmatpush.msra.mxu0 %v555
    %3109 = vmatpush.msra.mxu0 %v551
    %3110 = vmatpush.msra.mxu0 %v547
    %3111 = vmatpush.msra.mxu0 %v543
    %3112 = vmatpush.msra.mxu0 %v539
    %3113 = vmatpush.msra.mxu0 %v535
    %3114 = vmatpush.msra.mxu0 %v531
    %3115 = vmatpush.msra.mxu0 %v527
    %3116 = vmatpush.msra.mxu0 %v523
    %3117 = vmatpush.msra.mxu0 %v519
    %3118 = vmatpush.msra.mxu0 %v515
    %3119 = vmatmul.f32.gmra.mxu0 %v2848
    %v3120 = vpop.f32.mrf.mxu0
    %v3121 = vadd.f32 %v3101, %v3120
    %3122 = vdwg.mxu0
    %3123 = vmatpush.msra.mxu0 %v512
    %3124 = vmatpush.msra.mxu0 %v508
    %3125 = vmatpush.msra.mxu0 %v504
    %3126 = vmatpush.msra.mxu0 %v500
    %3127 = vmatpush.msra.mxu0 %v496
    %3128 = vmatpush.msra.mxu0 %v492
    %3129 = vmatpush.msra.mxu0 %v488
    %3130 = vmatpush.msra.mxu0 %v484
    %3131 = vmatpush.msra.mxu0 %v480
    %3132 = vmatpush.msra.mxu0 %v476
    %3133 = vmatpush.msra.mxu0 %v472
    %3134 = vmatpush.msra.mxu0 %v468
    %3135 = vmatpush.msra.mxu0 %v464
    %3136 = vmatpush.msra.mxu0 %v460
    %3137 = vmatpush.msra.mxu0 %v456
    %3138 = vmatpush.msra.mxu0 %v452
    %3139 = vmatmul.f32.gmra.mxu0 %v3002
    %v3140 = vpop.f32.mrf.mxu0
    %v3141 = vadd.f32 %v582, %v3140
    %3142 = vdwg.mxu0
    %3143 = vmatpush.msra.mxu0 %v576
    %3144 = vmatpush.msra.mxu0 %v572
    %3145 = vmatpush.msra.mxu0 %v568
    %3146 = vmatpush.msra.mxu0 %v564
    %3147 = vmatpush.msra.mxu0 %v560
    %3148 = vmatpush.msra.mxu0 %v556
    %3149 = vmatpush.msra.mxu0 %v552
    %3150 = vmatpush.msra.mxu0 %v548
    %3151 = vmatpush.msra.mxu0 %v544
    %3152 = vmatpush.msra.mxu0 %v540
    %3153 = vmatpush.msra.mxu0 %v536
    %3154 = vmatpush.msra.mxu0 %v532
    %3155 = vmatpush.msra.mxu0 %v528
    %3156 = vmatpush.msra.mxu0 %v524
    %3157 = vmatpush.msra.mxu0 %v520
    %3158 = vmatpush.msra.mxu0 %v516
    %3159 = vmatmul.f32.gmra.mxu0 %v2848
    %v3160 = vpop.f32.mrf.mxu0
    %v3161 = vadd.f32 %v3141, %v3160
    %3162 = vdwg.mxu0
    %v3163 = vxor.u32 %v3041, 2147483648
    %v3164 = vxor.u32 %v3081, 2147483648
    %v3165 = vxor.u32 %v3121, 2147483648
    %v3166 = vmul.f32 %v3163, 1.442695
    %v3167 = vpow.pop %v3166
    %v3168 = vmul.f32 %v3164, 1.442695
    %v3169 = vpow.pop %v3168
    %v3170 = vmul.f32 %v3165, 1.442695
    %v3171 = vpow.pop %v3170
    %v3172 = vadd.f32 %v3167, 1.0
    %v3173 = vadd.f32 %v3169, 1.0
    %v3174 = vadd.f32 %v3171, 1.0
    %v3175 = vrcp.pop %v3172
    %v3176 = vmul.f32 %v3172, %v3175
    %v3177 = vsub.f32 1.0, %v3176
    %v3178 = vmul.f32 %v3175, %v3177
    %v3179 = vadd.f32 %v3175, %v3178
    %vm3180 = vweird.f32 %v3172
    %vm3181 = vweird.f32 %v3175
    %vm3182 = vmor %vm3180, %vm3181
    %v3183 = vsel %vm3182, %v3175, %v3179
    %v3184 = vand.u32 2147483647, %v3172
    %vm3185 = vcmp.eq.f32.partialorder %v3184, 8.507059e+37
    %v3186 = vand.u32 %v3172, 2147483648
    %v3187 = vor.u32 1.1754944e-38, %v3186
    %v3188 = vsel %vm3185, %v3187, %v3183
    %v3189 = vmul.f32 1.0, %v3188
    %v3190 = vrcp.pop %v3173
    %v3191 = vmul.f32 %v3173, %v3190
    %v3192 = vsub.f32 1.0, %v3191
    %v3193 = vmul.f32 %v3190, %v3192
    %v3194 = vadd.f32 %v3190, %v3193
    %vm3195 = vweird.f32 %v3173
    %vm3196 = vweird.f32 %v3190
    %vm3197 = vmor %vm3195, %vm3196
    %v3198 = vsel %vm3197, %v3190, %v3194
    %v3199 = vand.u32 2147483647, %v3173
    %vm3200 = vcmp.eq.f32.partialorder %v3199, 8.507059e+37
    %v3201 = vand.u32 %v3173, 2147483648
    %v3202 = vor.u32 1.1754944e-38, %v3201
    %v3203 = vsel %vm3200, %v3202, %v3198
    %v3204 = vmul.f32 1.0, %v3203
    %v3205 = vrcp.pop %v3174
    %v3206 = vmul.f32 %v3174, %v3205
    %v3207 = vsub.f32 1.0, %v3206
    %v3208 = vmul.f32 %v3205, %v3207
    %v3209 = vadd.f32 %v3205, %v3208
    %vm3210 = vweird.f32 %v3174
    %vm3211 = vweird.f32 %v3205
    %vm3212 = vmor %vm3210, %vm3211
    %v3213 = vsel %vm3212, %v3205, %v3209
    %v3214 = vand.u32 2147483647, %v3174
    %vm3215 = vcmp.eq.f32.partialorder %v3214, 8.507059e+37
    %v3216 = vand.u32 %v3174, 2147483648
    %v3217 = vor.u32 1.1754944e-38, %v3216
    %v3218 = vsel %vm3215, %v3217, %v3213
    %v3219 = vmul.f32 1.0, %v3218
    %v3220 = vtanh.pop %v3161
    %v3221 = vmul.f32 %v3204, %v2846
    %v3222 = vmul.f32 %v3189, %v3220
    %v3223 = vadd.f32 %v3221, %v3222
    %v3224 = vtanh.pop %v3223
    %v3225 = vmul.f32 %v3219, %v3224
    %s3226 = smul.u32 7, 4
    %s3227 = smul.addr %s3226, 8
    %s3228 = scalar_lea.vmem [#allocation2], %s3227
    %v3229 = vld [vmem:[%s3228] sm:$0xff]
    %v3230 = vld [vmem:[%s3228 + $0x8] sm:$0xff]
    %v3231 = vld [vmem:[%s3228 + $0x10] sm:$0xff]
    %v3232 = vld [vmem:[%s3228 + $0x18] sm:$0xff]
    %3233 = vmatpush.msra.mxu0 %v445
    %3234 = vmatpush.msra.mxu0 %v441
    %3235 = vmatpush.msra.mxu0 %v437
    %3236 = vmatpush.msra.mxu0 %v433
    %3237 = vmatpush.msra.mxu0 %v429
    %3238 = vmatpush.msra.mxu0 %v425
    %3239 = vmatpush.msra.mxu0 %v421
    %3240 = vmatpush.msra.mxu0 %v417
    %3241 = vmatpush.msra.mxu0 %v413
    %3242 = vmatpush.msra.mxu0 %v409
    %3243 = vmatpush.msra.mxu0 %v405
    %3244 = vmatpush.msra.mxu0 %v401
    %3245 = vmatpush.msra.mxu0 %v397
    %3246 = vmatpush.msra.mxu0 %v393
    %3247 = vmatpush.msra.mxu0 %v389
    %3248 = vmatpush.msra.mxu0 %v385
    %3249 = vmatmul.f32.gmra.mxu0 %v3002
    %v3250 = vpop.f32.mrf.mxu0
    %v3251 = vadd.f32 0.0, %v3250
    %3252 = vdwg.mxu0
    %3253 = vmatpush.msra.mxu0 %v446
    %3254 = vmatpush.msra.mxu0 %v442
    %3255 = vmatpush.msra.mxu0 %v438
    %3256 = vmatpush.msra.mxu0 %v434
    %3257 = vmatpush.msra.mxu0 %v430
    %3258 = vmatpush.msra.mxu0 %v426
    %3259 = vmatpush.msra.mxu0 %v422
    %3260 = vmatpush.msra.mxu0 %v418
    %3261 = vmatpush.msra.mxu0 %v414
    %3262 = vmatpush.msra.mxu0 %v410
    %3263 = vmatpush.msra.mxu0 %v406
    %3264 = vmatpush.msra.mxu0 %v402
    %3265 = vmatpush.msra.mxu0 %v398
    %3266 = vmatpush.msra.mxu0 %v394
    %3267 = vmatpush.msra.mxu0 %v390
    %3268 = vmatpush.msra.mxu0 %v386
    %3269 = vmatmul.f32.gmra.mxu0 %v3002
    %v3270 = vpop.f32.mrf.mxu0
    %v3271 = vadd.f32 0.0, %v3270
    %3272 = vdwg.mxu0
    %3273 = vmatpush.msra.mxu0 %v447
    %3274 = vmatpush.msra.mxu0 %v443
    %3275 = vmatpush.msra.mxu0 %v439
    %3276 = vmatpush.msra.mxu0 %v435
    %3277 = vmatpush.msra.mxu0 %v431
    %3278 = vmatpush.msra.mxu0 %v427
    %3279 = vmatpush.msra.mxu0 %v423
    %3280 = vmatpush.msra.mxu0 %v419
    %3281 = vmatpush.msra.mxu0 %v415
    %3282 = vmatpush.msra.mxu0 %v411
    %3283 = vmatpush.msra.mxu0 %v407
    %3284 = vmatpush.msra.mxu0 %v403
    %3285 = vmatpush.msra.mxu0 %v399
    %3286 = vmatpush.msra.mxu0 %v395
    %3287 = vmatpush.msra.mxu0 %v391
    %3288 = vmatpush.msra.mxu0 %v387
    %3289 = vmatmul.f32.gmra.mxu0 %v3002
    %v3290 = vpop.f32.mrf.mxu0
    %v3291 = vadd.f32 0.0, %v3290
    %3292 = vdwg.mxu0
    %3293 = vmatpush.msra.mxu0 %v448
    %3294 = vmatpush.msra.mxu0 %v444
    %3295 = vmatpush.msra.mxu0 %v440
    %3296 = vmatpush.msra.mxu0 %v436
    %3297 = vmatpush.msra.mxu0 %v432
    %3298 = vmatpush.msra.mxu0 %v428
    %3299 = vmatpush.msra.mxu0 %v424
    %3300 = vmatpush.msra.mxu0 %v420
    %3301 = vmatpush.msra.mxu0 %v416
    %3302 = vmatpush.msra.mxu0 %v412
    %3303 = vmatpush.msra.mxu0 %v408
    %3304 = vmatpush.msra.mxu0 %v404
    %3305 = vmatpush.msra.mxu0 %v400
    %3306 = vmatpush.msra.mxu0 %v396
    %3307 = vmatpush.msra.mxu0 %v392
    %3308 = vmatpush.msra.mxu0 %v388
    %3309 = vmatmul.f32.gmra.mxu0 %v3002
    %v3310 = vpop.f32.mrf.mxu0
    %v3311 = vadd.f32 0.0, %v3310
    %3312 = vdwg.mxu0
    %v3313 = vadd.f32 %v3229, %v3251
    %v3314 = vadd.f32 %v3230, %v3271
    %v3315 = vadd.f32 %v3231, %v3291
    %v3316 = vadd.f32 %v3232, %v3311
    %v3317 = vxor.u32 %v3313, 2147483648
    %v3318 = vxor.u32 %v3314, 2147483648
    %v3319 = vxor.u32 %v3315, 2147483648
    %v3320 = vmul.f32 %v3317, 1.442695
    %v3321 = vpow.pop %v3320
    %v3322 = vmul.f32 %v3318, 1.442695
    %v3323 = vpow.pop %v3322
    %v3324 = vmul.f32 %v3319, 1.442695
    %v3325 = vpow.pop %v3324
    %v3326 = vadd.f32 %v3321, 1.0
    %v3327 = vadd.f32 %v3323, 1.0
    %v3328 = vadd.f32 %v3325, 1.0
    %v3329 = vrcp.pop %v3326
    %v3330 = vmul.f32 %v3326, %v3329
    %v3331 = vsub.f32 1.0, %v3330
    %v3332 = vmul.f32 %v3329, %v3331
    %v3333 = vadd.f32 %v3329, %v3332
    %vm3334 = vweird.f32 %v3326
    %vm3335 = vweird.f32 %v3329
    %vm3336 = vmor %vm3334, %vm3335
    %v3337 = vsel %vm3336, %v3329, %v3333
    %v3338 = vand.u32 2147483647, %v3326
    %vm3339 = vcmp.eq.f32.partialorder %v3338, 8.507059e+37
    %v3340 = vand.u32 %v3326, 2147483648
    %v3341 = vor.u32 1.1754944e-38, %v3340
    %v3342 = vsel %vm3339, %v3341, %v3337
    %v3343 = vmul.f32 1.0, %v3342
    %v3344 = vrcp.pop %v3327
    %v3345 = vmul.f32 %v3327, %v3344
    %v3346 = vsub.f32 1.0, %v3345
    %v3347 = vmul.f32 %v3344, %v3346
    %v3348 = vadd.f32 %v3344, %v3347
    %vm3349 = vweird.f32 %v3327
    %vm3350 = vweird.f32 %v3344
    %vm3351 = vmor %vm3349, %vm3350
    %v3352 = vsel %vm3351, %v3344, %v3348
    %v3353 = vand.u32 2147483647, %v3327
    %vm3354 = vcmp.eq.f32.partialorder %v3353, 8.507059e+37
    %v3355 = vand.u32 %v3327, 2147483648
    %v3356 = vor.u32 1.1754944e-38, %v3355
    %v3357 = vsel %vm3354, %v3356, %v3352
    %v3358 = vmul.f32 1.0, %v3357
    %v3359 = vrcp.pop %v3328
    %v3360 = vmul.f32 %v3328, %v3359
    %v3361 = vsub.f32 1.0, %v3360
    %v3362 = vmul.f32 %v3359, %v3361
    %v3363 = vadd.f32 %v3359, %v3362
    %vm3364 = vweird.f32 %v3328
    %vm3365 = vweird.f32 %v3359
    %vm3366 = vmor %vm3364, %vm3365
    %v3367 = vsel %vm3366, %v3359, %v3363
    %v3368 = vand.u32 2147483647, %v3328
    %vm3369 = vcmp.eq.f32.partialorder %v3368, 8.507059e+37
    %v3370 = vand.u32 %v3328, 2147483648
    %v3371 = vor.u32 1.1754944e-38, %v3370
    %v3372 = vsel %vm3369, %v3371, %v3367
    %v3373 = vmul.f32 1.0, %v3372
    %v3374 = vtanh.pop %v3316
    %v3375 = vmul.f32 %v3358, %v3000
    %v3376 = vmul.f32 %v3343, %v3374
    %v3377 = vadd.f32 %v3375, %v3376
    %v3378 = vtanh.pop %v3377
    %v3379 = vmul.f32 %v3373, %v3378
    %3380 = vmatpush.msra.mxu0 %v509
    %3381 = vmatpush.msra.mxu0 %v505
    %3382 = vmatpush.msra.mxu0 %v501
    %3383 = vmatpush.msra.mxu0 %v497
    %3384 = vmatpush.msra.mxu0 %v493
    %3385 = vmatpush.msra.mxu0 %v489
    %3386 = vmatpush.msra.mxu0 %v485
    %3387 = vmatpush.msra.mxu0 %v481
    %3388 = vmatpush.msra.mxu0 %v477
    %3389 = vmatpush.msra.mxu0 %v473
    %3390 = vmatpush.msra.mxu0 %v469
    %3391 = vmatpush.msra.mxu0 %v465
    %3392 = vmatpush.msra.mxu0 %v461
    %3393 = vmatpush.msra.mxu0 %v457
    %3394 = vmatpush.msra.mxu0 %v453
    %3395 = vmatpush.msra.mxu0 %v449
    %3396 = vmatmul.f32.gmra.mxu0 %v3379
    %v3397 = vpop.f32.mrf.mxu0
    %v3398 = vadd.f32 %v579, %v3397
    %3399 = vdwg.mxu0
    %3400 = vmatpush.msra.mxu0 %v573
    %3401 = vmatpush.msra.mxu0 %v569
    %3402 = vmatpush.msra.mxu0 %v565
    %3403 = vmatpush.msra.mxu0 %v561
    %3404 = vmatpush.msra.mxu0 %v557
    %3405 = vmatpush.msra.mxu0 %v553
    %3406 = vmatpush.msra.mxu0 %v549
    %3407 = vmatpush.msra.mxu0 %v545
    %3408 = vmatpush.msra.mxu0 %v541
    %3409 = vmatpush.msra.mxu0 %v537
    %3410 = vmatpush.msra.mxu0 %v533
    %3411 = vmatpush.msra.mxu0 %v529
    %3412 = vmatpush.msra.mxu0 %v525
    %3413 = vmatpush.msra.mxu0 %v521
    %3414 = vmatpush.msra.mxu0 %v517
    %3415 = vmatpush.msra.mxu0 %v513
    %3416 = vmatmul.f32.gmra.mxu0 %v3225
    %v3417 = vpop.f32.mrf.mxu0
    %v3418 = vadd.f32 %v3398, %v3417
    %3419 = vdwg.mxu0
    %3420 = vmatpush.msra.mxu0 %v510
    %3421 = vmatpush.msra.mxu0 %v506
    %3422 = vmatpush.msra.mxu0 %v502
    %3423 = vmatpush.msra.mxu0 %v498
    %3424 = vmatpush.msra.mxu0 %v494
    %3425 = vmatpush.msra.mxu0 %v490
    %3426 = vmatpush.msra.mxu0 %v486
    %3427 = vmatpush.msra.mxu0 %v482
    %3428 = vmatpush.msra.mxu0 %v478
    %3429 = vmatpush.msra.mxu0 %v474
    %3430 = vmatpush.msra.mxu0 %v470
    %3431 = vmatpush.msra.mxu0 %v466
    %3432 = vmatpush.msra.mxu0 %v462
    %3433 = vmatpush.msra.mxu0 %v458
    %3434 = vmatpush.msra.mxu0 %v454
    %3435 = vmatpush.msra.mxu0 %v450
    %3436 = vmatmul.f32.gmra.mxu0 %v3379
    %v3437 = vpop.f32.mrf.mxu0
    %v3438 = vadd.f32 %v580, %v3437
    %3439 = vdwg.mxu0
    %3440 = vmatpush.msra.mxu0 %v574
    %3441 = vmatpush.msra.mxu0 %v570
    %3442 = vmatpush.msra.mxu0 %v566
    %3443 = vmatpush.msra.mxu0 %v562
    %3444 = vmatpush.msra.mxu0 %v558
    %3445 = vmatpush.msra.mxu0 %v554
    %3446 = vmatpush.msra.mxu0 %v550
    %3447 = vmatpush.msra.mxu0 %v546
    %3448 = vmatpush.msra.mxu0 %v542
    %3449 = vmatpush.msra.mxu0 %v538
    %3450 = vmatpush.msra.mxu0 %v534
    %3451 = vmatpush.msra.mxu0 %v530
    %3452 = vmatpush.msra.mxu0 %v526
    %3453 = vmatpush.msra.mxu0 %v522
    %3454 = vmatpush.msra.mxu0 %v518
    %3455 = vmatpush.msra.mxu0 %v514
    %3456 = vmatmul.f32.gmra.mxu0 %v3225
    %v3457 = vpop.f32.mrf.mxu0
    %v3458 = vadd.f32 %v3438, %v3457
    %3459 = vdwg.mxu0
    %3460 = vmatpush.msra.mxu0 %v511
    %3461 = vmatpush.msra.mxu0 %v507
    %3462 = vmatpush.msra.mxu0 %v503
    %3463 = vmatpush.msra.mxu0 %v499
    %3464 = vmatpush.msra.mxu0 %v495
    %3465 = vmatpush.msra.mxu0 %v491
    %3466 = vmatpush.msra.mxu0 %v487
    %3467 = vmatpush.msra.mxu0 %v483
    %3468 = vmatpush.msra.mxu0 %v479
    %3469 = vmatpush.msra.mxu0 %v475
    %3470 = vmatpush.msra.mxu0 %v471
    %3471 = vmatpush.msra.mxu0 %v467
    %3472 = vmatpush.msra.mxu0 %v463
    %3473 = vmatpush.msra.mxu0 %v459
    %3474 = vmatpush.msra.mxu0 %v455
    %3475 = vmatpush.msra.mxu0 %v451
    %3476 = vmatmul.f32.gmra.mxu0 %v3379
    %v3477 = vpop.f32.mrf.mxu0
    %v3478 = vadd.f32 %v581, %v3477
    %3479 = vdwg.mxu0
    %3480 = vmatpush.msra.mxu0 %v575
    %3481 = vmatpush.msra.mxu0 %v571
    %3482 = vmatpush.msra.mxu0 %v567
    %3483 = vmatpush.msra.mxu0 %v563
    %3484 = vmatpush.msra.mxu0 %v559
    %3485 = vmatpush.msra.mxu0 %v555
    %3486 = vmatpush.msra.mxu0 %v551
    %3487 = vmatpush.msra.mxu0 %v547
    %3488 = vmatpush.msra.mxu0 %v543
    %3489 = vmatpush.msra.mxu0 %v539
    %3490 = vmatpush.msra.mxu0 %v535
    %3491 = vmatpush.msra.mxu0 %v531
    %3492 = vmatpush.msra.mxu0 %v527
    %3493 = vmatpush.msra.mxu0 %v523
    %3494 = vmatpush.msra.mxu0 %v519
    %3495 = vmatpush.msra.mxu0 %v515
    %3496 = vmatmul.f32.gmra.mxu0 %v3225
    %v3497 = vpop.f32.mrf.mxu0
    %v3498 = vadd.f32 %v3478, %v3497
    %3499 = vdwg.mxu0
    %3500 = vmatpush.msra.mxu0 %v512
    %3501 = vmatpush.msra.mxu0 %v508
    %3502 = vmatpush.msra.mxu0 %v504
    %3503 = vmatpush.msra.mxu0 %v500
    %3504 = vmatpush.msra.mxu0 %v496
    %3505 = vmatpush.msra.mxu0 %v492
    %3506 = vmatpush.msra.mxu0 %v488
    %3507 = vmatpush.msra.mxu0 %v484
    %3508 = vmatpush.msra.mxu0 %v480
    %3509 = vmatpush.msra.mxu0 %v476
    %3510 = vmatpush.msra.mxu0 %v472
    %3511 = vmatpush.msra.mxu0 %v468
    %3512 = vmatpush.msra.mxu0 %v464
    %3513 = vmatpush.msra.mxu0 %v460
    %3514 = vmatpush.msra.mxu0 %v456
    %3515 = vmatpush.msra.mxu0 %v452
    %3516 = vmatmul.f32.gmra.mxu0 %v3379
    %v3517 = vpop.f32.mrf.mxu0
    %v3518 = vadd.f32 %v582, %v3517
    %3519 = vdwg.mxu0
    %3520 = vmatpush.msra.mxu0 %v576
    %3521 = vmatpush.msra.mxu0 %v572
    %3522 = vmatpush.msra.mxu0 %v568
    %3523 = vmatpush.msra.mxu0 %v564
    %3524 = vmatpush.msra.mxu0 %v560
    %3525 = vmatpush.msra.mxu0 %v556
    %3526 = vmatpush.msra.mxu0 %v552
    %3527 = vmatpush.msra.mxu0 %v548
    %3528 = vmatpush.msra.mxu0 %v544
    %3529 = vmatpush.msra.mxu0 %v540
    %3530 = vmatpush.msra.mxu0 %v536
    %3531 = vmatpush.msra.mxu0 %v532
    %3532 = vmatpush.msra.mxu0 %v528
    %3533 = vmatpush.msra.mxu0 %v524
    %3534 = vmatpush.msra.mxu0 %v520
    %3535 = vmatpush.msra.mxu0 %v516
    %3536 = vmatmul.f32.gmra.mxu0 %v3225
    %v3537 = vpop.f32.mrf.mxu0
    %v3538 = vadd.f32 %v3518, %v3537
    %3539 = vdwg.mxu0
    %v3540 = vxor.u32 %v3418, 2147483648
    %v3541 = vxor.u32 %v3458, 2147483648
    %v3542 = vxor.u32 %v3498, 2147483648
    %v3543 = vmul.f32 %v3540, 1.442695
    %v3544 = vpow.pop %v3543
    %v3545 = vmul.f32 %v3541, 1.442695
    %v3546 = vpow.pop %v3545
    %v3547 = vmul.f32 %v3542, 1.442695
    %v3548 = vpow.pop %v3547
    %v3549 = vadd.f32 %v3544, 1.0
    %v3550 = vadd.f32 %v3546, 1.0
    %v3551 = vadd.f32 %v3548, 1.0
    %v3552 = vrcp.pop %v3549
    %v3553 = vmul.f32 %v3549, %v3552
    %v3554 = vsub.f32 1.0, %v3553
    %v3555 = vmul.f32 %v3552, %v3554
    %v3556 = vadd.f32 %v3552, %v3555
    %vm3557 = vweird.f32 %v3549
    %vm3558 = vweird.f32 %v3552
    %vm3559 = vmor %vm3557, %vm3558
    %v3560 = vsel %vm3559, %v3552, %v3556
    %v3561 = vand.u32 2147483647, %v3549
    %vm3562 = vcmp.eq.f32.partialorder %v3561, 8.507059e+37
    %v3563 = vand.u32 %v3549, 2147483648
    %v3564 = vor.u32 1.1754944e-38, %v3563
    %v3565 = vsel %vm3562, %v3564, %v3560
    %v3566 = vmul.f32 1.0, %v3565
    %v3567 = vrcp.pop %v3550
    %v3568 = vmul.f32 %v3550, %v3567
    %v3569 = vsub.f32 1.0, %v3568
    %v3570 = vmul.f32 %v3567, %v3569
    %v3571 = vadd.f32 %v3567, %v3570
    %vm3572 = vweird.f32 %v3550
    %vm3573 = vweird.f32 %v3567
    %vm3574 = vmor %vm3572, %vm3573
    %v3575 = vsel %vm3574, %v3567, %v3571
    %v3576 = vand.u32 2147483647, %v3550
    %vm3577 = vcmp.eq.f32.partialorder %v3576, 8.507059e+37
    %v3578 = vand.u32 %v3550, 2147483648
    %v3579 = vor.u32 1.1754944e-38, %v3578
    %v3580 = vsel %vm3577, %v3579, %v3575
    %v3581 = vmul.f32 1.0, %v3580
    %v3582 = vrcp.pop %v3551
    %v3583 = vmul.f32 %v3551, %v3582
    %v3584 = vsub.f32 1.0, %v3583
    %v3585 = vmul.f32 %v3582, %v3584
    %v3586 = vadd.f32 %v3582, %v3585
    %vm3587 = vweird.f32 %v3551
    %vm3588 = vweird.f32 %v3582
    %vm3589 = vmor %vm3587, %vm3588
    %v3590 = vsel %vm3589, %v3582, %v3586
    %v3591 = vand.u32 2147483647, %v3551
    %vm3592 = vcmp.eq.f32.partialorder %v3591, 8.507059e+37
    %v3593 = vand.u32 %v3551, 2147483648
    %v3594 = vor.u32 1.1754944e-38, %v3593
    %v3595 = vsel %vm3592, %v3594, %v3590
    %v3596 = vmul.f32 1.0, %v3595
    %v3597 = vtanh.pop %v3538
    %v3598 = vmul.f32 %v3581, %v3223
    %v3599 = vmul.f32 %v3566, %v3597
    %v3600 = vadd.f32 %v3598, %v3599
    %v3601 = vtanh.pop %v3600
    %v3602 = vmul.f32 %v3596, %v3601
    %v3603 = vld [vmem:[%s6] sm:$0x1]
    %v3605 = vperm.slane %v3603, 0
    %v3607 = vmul.f32 %v3602, %v3605
    %3608 = vadd.xlane.f32.xlu0 %v3607
    %v3609 = vpop.xlane.xlu0 %3608
    %s3610 = sld [smem:[#allocation3]]
    %v3611 = vstv %s3610
    %v3612 = vadd.f32 %v3609, %v3611
    %3613 = vst [vmem:[#allocation13] sm:$0xff] %v3612
    // Predicated region
    $region54: #{tpu_custom_call.1} parent=1 // pred_check
      _
    $region55: #{tpu_custom_call.1} parent=1 // pred_check_branch
      %3615 = sbr.rel (0) target = $region57
    $region56: #{tpu_custom_call.1} parent=1 // pred_region
      %3617 = vsyncadd [#allocation6], 0
      %s3619 = sshll.u32 [#allocation13], 4
      %s3620 = int_to_ptr.vmem [resolvable:$true] %s3619
      %s3621 = sshll.u32 %s8, 4
      %s3622 = int_to_ptr.hbm [resolvable:$true] %s3621
      %3624 = dma.vmem_to_hbm [thread:$0]  %s3620, 128, %s3622, [#allocation6]
    $region57: #{tpu_custom_call.1} parent=1 // pred_fallthru
      _
    // Predicated region
    $region58: #{tpu_custom_call.1} parent=1 // pred_check
      _
    $region59: #{tpu_custom_call.1} parent=1 // pred_check_branch
      %3626 = sbr.rel (0) target = $region61
    $region60: #{tpu_custom_call.1} parent=1 // pred_region
      %3628 = dma.done [#allocation6], 128
    $region61: #{tpu_custom_call.1} parent=1 // pred_fallthru
      _
    %3629 = vsyncpa [#allocation5], 1
    %3630 = vsyncpa [#allocation8], 1
    %3631 = vsyncpa [#allocation11], 1
    %3632 = vsyncpa [#allocation6], 1

</llo_original>
